<compile_context>
chip_gen: v6e
topology: v6e:2x2x1
jax: 0.10.0
libtpu: 0.0.40
codegen_flags: <defaults>
</compile_context>

<pallas_src>
import math
import functools

import jax
import jax.numpy as jnp
from jax.experimental import pallas as pl
from jax.experimental.pallas import tpu as pltpu

EPS = 1e-5            # nn.LayerNorm default eps
ADAPTER_SCALE = 0.1   # Adapter(adapter_scalar=0.1)
F32 = jnp.float32

PER_LAYER_KEYS = ('ln1_g', 'ln1_b', 'wqkv', 'bqkv', 'wo', 'bo',
                  'lna_g', 'lna_b', 'wdown', 'bdown', 'wup', 'bup',
                  'ln2_g', 'ln2_b', 'wfc', 'bfc', 'wproj', 'bproj')


def _const_spec(shape):
    """Full-array block whose block index is constant across the grid."""
    nd = len(shape)
    return pl.BlockSpec(tuple(shape), lambda *g, _nd=nd: (0,) * _nd)


def _layer_spec(stacked_shape):
    """Per-layer weight: leading (squeezed) layer axis indexed by the grid."""
    nd = len(stacked_shape)
    return pl.BlockSpec((None,) + tuple(stacked_shape[1:]),
                        lambda l, _nd=nd: (l,) + (0,) * (_nd - 1))


def _ln(x, g, b):
    mu = jnp.mean(x, axis=-1, keepdims=True)
    c = x - mu
    var = jnp.mean(c * c, axis=-1, keepdims=True)
    return c * jax.lax.rsqrt(var + EPS) * g + b


# --------------------------------------------------------------------------- #
# Fused patch-embed + encoder + head kernel.
# grid = (layers,), "arbitrary": tokens are a resident VMEM scratch (B*Tp, D).
#   layer 0   : patch-embed matmul, CLS insert, + positional_embedding, ln_pre
#   every step: pre-LN MHA + AdaptFormer parallel adapter + QuickGELU MLP
#   last layer: ln_post -> @proj -> fc_transform -> ReLU -> prompt attn, fc_head
# --------------------------------------------------------------------------- #
def _encoder_kernel(patches_ref, convw_ref, cls_ref, pos_ref, kbias_ref,
                    lnpre_g, lnpre_b,
                    ln1_g, ln1_b, wqkv, bqkv, wo, bo,
                    lna_g, lna_b, wdown, bdown, wup, bup,
                    ln2_g, ln2_b, wfc, bfc, wproj, bproj,
                    lnpost_g, lnpost_b, vproj, wt, bt, prompt_t, whead,
                    out_ref, pattn_ref, feat_ref,
                    xs_ref,
                    *, num_heads, B, Tp, D, adapter_scale, dim_scale):
    l = pl.program_id(0)
    dh = D // num_heads
    scale = 1.0 / math.sqrt(dh)

    # ---- layer 0: patch embedding, CLS insert, positional add, ln_pre ----
    @pl.when(l == 0)
    def _():
        # conv1 (bias-free, kernel==stride) as one matmul over pre-padded
        # patch rows: row 0 (CLS slot) and sublane-pad rows are all-zero inputs
        # so they produce exactly zero embeddings.
        emb = jnp.dot(patches_ref[...], convw_ref[...],
                      preferred_element_type=F32).reshape(B, Tp, D)
        tok_idx = jax.lax.broadcasted_iota(jnp.int32, (B, Tp, D), 1)
        t = jnp.where(tok_idx == 0, cls_ref[...][None, :, :], emb)
        t = t + pos_ref[...][None, :, :]
        t = _ln(t, lnpre_g[...], lnpre_b[...])
        xs_ref[...] = t.reshape(B * Tp, D)

    # ---- residual attention block (batch folded into rows) ----
    x = xs_ref[...]                                             # (B*Tp, D)
    h = _ln(x, ln1_g[...], ln1_b[...])
    qkv = jnp.dot(h, wqkv[...], preferred_element_type=F32) + bqkv[...]
    q = qkv[:, 0:D].reshape(B, Tp, D)
    k = qkv[:, D:2 * D].reshape(B, Tp, D)
    v = qkv[:, 2 * D:3 * D].reshape(B, Tp, D)
    kb = kbias_ref[...][:, None, :]                             # (1, 1, Tp)

    heads_out = []
    for hh in range(num_heads):
        sl = slice(hh * dh, (hh + 1) * dh)
        s = jnp.einsum('bqd,bkd->bqk', q[:, :, sl], k[:, :, sl],
                       preferred_element_type=F32) * scale
        s = s + kb                                              # mask padded keys
        s = s - jnp.max(s, axis=-1, keepdims=True)
        p = jnp.exp(s)
        p = p * pl.reciprocal(jnp.sum(p, axis=-1, keepdims=True), approx=True)
        heads_out.append(jnp.einsum('bqk,bkd->bqd', p, v[:, :, sl],
                                    preferred_element_type=F32))
    attn = jnp.concatenate(heads_out, axis=-1).reshape(B * Tp, D)
    x = x + jnp.dot(attn, wo[...], preferred_element_type=F32) + bo[...]

    # ---- AdaptFormer parallel adapter (dropout is a no-op in eval mode) ----
    a = _ln(x, lna_g[...], lna_b[...])
    down = jnp.maximum(
        jnp.dot(a, wdown[...], preferred_element_type=F32) + bdown[...], 0.0)
    adapt = (jnp.dot(down, wup[...], preferred_element_type=F32)
             + bup[...]) * adapter_scale

    # ---- MLP with QuickGELU on ln_2(x) ----
    m = _ln(x, ln2_g[...], ln2_b[...])
    fc = jnp.dot(m, wfc[...], preferred_element_type=F32) + bfc[...]
    gelu = fc * (1.0 / (1.0 + jnp.exp(-1.702 * fc)))
    mlp = jnp.dot(gelu, wproj[...], preferred_element_type=F32) + bproj[...]

    x_new = x + mlp + adapt
    xs_ref[...] = x_new

    # ---- last layer: fused classification head on the CLS tokens ----
    @pl.when(l == pl.num_programs(0) - 1)
    def _():
        cls_tok = x_new.reshape(B, Tp, D)[:, 0, :]              # (B, D)
        c = _ln(cls_tok, lnpost_g[...], lnpost_b[...])          # ln_post
        img = jnp.dot(c, vproj[...], preferred_element_type=F32)     # @ proj
        feat = jnp.dot(img, wt[...], preferred_element_type=F32) + bt[...]
        relu_f = jnp.maximum(feat, 0.0)                         # ReLU(inplace)
        pattn_ref[...] = jnp.dot(relu_f, prompt_t[...],
                                 preferred_element_type=F32) * dim_scale
        out_ref[...] = jnp.dot(relu_f, whead[...], preferred_element_type=F32)
        # nn.ReLU(inplace=True) aliases the returned `features` to the relu'd tensor
        feat_ref[...] = relu_f


def encoder_and_head(patches2d, pos, key_bias, params, *, B, Tp):
    Cpp, D = params['conv_w'].shape
    heads = params['heads']
    dim = params['dim']
    L = params['wqkv'].shape[0]
    C = params['whead'].shape[1]

    consts = [patches2d, params['conv_w'], params['cls'], pos, key_bias,
              params['ln_pre_g'], params['ln_pre_b']]
    per_layer = [params[k] for k in PER_LAYER_KEYS]
    head_w = [params['ln_post_g'], params['ln_post_b'], params['proj'],
              params['wt'], params['bt'], params['prompt'].T, params['whead']]

    in_specs = ([_const_spec(a.shape) for a in consts]
                + [_layer_spec(a.shape) for a in per_layer]
                + [_const_spec(a.shape) for a in head_w])
    out_shape = (jax.ShapeDtypeStruct((B, C), F32),
                 jax.ShapeDtypeStruct((B, C), F32),
                 jax.ShapeDtypeStruct((B, dim), F32))
    out_specs = (_const_spec((B, C)), _const_spec((B, C)), _const_spec((B, dim)))

    kernel = functools.partial(_encoder_kernel, num_heads=heads, B=B, Tp=Tp, D=D,
                               adapter_scale=ADAPTER_SCALE,
                               dim_scale=dim ** (-0.5))
    return pl.pallas_call(
        kernel,
        out_shape=out_shape,
        grid_spec=pltpu.PrefetchScalarGridSpec(
            num_scalar_prefetch=0,
            grid=(L,),
            in_specs=in_specs,
            out_specs=out_specs,
            scratch_shapes=[pltpu.VMEM((B * Tp, D), F32)]),
        compiler_params=pltpu.CompilerParams(
            dimension_semantics=("arbitrary",),
            vmem_limit_bytes=32 * 1024 * 1024),
    )(*consts, *per_layer, *head_w)


# --------------------------------------------------------------------------- #
# Parameter construction (deterministic, synthetic) and forward wrapper.
# Scaled-down config (real: width=768, 12 layers, 12 heads, patch=16, embed=512,
# dimension=256, down=64): patch=8, width=64, heads=4, layers=2, embed=32,
# dimension=16, classes=5, down=16.
# --------------------------------------------------------------------------- #
def init_params(key, *, in_ch=3, patch=8, width=64, heads=4, layers=2,
                embed=32, dim=16, num_classes=5, down=16, img=32):
    T = (img // patch) ** 2 + 1
    L, D = layers, width
    keys = iter(jax.random.split(key, 64))
    nrm = lambda shape, s=0.05: s * jax.random.normal(next(keys), shape, dtype=F32)
    params = dict(
        patch=patch, heads=heads, dim=dim,
        conv_w=nrm((in_ch * patch * patch, width)),   # conv1 weight, flattened & transposed
        cls=nrm((1, width)),                          # class_embedding
        pos=nrm((T, width)),                          # positional_embedding
        ln_pre_g=1.0 + nrm((1, width), 0.1), ln_pre_b=nrm((1, width), 0.1),
        ln_post_g=1.0 + nrm((1, width), 0.1), ln_post_b=nrm((1, width), 0.1),
        proj=nrm((width, embed)),                     # visual.proj
        wt=nrm((embed, dim)), bt=nrm((1, dim)),       # fc_transform (W.T, b)
        prompt=jax.random.normal(next(keys), (num_classes, dim), dtype=F32),
        whead=nrm((dim, num_classes)),                # fc_head weight transposed
        # per-layer weights stacked along a leading layer axis
        ln1_g=1.0 + nrm((L, 1, D), 0.1), ln1_b=nrm((L, 1, D), 0.1),
        wqkv=nrm((L, D, 3 * D)), bqkv=nrm((L, 1, 3 * D)),
        wo=nrm((L, D, D)), bo=nrm((L, 1, D)),
        lna_g=1.0 + nrm((L, 1, D), 0.1), lna_b=nrm((L, 1, D), 0.1),
        wdown=nrm((L, D, down)), bdown=nrm((L, 1, down)),
        wup=nrm((L, down, D)), bup=nrm((L, 1, D)),
        ln2_g=1.0 + nrm((L, 1, D), 0.1), ln2_b=nrm((L, 1, D), 0.1),
        wfc=nrm((L, D, 4 * D)), bfc=nrm((L, 1, 4 * D)),
        wproj=nrm((L, 4 * D, D)), bproj=nrm((L, 1, D)),
    )
    return params


def vit_adaptformer_forward(params, x):
    B, Cc, H, W = x.shape
    p = params['patch']
    gh, gw = H // p, W // p
    N = gh * gw
    T = N + 1
    Tp = ((T + 7) // 8) * 8                                           # pad to sublane multiple

    # patch extraction (glue): (B,3,H,W) -> (B,N,3*p*p) with (c, ki, kj) ordering,
    # then pad a zero row in front (CLS slot) and zero rows at the end (sublane
    # pad) so the bias-free conv matmul yields zero embeddings there.
    patches = x.reshape(B, Cc, gh, p, gw, p).transpose(0, 2, 4, 1, 3, 5) \
               .reshape(B, N, Cc * p * p)
    patches = jnp.pad(patches, ((0, 0), (1, Tp - 1 - N), (0, 0))) \
                 .reshape(B * Tp, Cc * p * p)
    pos = jnp.pad(params['pos'], ((0, Tp - T), (0, 0)))
    key_bias = jnp.where(jnp.arange(Tp) < T, 0.0, -1e30).astype(F32).reshape(1, Tp)

    out, prompt_attn, features = encoder_and_head(patches, pos, key_bias, params,
                                                  B=B, Tp=Tp)
    return out, prompt_attn, features, params['prompt']


# --------------------------------------------------------------------------- #
# Pure-JAX reference (same math, unpadded) used only to check the kernels.
# --------------------------------------------------------------------------- #
def reference_forward(params, x):
    B, Cc, H, W = x.shape
    p, heads, dim = params['patch'], params['heads'], params['dim']
    gh, gw = H // p, W // p
    N = gh * gw
    patches = x.reshape(B, Cc, gh, p, gw, p).transpose(0, 2, 4, 1, 3, 5) \
               .reshape(B * N, Cc * p * p)
    tok = patches @ params['conv_w']
    D = tok.shape[-1]
    tok = tok.reshape(B, N, D)
    tokens = jnp.concatenate(
        [jnp.broadcast_to(params['cls'][None], (B, 1, D)), tok], axis=1)
    tokens = tokens + params['pos'][None]
    tokens = _ln(tokens, params['ln_pre_g'], params['ln_pre_b'])
    dh = D // heads
    L = params['wqkv'].shape[0]
    for li in range(L):
        h = _ln(tokens, params['ln1_g'][li], params['ln1_b'][li])
        qkv = h @ params['wqkv'][li] + params['bqkv'][li]
        q, k, v = qkv[..., :D], qkv[..., D:2 * D], qkv[..., 2 * D:]
        q = q.reshape(B, -1, heads, dh).transpose(0, 2, 1, 3)
        k = k.reshape(B, -1, heads, dh).transpose(0, 2, 1, 3)
        v = v.reshape(B, -1, heads, dh).transpose(0, 2, 1, 3)
        s = jnp.einsum('bhtd,bhsd->bhts', q, k) / math.sqrt(dh)
        pa = jax.nn.softmax(s, axis=-1)
        o = jnp.einsum('bhts,bhsd->bhtd', pa, v).transpose(0, 2, 1, 3).reshape(B, -1, D)
        tokens = tokens + o @ params['wo'][li] + params['bo'][li]
        a = _ln(tokens, params['lna_g'][li], params['lna_b'][li])
        adapt = (jnp.maximum(a @ params['wdown'][li] + params['bdown'][li], 0.0)
                 @ params['wup'][li] + params['bup'][li]) * ADAPTER_SCALE
        m = _ln(tokens, params['ln2_g'][li], params['ln2_b'][li])
        fc = m @ params['wfc'][li] + params['bfc'][li]
        g = fc * jax.nn.sigmoid(1.702 * fc)
        tokens = tokens + (g @ params['wproj'][li] + params['bproj'][li]) + adapt
    clst = _ln(tokens[:, 0, :], params['ln_post_g'], params['ln_post_b'])
    img = clst @ params['proj']
    feat = img @ params['wt'] + params['bt']
    relu_f = jnp.maximum(feat, 0.0)
    prompt_attn = relu_f @ params['prompt'].T * dim ** (-0.5)
    out = relu_f @ params['whead']
    return out, prompt_attn, relu_f, params['prompt']


if __name__ == "__main__":
    key = jax.random.PRNGKey(0)
    kp, kx = jax.random.split(key)
    params = init_params(kp)
    x = jax.random.normal(kx, (2, 3, 32, 32), dtype=F32)

    outs = vit_adaptformer_forward(params, x)
    outs = jax.block_until_ready(outs)

    refs = reference_forward(params, x)
    # pl.reciprocal(approx=True) in the softmax introduces ~1e-4 level deviation;
    # 2e-3 covers that while staying tight.
    for o, r in zip(outs, refs):
        assert jnp.allclose(o, r, rtol=2e-3, atol=2e-3), float(jnp.max(jnp.abs(o - r)))

    print("KERNEL_OK")
</pallas_src>

<mosaic_0001>
module attributes {stable_mosaic.version = 11 : i64} {
  func.func @_encoder_kernel(%arg0: i32, %arg1: memref<48x192xf32, #tpu.memory_space<vmem>>, %arg2: memref<192x64xf32, #tpu.memory_space<vmem>>, %arg3: memref<1x64xf32, #tpu.memory_space<vmem>>, %arg4: memref<24x64xf32, #tpu.memory_space<vmem>>, %arg5: memref<1x24xf32, #tpu.memory_space<vmem>>, %arg6: memref<1x64xf32, #tpu.memory_space<vmem>>, %arg7: memref<1x64xf32, #tpu.memory_space<vmem>>, %arg8: memref<1x1x64xf32, #tpu.memory_space<vmem>>, %arg9: memref<1x1x64xf32, #tpu.memory_space<vmem>>, %arg10: memref<1x64x192xf32, #tpu.memory_space<vmem>>, %arg11: memref<1x1x192xf32, #tpu.memory_space<vmem>>, %arg12: memref<1x64x64xf32, #tpu.memory_space<vmem>>, %arg13: memref<1x1x64xf32, #tpu.memory_space<vmem>>, %arg14: memref<1x1x64xf32, #tpu.memory_space<vmem>>, %arg15: memref<1x1x64xf32, #tpu.memory_space<vmem>>, %arg16: memref<1x64x16xf32, #tpu.memory_space<vmem>>, %arg17: memref<1x1x16xf32, #tpu.memory_space<vmem>>, %arg18: memref<1x16x64xf32, #tpu.memory_space<vmem>>, %arg19: memref<1x1x64xf32, #tpu.memory_space<vmem>>, %arg20: memref<1x1x64xf32, #tpu.memory_space<vmem>>, %arg21: memref<1x1x64xf32, #tpu.memory_space<vmem>>, %arg22: memref<1x64x256xf32, #tpu.memory_space<vmem>>, %arg23: memref<1x1x256xf32, #tpu.memory_space<vmem>>, %arg24: memref<1x256x64xf32, #tpu.memory_space<vmem>>, %arg25: memref<1x1x64xf32, #tpu.memory_space<vmem>>, %arg26: memref<1x64xf32, #tpu.memory_space<vmem>>, %arg27: memref<1x64xf32, #tpu.memory_space<vmem>>, %arg28: memref<64x32xf32, #tpu.memory_space<vmem>>, %arg29: memref<32x16xf32, #tpu.memory_space<vmem>>, %arg30: memref<1x16xf32, #tpu.memory_space<vmem>>, %arg31: memref<16x5xf32, #tpu.memory_space<vmem>>, %arg32: memref<16x5xf32, #tpu.memory_space<vmem>>, %arg33: memref<2x5xf32, #tpu.memory_space<vmem>>, %arg34: memref<2x5xf32, #tpu.memory_space<vmem>>, %arg35: memref<2x16xf32, #tpu.memory_space<vmem>>, %arg36: memref<48x64xf32, #tpu.memory_space<vmem>>) attributes {dimension_semantics = [#tpu.dimension_semantics<arbitrary>], iteration_bounds = array<i64: 2>, scalar_prefetch = 0 : i64, scratch_operands = 1 : i64, tpu.core_type = #tpu.core_type<tc>, window_params = [{pipeline_mode = #tpu.pipeline_mode<synchronous>, transform_indices = @transform_0, window_bounds = array<i64: 48, 192>}, {pipeline_mode = #tpu.pipeline_mode<synchronous>, transform_indices = @transform_1, window_bounds = array<i64: 192, 64>}, {pipeline_mode = #tpu.pipeline_mode<synchronous>, transform_indices = @transform_2, window_bounds = array<i64: 1, 64>}, {pipeline_mode = #tpu.pipeline_mode<synchronous>, transform_indices = @transform_3, window_bounds = array<i64: 24, 64>}, {pipeline_mode = #tpu.pipeline_mode<synchronous>, transform_indices = @transform_4, window_bounds = array<i64: 1, 24>}, {pipeline_mode = #tpu.pipeline_mode<synchronous>, transform_indices = @transform_5, window_bounds = array<i64: 1, 64>}, {pipeline_mode = #tpu.pipeline_mode<synchronous>, transform_indices = @transform_6, window_bounds = array<i64: 1, 64>}, {transform_indices = @transform_7, window_bounds = array<i64: 1, 1, 64>}, {transform_indices = @transform_8, window_bounds = array<i64: 1, 1, 64>}, {transform_indices = @transform_9, window_bounds = array<i64: 1, 64, 192>}, {transform_indices = @transform_10, window_bounds = array<i64: 1, 1, 192>}, {transform_indices = @transform_11, window_bounds = array<i64: 1, 64, 64>}, {transform_indices = @transform_12, window_bounds = array<i64: 1, 1, 64>}, {transform_indices = @transform_13, window_bounds = array<i64: 1, 1, 64>}, {transform_indices = @transform_14, window_bounds = array<i64: 1, 1, 64>}, {transform_indices = @transform_15, window_bounds = array<i64: 1, 64, 16>}, {transform_indices = @transform_16, window_bounds = array<i64: 1, 1, 16>}, {transform_indices = @transform_17, window_bounds = array<i64: 1, 16, 64>}, {transform_indices = @transform_18, window_bounds = array<i64: 1, 1, 64>}, {transform_indices = @transform_19, window_bounds = array<i64: 1, 1, 64>}, {transform_indices = @transform_20, window_bounds = array<i64: 1, 1, 64>}, {transform_indices = @transform_21, window_bounds = array<i64: 1, 64, 256>}, {transform_indices = @transform_22, window_bounds = array<i64: 1, 1, 256>}, {transform_indices = @transform_23, window_bounds = array<i64: 1, 256, 64>}, {transform_indices = @transform_24, window_bounds = array<i64: 1, 1, 64>}, {pipeline_mode = #tpu.pipeline_mode<synchronous>, transform_indices = @transform_25, window_bounds = array<i64: 1, 64>}, {pipeline_mode = #tpu.pipeline_mode<synchronous>, transform_indices = @transform_26, window_bounds = array<i64: 1, 64>}, {pipeline_mode = #tpu.pipeline_mode<synchronous>, transform_indices = @transform_27, window_bounds = array<i64: 64, 32>}, {pipeline_mode = #tpu.pipeline_mode<synchronous>, transform_indices = @transform_28, window_bounds = array<i64: 32, 16>}, {pipeline_mode = #tpu.pipeline_mode<synchronous>, transform_indices = @transform_29, window_bounds = array<i64: 1, 16>}, {pipeline_mode = #tpu.pipeline_mode<synchronous>, transform_indices = @transform_30, window_bounds = array<i64: 16, 5>}, {pipeline_mode = #tpu.pipeline_mode<synchronous>, transform_indices = @transform_31, window_bounds = array<i64: 16, 5>}, {pipeline_mode = #tpu.pipeline_mode<synchronous>, transform_indices = @transform_32, window_bounds = array<i64: 2, 5>}, {pipeline_mode = #tpu.pipeline_mode<synchronous>, transform_indices = @transform_33, window_bounds = array<i64: 2, 5>}, {pipeline_mode = #tpu.pipeline_mode<synchronous>, transform_indices = @transform_34, window_bounds = array<i64: 2, 16>}]} {
    %c0_i32 = arith.constant 0 : i32
    %0 = arith.cmpi eq, %arg0, %c0_i32 : i32
    %1 = arith.extui %0 : i1 to i32
    %c0_i32_0 = arith.constant 0 : i32
    %2 = arith.cmpi ne, %1, %c0_i32_0 : i32
    scf.if %2 {
      %c0_106 = arith.constant 0 : index
      %c0_107 = arith.constant 0 : index
      %223 = vector.load %arg1[%c0_106, %c0_107] : memref<48x192xf32, #tpu.memory_space<vmem>>, vector<48x192xf32>
      %c0_108 = arith.constant 0 : index
      %c0_109 = arith.constant 0 : index
      %224 = vector.load %arg2[%c0_108, %c0_109] : memref<192x64xf32, #tpu.memory_space<vmem>>, vector<192x64xf32>
      %cst_110 = arith.constant dense<0.000000e+00> : vector<48x64xf32>
      %225 = tpu.matmul %223, %224, %cst_110 {dimension_numbers = #tpu.dot_dimension_numbers<[1], [0], [0], [1], [0, 0, 1, 1], [], []>} : vector<48x192xf32>, vector<192x64xf32>, vector<48x64xf32> -> vector<48x64xf32>
      %226 = vector.shape_cast %225 : vector<48x64xf32> to vector<2x24x64xf32>
      %227 = tpu.iota {dimensions = array<i32: 1>} : vector<2x24x64xi32>
      %c0_i32_111 = arith.constant 0 : i32
      %228 = vector.broadcast %c0_i32_111 : i32 to vector<2x24x64xi32>
      %229 = arith.cmpi eq, %227, %228 : vector<2x24x64xi32>
      %c0_112 = arith.constant 0 : index
      %c0_113 = arith.constant 0 : index
      %230 = vector.load %arg3[%c0_112, %c0_113] : memref<1x64xf32, #tpu.memory_space<vmem>>, vector<1x64xf32>
      %231 = vector.shape_cast %230 : vector<1x64xf32> to vector<1x1x64xf32>
      %232 = vector.shape_cast %231 : vector<1x1x64xf32> to vector<1x1x64xf32>
      %233 = vector.broadcast %232 : vector<1x1x64xf32> to vector<2x24x64xf32>
      %234 = arith.select %229, %233, %226 : vector<2x24x64xi1>, vector<2x24x64xf32>
      %c0_114 = arith.constant 0 : index
      %c0_115 = arith.constant 0 : index
      %235 = vector.load %arg4[%c0_114, %c0_115] : memref<24x64xf32, #tpu.memory_space<vmem>>, vector<24x64xf32>
      %236 = vector.shape_cast %235 : vector<24x64xf32> to vector<1x24x64xf32>
      %237 = vector.broadcast %236 : vector<1x24x64xf32> to vector<2x24x64xf32>
      %238 = arith.addf %234, %237 : vector<2x24x64xf32>
      %c0_116 = arith.constant 0 : index
      %c0_117 = arith.constant 0 : index
      %239 = vector.load %arg6[%c0_116, %c0_117] : memref<1x64xf32, #tpu.memory_space<vmem>>, vector<1x64xf32>
      %c0_118 = arith.constant 0 : index
      %c0_119 = arith.constant 0 : index
      %240 = vector.load %arg7[%c0_118, %c0_119] : memref<1x64xf32, #tpu.memory_space<vmem>>, vector<1x64xf32>
      %cst_120 = arith.constant dense<0.000000e+00> : vector<2x24xf32>
      %241 = vector.multi_reduction <add>, %238, %cst_120 [2] : vector<2x24x64xf32> to vector<2x24xf32>
      %242 = vector.shape_cast %241 : vector<2x24xf32> to vector<2x24x1xf32>
      %cst_121 = arith.constant 6.400000e+01 : f32
      %243 = vector.broadcast %cst_121 : f32 to vector<2x24x1xf32>
      %244 = arith.divf %242, %243 : vector<2x24x1xf32>
      %245 = vector.broadcast %244 : vector<2x24x1xf32> to vector<2x24x64xf32>
      %246 = arith.subf %238, %245 : vector<2x24x64xf32>
      %247 = arith.mulf %246, %246 : vector<2x24x64xf32>
      %cst_122 = arith.constant dense<0.000000e+00> : vector<2x24xf32>
      %248 = vector.multi_reduction <add>, %247, %cst_122 [2] : vector<2x24x64xf32> to vector<2x24xf32>
      %249 = vector.shape_cast %248 : vector<2x24xf32> to vector<2x24x1xf32>
      %cst_123 = arith.constant 6.400000e+01 : f32
      %250 = vector.broadcast %cst_123 : f32 to vector<2x24x1xf32>
      %251 = arith.divf %249, %250 : vector<2x24x1xf32>
      %cst_124 = arith.constant 9.99999974E-6 : f32
      %252 = vector.broadcast %cst_124 : f32 to vector<2x24x1xf32>
      %253 = arith.addf %251, %252 : vector<2x24x1xf32>
      %254 = math.rsqrt %253 : vector<2x24x1xf32>
      %255 = vector.broadcast %254 : vector<2x24x1xf32> to vector<2x24x64xf32>
      %256 = arith.mulf %246, %255 : vector<2x24x64xf32>
      %257 = vector.shape_cast %239 : vector<1x64xf32> to vector<1x1x64xf32>
      %258 = vector.broadcast %257 : vector<1x1x64xf32> to vector<2x24x64xf32>
      %259 = arith.mulf %256, %258 : vector<2x24x64xf32>
      %260 = vector.shape_cast %240 : vector<1x64xf32> to vector<1x1x64xf32>
      %261 = vector.broadcast %260 : vector<1x1x64xf32> to vector<2x24x64xf32>
      %262 = arith.addf %259, %261 : vector<2x24x64xf32>
      %263 = vector.shape_cast %262 : vector<2x24x64xf32> to vector<48x64xf32>
      %c0_125 = arith.constant 0 : index
      %c0_126 = arith.constant 0 : index
      %264 = vector.load %arg36[%c0_125, %c0_126] : memref<48x64xf32, #tpu.memory_space<vmem>>, vector<48x64xf32>
      tpu.vector_store %arg36[%c0_125, %c0_126], %263 {strides = array<i32>} : memref<48x64xf32, #tpu.memory_space<vmem>>, vector<48x64xf32>,
    } else {
    }
    %c0 = arith.constant 0 : index
    %c0_1 = arith.constant 0 : index
    %3 = vector.load %arg36[%c0, %c0_1] : memref<48x64xf32, #tpu.memory_space<vmem>>, vector<48x64xf32>
    %c0_2 = arith.constant 0 : index
    %c0_3 = arith.constant 0 : index
    %c0_4 = arith.constant 0 : index
    %4 = vector.load %arg8[%c0_2, %c0_3, %c0_4] : memref<1x1x64xf32, #tpu.memory_space<vmem>>, vector<1x1x64xf32>
    %5 = vector.shape_cast %4 : vector<1x1x64xf32> to vector<1x64xf32>
    %c0_5 = arith.constant 0 : index
    %c0_6 = arith.constant 0 : index
    %c0_7 = arith.constant 0 : index
    %6 = vector.load %arg9[%c0_5, %c0_6, %c0_7] : memref<1x1x64xf32, #tpu.memory_space<vmem>>, vector<1x1x64xf32>
    %7 = vector.shape_cast %6 : vector<1x1x64xf32> to vector<1x64xf32>
    %cst = arith.constant dense<0.000000e+00> : vector<48xf32>
    %8 = vector.multi_reduction <add>, %3, %cst [1] : vector<48x64xf32> to vector<48xf32>
    %9 = vector.shape_cast %8 : vector<48xf32> to vector<48x1xf32>
    %cst_8 = arith.constant 6.400000e+01 : f32
    %10 = vector.broadcast %cst_8 : f32 to vector<48x1xf32>
    %11 = arith.divf %9, %10 : vector<48x1xf32>
    %12 = vector.broadcast %11 : vector<48x1xf32> to vector<48x64xf32>
    %13 = arith.subf %3, %12 : vector<48x64xf32>
    %14 = arith.mulf %13, %13 : vector<48x64xf32>
    %cst_9 = arith.constant dense<0.000000e+00> : vector<48xf32>
    %15 = vector.multi_reduction <add>, %14, %cst_9 [1] : vector<48x64xf32> to vector<48xf32>
    %16 = vector.shape_cast %15 : vector<48xf32> to vector<48x1xf32>
    %cst_10 = arith.constant 6.400000e+01 : f32
    %17 = vector.broadcast %cst_10 : f32 to vector<48x1xf32>
    %18 = arith.divf %16, %17 : vector<48x1xf32>
    %cst_11 = arith.constant 9.99999974E-6 : f32
    %19 = vector.broadcast %cst_11 : f32 to vector<48x1xf32>
    %20 = arith.addf %18, %19 : vector<48x1xf32>
    %21 = math.rsqrt %20 : vector<48x1xf32>
    %22 = vector.broadcast %21 : vector<48x1xf32> to vector<48x64xf32>
    %23 = arith.mulf %13, %22 : vector<48x64xf32>
    %24 = vector.broadcast %5 : vector<1x64xf32> to vector<48x64xf32>
    %25 = arith.mulf %23, %24 : vector<48x64xf32>
    %26 = vector.broadcast %7 : vector<1x64xf32> to vector<48x64xf32>
    %27 = arith.addf %25, %26 : vector<48x64xf32>
    %c0_12 = arith.constant 0 : index
    %c0_13 = arith.constant 0 : index
    %c0_14 = arith.constant 0 : index
    %28 = vector.load %arg10[%c0_12, %c0_13, %c0_14] : memref<1x64x192xf32, #tpu.memory_space<vmem>>, vector<1x64x192xf32>
    %29 = vector.shape_cast %28 : vector<1x64x192xf32> to vector<64x192xf32>
    %cst_15 = arith.constant dense<0.000000e+00> : vector<48x192xf32>
    %30 = tpu.matmul %27, %29, %cst_15 {dimension_numbers = #tpu.dot_dimension_numbers<[1], [0], [0], [1], [0, 0, 1, 1], [], []>} : vector<48x64xf32>, vector<64x192xf32>, vector<48x192xf32> -> vector<48x192xf32>
    %c0_16 = arith.constant 0 : index
    %c0_17 = arith.constant 0 : index
    %c0_18 = arith.constant 0 : index
    %31 = vector.load %arg11[%c0_16, %c0_17, %c0_18] : memref<1x1x192xf32, #tpu.memory_space<vmem>>, vector<1x1x192xf32>
    %32 = vector.shape_cast %31 : vector<1x1x192xf32> to vector<1x192xf32>
    %33 = vector.broadcast %32 : vector<1x192xf32> to vector<48x192xf32>
    %34 = arith.addf %30, %33 : vector<48x192xf32>
    %35 = vector.extract_strided_slice %34 {offsets = [0, 0], sizes = [48, 64], strides = [1, 1]} : vector<48x192xf32> to vector<48x64xf32>
    %36 = vector.shape_cast %35 : vector<48x64xf32> to vector<2x24x64xf32>
    %37 = vector.extract_strided_slice %34 {offsets = [0, 64], sizes = [48, 64], strides = [1, 1]} : vector<48x192xf32> to vector<48x64xf32>
    %38 = vector.shape_cast %37 : vector<48x64xf32> to vector<2x24x64xf32>
    %39 = vector.extract_strided_slice %34 {offsets = [0, 128], sizes = [48, 64], strides = [1, 1]} : vector<48x192xf32> to vector<48x64xf32>
    %40 = vector.shape_cast %39 : vector<48x64xf32> to vector<2x24x64xf32>
    %c0_19 = arith.constant 0 : index
    %c0_20 = arith.constant 0 : index
    %41 = vector.load %arg5[%c0_19, %c0_20] : memref<1x24xf32, #tpu.memory_space<vmem>>, vector<1x24xf32>
    %42 = vector.shape_cast %41 : vector<1x24xf32> to vector<1x1x24xf32>
    %43 = vector.extract_strided_slice %36 {offsets = [0, 0, 0], sizes = [2, 24, 16], strides = [1, 1, 1]} : vector<2x24x64xf32> to vector<2x24x16xf32>
    %44 = vector.extract_strided_slice %38 {offsets = [0, 0, 0], sizes = [2, 24, 16], strides = [1, 1, 1]} : vector<2x24x64xf32> to vector<2x24x16xf32>
    "tpu.trace_start"() <{level = 10 : i32, message = "bqd,bkd->bqk"}> : () -> ()
    %cst_21 = arith.constant dense<0.000000e+00> : vector<2x24x24xf32>
    %45 = tpu.matmul %43, %44, %cst_21 {dimension_numbers = #tpu.dot_dimension_numbers<[2], [2], [1], [1], [0, 0, 0, 1, 1, 1], [0], [0]>} : vector<2x24x16xf32>, vector<2x24x16xf32>, vector<2x24x24xf32> -> vector<2x24x24xf32>
    "tpu.trace_stop"() : () -> ()
    %cst_22 = arith.constant 2.500000e-01 : f32
    %46 = vector.broadcast %cst_22 : f32 to vector<2x24x24xf32>
    %47 = arith.mulf %45, %46 : vector<2x24x24xf32>
    %48 = vector.broadcast %42 : vector<1x1x24xf32> to vector<2x24x24xf32>
    %49 = arith.addf %47, %48 : vector<2x24x24xf32>
    %cst_23 = arith.constant dense<0xFF800000> : vector<2x24xf32>
    %50 = vector.multi_reduction <maximumf>, %49, %cst_23 [2] : vector<2x24x24xf32> to vector<2x24xf32>
    %51 = vector.shape_cast %50 : vector<2x24xf32> to vector<2x24x1xf32>
    %52 = vector.broadcast %51 : vector<2x24x1xf32> to vector<2x24x24xf32>
    %53 = arith.subf %49, %52 : vector<2x24x24xf32>
    %54 = math.exp %53 : vector<2x24x24xf32>
    %cst_24 = arith.constant dense<0.000000e+00> : vector<2x24xf32>
    %55 = vector.multi_reduction <add>, %54, %cst_24 [2] : vector<2x24x24xf32> to vector<2x24xf32>
    %56 = vector.shape_cast %55 : vector<2x24xf32> to vector<2x24x1xf32>
    %57 = tpu.reciprocal %56 {approx = true} : vector<2x24x1xf32> -> vector<2x24x1xf32>
    %58 = vector.broadcast %57 : vector<2x24x1xf32> to vector<2x24x24xf32>
    %59 = arith.mulf %54, %58 : vector<2x24x24xf32>
    %60 = vector.extract_strided_slice %40 {offsets = [0, 0, 0], sizes = [2, 24, 16], strides = [1, 1, 1]} : vector<2x24x64xf32> to vector<2x24x16xf32>
    "tpu.trace_start"() <{level = 10 : i32, message = "bqk,bkd->bqd"}> : () -> ()
    %cst_25 = arith.constant dense<0.000000e+00> : vector<2x24x16xf32>
    %61 = tpu.matmul %59, %60, %cst_25 {dimension_numbers = #tpu.dot_dimension_numbers<[2], [1], [1], [2], [0, 0, 0, 1, 1, 2], [0], [0]>} : vector<2x24x24xf32>, vector<2x24x16xf32>, vector<2x24x16xf32> -> vector<2x24x16xf32>
    "tpu.trace_stop"() : () -> ()
    %62 = vector.extract_strided_slice %36 {offsets = [0, 0, 16], sizes = [2, 24, 16], strides = [1, 1, 1]} : vector<2x24x64xf32> to vector<2x24x16xf32>
    %63 = vector.extract_strided_slice %38 {offsets = [0, 0, 16], sizes = [2, 24, 16], strides = [1, 1, 1]} : vector<2x24x64xf32> to vector<2x24x16xf32>
    "tpu.trace_start"() <{level = 10 : i32, message = "bqd,bkd->bqk"}> : () -> ()
    %cst_26 = arith.constant dense<0.000000e+00> : vector<2x24x24xf32>
    %64 = tpu.matmul %62, %63, %cst_26 {dimension_numbers = #tpu.dot_dimension_numbers<[2], [2], [1], [1], [0, 0, 0, 1, 1, 1], [0], [0]>} : vector<2x24x16xf32>, vector<2x24x16xf32>, vector<2x24x24xf32> -> vector<2x24x24xf32>
    "tpu.trace_stop"() : () -> ()
    %cst_27 = arith.constant 2.500000e-01 : f32
    %65 = vector.broadcast %cst_27 : f32 to vector<2x24x24xf32>
    %66 = arith.mulf %64, %65 : vector<2x24x24xf32>
    %67 = vector.broadcast %42 : vector<1x1x24xf32> to vector<2x24x24xf32>
    %68 = arith.addf %66, %67 : vector<2x24x24xf32>
    %cst_28 = arith.constant dense<0xFF800000> : vector<2x24xf32>
    %69 = vector.multi_reduction <maximumf>, %68, %cst_28 [2] : vector<2x24x24xf32> to vector<2x24xf32>
    %70 = vector.shape_cast %69 : vector<2x24xf32> to vector<2x24x1xf32>
    %71 = vector.broadcast %70 : vector<2x24x1xf32> to vector<2x24x24xf32>
    %72 = arith.subf %68, %71 : vector<2x24x24xf32>
    %73 = math.exp %72 : vector<2x24x24xf32>
    %cst_29 = arith.constant dense<0.000000e+00> : vector<2x24xf32>
    %74 = vector.multi_reduction <add>, %73, %cst_29 [2] : vector<2x24x24xf32> to vector<2x24xf32>
    %75 = vector.shape_cast %74 : vector<2x24xf32> to vector<2x24x1xf32>
    %76 = tpu.reciprocal %75 {approx = true} : vector<2x24x1xf32> -> vector<2x24x1xf32>
    %77 = vector.broadcast %76 : vector<2x24x1xf32> to vector<2x24x24xf32>
    %78 = arith.mulf %73, %77 : vector<2x24x24xf32>
    %79 = vector.extract_strided_slice %40 {offsets = [0, 0, 16], sizes = [2, 24, 16], strides = [1, 1, 1]} : vector<2x24x64xf32> to vector<2x24x16xf32>
    "tpu.trace_start"() <{level = 10 : i32, message = "bqk,bkd->bqd"}> : () -> ()
    %cst_30 = arith.constant dense<0.000000e+00> : vector<2x24x16xf32>
    %80 = tpu.matmul %78, %79, %cst_30 {dimension_numbers = #tpu.dot_dimension_numbers<[2], [1], [1], [2], [0, 0, 0, 1, 1, 2], [0], [0]>} : vector<2x24x24xf32>, vector<2x24x16xf32>, vector<2x24x16xf32> -> vector<2x24x16xf32>
    "tpu.trace_stop"() : () -> ()
    %81 = vector.extract_strided_slice %36 {offsets = [0, 0, 32], sizes = [2, 24, 16], strides = [1, 1, 1]} : vector<2x24x64xf32> to vector<2x24x16xf32>
    %82 = vector.extract_strided_slice %38 {offsets = [0, 0, 32], sizes = [2, 24, 16], strides = [1, 1, 1]} : vector<2x24x64xf32> to vector<2x24x16xf32>
    "tpu.trace_start"() <{level = 10 : i32, message = "bqd,bkd->bqk"}> : () -> ()
    %cst_31 = arith.constant dense<0.000000e+00> : vector<2x24x24xf32>
    %83 = tpu.matmul %81, %82, %cst_31 {dimension_numbers = #tpu.dot_dimension_numbers<[2], [2], [1], [1], [0, 0, 0, 1, 1, 1], [0], [0]>} : vector<2x24x16xf32>, vector<2x24x16xf32>, vector<2x24x24xf32> -> vector<2x24x24xf32>
    "tpu.trace_stop"() : () -> ()
    %cst_32 = arith.constant 2.500000e-01 : f32
    %84 = vector.broadcast %cst_32 : f32 to vector<2x24x24xf32>
    %85 = arith.mulf %83, %84 : vector<2x24x24xf32>
    %86 = vector.broadcast %42 : vector<1x1x24xf32> to vector<2x24x24xf32>
    %87 = arith.addf %85, %86 : vector<2x24x24xf32>
    %cst_33 = arith.constant dense<0xFF800000> : vector<2x24xf32>
    %88 = vector.multi_reduction <maximumf>, %87, %cst_33 [2] : vector<2x24x24xf32> to vector<2x24xf32>
    %89 = vector.shape_cast %88 : vector<2x24xf32> to vector<2x24x1xf32>
    %90 = vector.broadcast %89 : vector<2x24x1xf32> to vector<2x24x24xf32>
    %91 = arith.subf %87, %90 : vector<2x24x24xf32>
    %92 = math.exp %91 : vector<2x24x24xf32>
    %cst_34 = arith.constant dense<0.000000e+00> : vector<2x24xf32>
    %93 = vector.multi_reduction <add>, %92, %cst_34 [2] : vector<2x24x24xf32> to vector<2x24xf32>
    %94 = vector.shape_cast %93 : vector<2x24xf32> to vector<2x24x1xf32>
    %95 = tpu.reciprocal %94 {approx = true} : vector<2x24x1xf32> -> vector<2x24x1xf32>
    %96 = vector.broadcast %95 : vector<2x24x1xf32> to vector<2x24x24xf32>
    %97 = arith.mulf %92, %96 : vector<2x24x24xf32>
    %98 = vector.extract_strided_slice %40 {offsets = [0, 0, 32], sizes = [2, 24, 16], strides = [1, 1, 1]} : vector<2x24x64xf32> to vector<2x24x16xf32>
    "tpu.trace_start"() <{level = 10 : i32, message = "bqk,bkd->bqd"}> : () -> ()
    %cst_35 = arith.constant dense<0.000000e+00> : vector<2x24x16xf32>
    %99 = tpu.matmul %97, %98, %cst_35 {dimension_numbers = #tpu.dot_dimension_numbers<[2], [1], [1], [2], [0, 0, 0, 1, 1, 2], [0], [0]>} : vector<2x24x24xf32>, vector<2x24x16xf32>, vector<2x24x16xf32> -> vector<2x24x16xf32>
    "tpu.trace_stop"() : () -> ()
    %100 = vector.extract_strided_slice %36 {offsets = [0, 0, 48], sizes = [2, 24, 16], strides = [1, 1, 1]} : vector<2x24x64xf32> to vector<2x24x16xf32>
    %101 = vector.extract_strided_slice %38 {offsets = [0, 0, 48], sizes = [2, 24, 16], strides = [1, 1, 1]} : vector<2x24x64xf32> to vector<2x24x16xf32>
    "tpu.trace_start"() <{level = 10 : i32, message = "bqd,bkd->bqk"}> : () -> ()
    %cst_36 = arith.constant dense<0.000000e+00> : vector<2x24x24xf32>
    %102 = tpu.matmul %100, %101, %cst_36 {dimension_numbers = #tpu.dot_dimension_numbers<[2], [2], [1], [1], [0, 0, 0, 1, 1, 1], [0], [0]>} : vector<2x24x16xf32>, vector<2x24x16xf32>, vector<2x24x24xf32> -> vector<2x24x24xf32>
    "tpu.trace_stop"() : () -> ()
    %cst_37 = arith.constant 2.500000e-01 : f32
    %103 = vector.broadcast %cst_37 : f32 to vector<2x24x24xf32>
    %104 = arith.mulf %102, %103 : vector<2x24x24xf32>
    %105 = vector.broadcast %42 : vector<1x1x24xf32> to vector<2x24x24xf32>
    %106 = arith.addf %104, %105 : vector<2x24x24xf32>
    %cst_38 = arith.constant dense<0xFF800000> : vector<2x24xf32>
    %107 = vector.multi_reduction <maximumf>, %106, %cst_38 [2] : vector<2x24x24xf32> to vector<2x24xf32>
    %108 = vector.shape_cast %107 : vector<2x24xf32> to vector<2x24x1xf32>
    %109 = vector.broadcast %108 : vector<2x24x1xf32> to vector<2x24x24xf32>
    %110 = arith.subf %106, %109 : vector<2x24x24xf32>
    %111 = math.exp %110 : vector<2x24x24xf32>
    %cst_39 = arith.constant dense<0.000000e+00> : vector<2x24xf32>
    %112 = vector.multi_reduction <add>, %111, %cst_39 [2] : vector<2x24x24xf32> to vector<2x24xf32>
    %113 = vector.shape_cast %112 : vector<2x24xf32> to vector<2x24x1xf32>
    %114 = tpu.reciprocal %113 {approx = true} : vector<2x24x1xf32> -> vector<2x24x1xf32>
    %115 = vector.broadcast %114 : vector<2x24x1xf32> to vector<2x24x24xf32>
    %116 = arith.mulf %111, %115 : vector<2x24x24xf32>
    %117 = vector.extract_strided_slice %40 {offsets = [0, 0, 48], sizes = [2, 24, 16], strides = [1, 1, 1]} : vector<2x24x64xf32> to vector<2x24x16xf32>
    "tpu.trace_start"() <{level = 10 : i32, message = "bqk,bkd->bqd"}> : () -> ()
    %cst_40 = arith.constant dense<0.000000e+00> : vector<2x24x16xf32>
    %118 = tpu.matmul %116, %117, %cst_40 {dimension_numbers = #tpu.dot_dimension_numbers<[2], [1], [1], [2], [0, 0, 0, 1, 1, 2], [0], [0]>} : vector<2x24x24xf32>, vector<2x24x16xf32>, vector<2x24x16xf32> -> vector<2x24x16xf32>
    "tpu.trace_stop"() : () -> ()
    %119 = tpu.concatenate %61, %80, %99, %118 in 2 : vector<2x24x16xf32>, vector<2x24x16xf32>, vector<2x24x16xf32>, vector<2x24x16xf32> -> vector<2x24x64xf32>
    %120 = vector.shape_cast %119 : vector<2x24x64xf32> to vector<48x64xf32>
    %c0_41 = arith.constant 0 : index
    %c0_42 = arith.constant 0 : index
    %c0_43 = arith.constant 0 : index
    %121 = vector.load %arg12[%c0_41, %c0_42, %c0_43] : memref<1x64x64xf32, #tpu.memory_space<vmem>>, vector<1x64x64xf32>
    %122 = vector.shape_cast %121 : vector<1x64x64xf32> to vector<64x64xf32>
    %cst_44 = arith.constant dense<0.000000e+00> : vector<48x64xf32>
    %123 = tpu.matmul %120, %122, %cst_44 {dimension_numbers = #tpu.dot_dimension_numbers<[1], [0], [0], [1], [0, 0, 1, 1], [], []>} : vector<48x64xf32>, vector<64x64xf32>, vector<48x64xf32> -> vector<48x64xf32>
    %124 = arith.addf %3, %123 : vector<48x64xf32>
    %c0_45 = arith.constant 0 : index
    %c0_46 = arith.constant 0 : index
    %c0_47 = arith.constant 0 : index
    %125 = vector.load %arg13[%c0_45, %c0_46, %c0_47] : memref<1x1x64xf32, #tpu.memory_space<vmem>>, vector<1x1x64xf32>
    %126 = vector.shape_cast %125 : vector<1x1x64xf32> to vector<1x64xf32>
    %127 = vector.broadcast %126 : vector<1x64xf32> to vector<48x64xf32>
    %128 = arith.addf %124, %127 : vector<48x64xf32>
    %c0_48 = arith.constant 0 : index
    %c0_49 = arith.constant 0 : index
    %c0_50 = arith.constant 0 : index
    %129 = vector.load %arg14[%c0_48, %c0_49, %c0_50] : memref<1x1x64xf32, #tpu.memory_space<vmem>>, vector<1x1x64xf32>
    %130 = vector.shape_cast %129 : vector<1x1x64xf32> to vector<1x64xf32>
    %c0_51 = arith.constant 0 : index
    %c0_52 = arith.constant 0 : index
    %c0_53 = arith.constant 0 : index
    %131 = vector.load %arg15[%c0_51, %c0_52, %c0_53] : memref<1x1x64xf32, #tpu.memory_space<vmem>>, vector<1x1x64xf32>
    %132 = vector.shape_cast %131 : vector<1x1x64xf32> to vector<1x64xf32>
    %cst_54 = arith.constant dense<0.000000e+00> : vector<48xf32>
    %133 = vector.multi_reduction <add>, %128, %cst_54 [1] : vector<48x64xf32> to vector<48xf32>
    %134 = vector.shape_cast %133 : vector<48xf32> to vector<48x1xf32>
    %cst_55 = arith.constant 6.400000e+01 : f32
    %135 = vector.broadcast %cst_55 : f32 to vector<48x1xf32>
    %136 = arith.divf %134, %135 : vector<48x1xf32>
    %137 = vector.broadcast %136 : vector<48x1xf32> to vector<48x64xf32>
    %138 = arith.subf %128, %137 : vector<48x64xf32>
    %139 = arith.mulf %138, %138 : vector<48x64xf32>
    %cst_56 = arith.constant dense<0.000000e+00> : vector<48xf32>
    %140 = vector.multi_reduction <add>, %139, %cst_56 [1] : vector<48x64xf32> to vector<48xf32>
    %141 = vector.shape_cast %140 : vector<48xf32> to vector<48x1xf32>
    %cst_57 = arith.constant 6.400000e+01 : f32
    %142 = vector.broadcast %cst_57 : f32 to vector<48x1xf32>
    %143 = arith.divf %141, %142 : vector<48x1xf32>
    %cst_58 = arith.constant 9.99999974E-6 : f32
    %144 = vector.broadcast %cst_58 : f32 to vector<48x1xf32>
    %145 = arith.addf %143, %144 : vector<48x1xf32>
    %146 = math.rsqrt %145 : vector<48x1xf32>
    %147 = vector.broadcast %146 : vector<48x1xf32> to vector<48x64xf32>
    %148 = arith.mulf %138, %147 : vector<48x64xf32>
    %149 = vector.broadcast %130 : vector<1x64xf32> to vector<48x64xf32>
    %150 = arith.mulf %148, %149 : vector<48x64xf32>
    %151 = vector.broadcast %132 : vector<1x64xf32> to vector<48x64xf32>
    %152 = arith.addf %150, %151 : vector<48x64xf32>
    %c0_59 = arith.constant 0 : index
    %c0_60 = arith.constant 0 : index
    %c0_61 = arith.constant 0 : index
    %153 = vector.load %arg16[%c0_59, %c0_60, %c0_61] : memref<1x64x16xf32, #tpu.memory_space<vmem>>, vector<1x64x16xf32>
    %154 = vector.shape_cast %153 : vector<1x64x16xf32> to vector<64x16xf32>
    %cst_62 = arith.constant dense<0.000000e+00> : vector<48x16xf32>
    %155 = tpu.matmul %152, %154, %cst_62 {dimension_numbers = #tpu.dot_dimension_numbers<[1], [0], [0], [1], [0, 0, 1, 1], [], []>} : vector<48x64xf32>, vector<64x16xf32>, vector<48x16xf32> -> vector<48x16xf32>
    %c0_63 = arith.constant 0 : index
    %c0_64 = arith.constant 0 : index
    %c0_65 = arith.constant 0 : index
    %156 = vector.load %arg17[%c0_63, %c0_64, %c0_65] : memref<1x1x16xf32, #tpu.memory_space<vmem>>, vector<1x1x16xf32>
    %157 = vector.shape_cast %156 : vector<1x1x16xf32> to vector<1x16xf32>
    %158 = vector.broadcast %157 : vector<1x16xf32> to vector<48x16xf32>
    %159 = arith.addf %155, %158 : vector<48x16xf32>
    %cst_66 = arith.constant 0.000000e+00 : f32
    %160 = vector.broadcast %cst_66 : f32 to vector<48x16xf32>
    %161 = arith.maximumf %159, %160 : vector<48x16xf32>
    %c0_67 = arith.constant 0 : index
    %c0_68 = arith.constant 0 : index
    %c0_69 = arith.constant 0 : index
    %162 = vector.load %arg18[%c0_67, %c0_68, %c0_69] : memref<1x16x64xf32, #tpu.memory_space<vmem>>, vector<1x16x64xf32>
    %163 = vector.shape_cast %162 : vector<1x16x64xf32> to vector<16x64xf32>
    %cst_70 = arith.constant dense<0.000000e+00> : vector<48x64xf32>
    %164 = tpu.matmul %161, %163, %cst_70 {dimension_numbers = #tpu.dot_dimension_numbers<[1], [0], [0], [1], [0, 0, 1, 1], [], []>} : vector<48x16xf32>, vector<16x64xf32>, vector<48x64xf32> -> vector<48x64xf32>
    %c0_71 = arith.constant 0 : index
    %c0_72 = arith.constant 0 : index
    %c0_73 = arith.constant 0 : index
    %165 = vector.load %arg19[%c0_71, %c0_72, %c0_73] : memref<1x1x64xf32, #tpu.memory_space<vmem>>, vector<1x1x64xf32>
    %166 = vector.shape_cast %165 : vector<1x1x64xf32> to vector<1x64xf32>
    %167 = vector.broadcast %166 : vector<1x64xf32> to vector<48x64xf32>
    %168 = arith.addf %164, %167 : vector<48x64xf32>
    %cst_74 = arith.constant 1.000000e-01 : f32
    %169 = vector.broadcast %cst_74 : f32 to vector<48x64xf32>
    %170 = arith.mulf %168, %169 : vector<48x64xf32>
    %c0_75 = arith.constant 0 : index
    %c0_76 = arith.constant 0 : index
    %c0_77 = arith.constant 0 : index
    %171 = vector.load %arg20[%c0_75, %c0_76, %c0_77] : memref<1x1x64xf32, #tpu.memory_space<vmem>>, vector<1x1x64xf32>
    %172 = vector.shape_cast %171 : vector<1x1x64xf32> to vector<1x64xf32>
    %c0_78 = arith.constant 0 : index
    %c0_79 = arith.constant 0 : index
    %c0_80 = arith.constant 0 : index
    %173 = vector.load %arg21[%c0_78, %c0_79, %c0_80] : memref<1x1x64xf32, #tpu.memory_space<vmem>>, vector<1x1x64xf32>
    %174 = vector.shape_cast %173 : vector<1x1x64xf32> to vector<1x64xf32>
    %cst_81 = arith.constant dense<0.000000e+00> : vector<48xf32>
    %175 = vector.multi_reduction <add>, %128, %cst_81 [1] : vector<48x64xf32> to vector<48xf32>
    %176 = vector.shape_cast %175 : vector<48xf32> to vector<48x1xf32>
    %cst_82 = arith.constant 6.400000e+01 : f32
    %177 = vector.broadcast %cst_82 : f32 to vector<48x1xf32>
    %178 = arith.divf %176, %177 : vector<48x1xf32>
    %179 = vector.broadcast %178 : vector<48x1xf32> to vector<48x64xf32>
    %180 = arith.subf %128, %179 : vector<48x64xf32>
    %181 = arith.mulf %180, %180 : vector<48x64xf32>
    %cst_83 = arith.constant dense<0.000000e+00> : vector<48xf32>
    %182 = vector.multi_reduction <add>, %181, %cst_83 [1] : vector<48x64xf32> to vector<48xf32>
    %183 = vector.shape_cast %182 : vector<48xf32> to vector<48x1xf32>
    %cst_84 = arith.constant 6.400000e+01 : f32
    %184 = vector.broadcast %cst_84 : f32 to vector<48x1xf32>
    %185 = arith.divf %183, %184 : vector<48x1xf32>
    %cst_85 = arith.constant 9.99999974E-6 : f32
    %186 = vector.broadcast %cst_85 : f32 to vector<48x1xf32>
    %187 = arith.addf %185, %186 : vector<48x1xf32>
    %188 = math.rsqrt %187 : vector<48x1xf32>
    %189 = vector.broadcast %188 : vector<48x1xf32> to vector<48x64xf32>
    %190 = arith.mulf %180, %189 : vector<48x64xf32>
    %191 = vector.broadcast %172 : vector<1x64xf32> to vector<48x64xf32>
    %192 = arith.mulf %190, %191 : vector<48x64xf32>
    %193 = vector.broadcast %174 : vector<1x64xf32> to vector<48x64xf32>
    %194 = arith.addf %192, %193 : vector<48x64xf32>
    %c0_86 = arith.constant 0 : index
    %c0_87 = arith.constant 0 : index
    %c0_88 = arith.constant 0 : index
    %195 = vector.load %arg22[%c0_86, %c0_87, %c0_88] : memref<1x64x256xf32, #tpu.memory_space<vmem>>, vector<1x64x256xf32>
    %196 = vector.shape_cast %195 : vector<1x64x256xf32> to vector<64x256xf32>
    %cst_89 = arith.constant dense<0.000000e+00> : vector<48x256xf32>
    %197 = tpu.matmul %194, %196, %cst_89 {dimension_numbers = #tpu.dot_dimension_numbers<[1], [0], [0], [1], [0, 0, 1, 1], [], []>} : vector<48x64xf32>, vector<64x256xf32>, vector<48x256xf32> -> vector<48x256xf32>
    %c0_90 = arith.constant 0 : index
    %c0_91 = arith.constant 0 : index
    %c0_92 = arith.constant 0 : index
    %198 = vector.load %arg23[%c0_90, %c0_91, %c0_92] : memref<1x1x256xf32, #tpu.memory_space<vmem>>, vector<1x1x256xf32>
    %199 = vector.shape_cast %198 : vector<1x1x256xf32> to vector<1x256xf32>
    %200 = vector.broadcast %199 : vector<1x256xf32> to vector<48x256xf32>
    %201 = arith.addf %197, %200 : vector<48x256xf32>
    %cst_93 = arith.constant -1.702000e+00 : f32
    %202 = vector.broadcast %cst_93 : f32 to vector<48x256xf32>
    %203 = arith.mulf %202, %201 : vector<48x256xf32>
    %204 = math.exp %203 : vector<48x256xf32>
    %cst_94 = arith.constant 1.000000e+00 : f32
    %205 = vector.broadcast %cst_94 : f32 to vector<48x256xf32>
    %206 = arith.addf %205, %204 : vector<48x256xf32>
    %cst_95 = arith.constant 1.000000e+00 : f32
    %207 = vector.broadcast %cst_95 : f32 to vector<48x256xf32>
    %208 = arith.divf %207, %206 : vector<48x256xf32>
    %209 = arith.mulf %201, %208 : vector<48x256xf32>
    %c0_96 = arith.constant 0 : index
    %c0_97 = arith.constant 0 : index
    %c0_98 = arith.constant 0 : index
    %210 = vector.load %arg24[%c0_96, %c0_97, %c0_98] : memref<1x256x64xf32, #tpu.memory_space<vmem>>, vector<1x256x64xf32>
    %211 = vector.shape_cast %210 : vector<1x256x64xf32> to vector<256x64xf32>
    %cst_99 = arith.constant dense<0.000000e+00> : vector<48x64xf32>
    %212 = tpu.matmul %209, %211, %cst_99 {dimension_numbers = #tpu.dot_dimension_numbers<[1], [0], [0], [1], [0, 0, 1, 1], [], []>} : vector<48x256xf32>, vector<256x64xf32>, vector<48x64xf32> -> vector<48x64xf32>
    %c0_100 = arith.constant 0 : index
    %c0_101 = arith.constant 0 : index
    %c0_102 = arith.constant 0 : index
    %213 = vector.load %arg25[%c0_100, %c0_101, %c0_102] : memref<1x1x64xf32, #tpu.memory_space<vmem>>, vector<1x1x64xf32>
    %214 = vector.shape_cast %213 : vector<1x1x64xf32> to vector<1x64xf32>
    %215 = vector.broadcast %214 : vector<1x64xf32> to vector<48x64xf32>
    %216 = arith.addf %212, %215 : vector<48x64xf32>
    %217 = arith.addf %128, %216 : vector<48x64xf32>
    %218 = arith.addf %217, %170 : vector<48x64xf32>
    %c0_103 = arith.constant 0 : index
    %c0_104 = arith.constant 0 : index
    %219 = vector.load %arg36[%c0_103, %c0_104] : memref<48x64xf32, #tpu.memory_space<vmem>>, vector<48x64xf32>
    tpu.vector_store %arg36[%c0_103, %c0_104], %218 {strides = array<i32>} : memref<48x64xf32, #tpu.memory_space<vmem>>, vector<48x64xf32>,
    %c1_i32 = arith.constant 1 : i32
    %220 = arith.cmpi eq, %arg0, %c1_i32 : i32
    %221 = arith.extui %220 : i1 to i32
    %c0_i32_105 = arith.constant 0 : i32
    %222 = arith.cmpi ne, %221, %c0_i32_105 : i32
    scf.if %222 {
      %223 = vector.shape_cast %218 : vector<48x64xf32> to vector<2x24x64xf32>
      %224 = vector.extract_strided_slice %223 {offsets = [0, 0, 0], sizes = [2, 1, 64], strides = [1, 1, 1]} : vector<2x24x64xf32> to vector<2x1x64xf32>
      %225 = vector.shape_cast %224 : vector<2x1x64xf32> to vector<2x64xf32>
      %c0_106 = arith.constant 0 : index
      %c0_107 = arith.constant 0 : index
      %226 = vector.load %arg26[%c0_106, %c0_107] : memref<1x64xf32, #tpu.memory_space<vmem>>, vector<1x64xf32>
      %c0_108 = arith.constant 0 : index
      %c0_109 = arith.constant 0 : index
      %227 = vector.load %arg27[%c0_108, %c0_109] : memref<1x64xf32, #tpu.memory_space<vmem>>, vector<1x64xf32>
      %cst_110 = arith.constant dense<0.000000e+00> : vector<2xf32>
      %228 = vector.multi_reduction <add>, %225, %cst_110 [1] : vector<2x64xf32> to vector<2xf32>
      %229 = vector.shape_cast %228 : vector<2xf32> to vector<2x1xf32>
      %cst_111 = arith.constant 6.400000e+01 : f32
      %230 = vector.broadcast %cst_111 : f32 to vector<2x1xf32>
      %231 = arith.divf %229, %230 : vector<2x1xf32>
      %232 = vector.broadcast %231 : vector<2x1xf32> to vector<2x64xf32>
      %233 = arith.subf %225, %232 : vector<2x64xf32>
      %234 = arith.mulf %233, %233 : vector<2x64xf32>
      %cst_112 = arith.constant dense<0.000000e+00> : vector<2xf32>
      %235 = vector.multi_reduction <add>, %234, %cst_112 [1] : vector<2x64xf32> to vector<2xf32>
      %236 = vector.shape_cast %235 : vector<2xf32> to vector<2x1xf32>
      %cst_113 = arith.constant 6.400000e+01 : f32
      %237 = vector.broadcast %cst_113 : f32 to vector<2x1xf32>
      %238 = arith.divf %236, %237 : vector<2x1xf32>
      %cst_114 = arith.constant 9.99999974E-6 : f32
      %239 = vector.broadcast %cst_114 : f32 to vector<2x1xf32>
      %240 = arith.addf %238, %239 : vector<2x1xf32>
      %241 = math.rsqrt %240 : vector<2x1xf32>
      %242 = vector.broadcast %241 : vector<2x1xf32> to vector<2x64xf32>
      %243 = arith.mulf %233, %242 : vector<2x64xf32>
      %244 = vector.broadcast %226 : vector<1x64xf32> to vector<2x64xf32>
      %245 = arith.mulf %243, %244 : vector<2x64xf32>
      %246 = vector.broadcast %227 : vector<1x64xf32> to vector<2x64xf32>
      %247 = arith.addf %245, %246 : vector<2x64xf32>
      %c0_115 = arith.constant 0 : index
      %c0_116 = arith.constant 0 : index
      %248 = vector.load %arg28[%c0_115, %c0_116] : memref<64x32xf32, #tpu.memory_space<vmem>>, vector<64x32xf32>
      %cst_117 = arith.constant dense<0.000000e+00> : vector<2x32xf32>
      %249 = tpu.matmul %247, %248, %cst_117 {dimension_numbers = #tpu.dot_dimension_numbers<[1], [0], [0], [1], [0, 0, 1, 1], [], []>} : vector<2x64xf32>, vector<64x32xf32>, vector<2x32xf32> -> vector<2x32xf32>
      %c0_118 = arith.constant 0 : index
      %c0_119 = arith.constant 0 : index
      %250 = vector.load %arg29[%c0_118, %c0_119] : memref<32x16xf32, #tpu.memory_space<vmem>>, vector<32x16xf32>
      %cst_120 = arith.constant dense<0.000000e+00> : vector<2x16xf32>
      %251 = tpu.matmul %249, %250, %cst_120 {dimension_numbers = #tpu.dot_dimension_numbers<[1], [0], [0], [1], [0, 0, 1, 1], [], []>} : vector<2x32xf32>, vector<32x16xf32>, vector<2x16xf32> -> vector<2x16xf32>
      %c0_121 = arith.constant 0 : index
      %c0_122 = arith.constant 0 : index
      %252 = vector.load %arg30[%c0_121, %c0_122] : memref<1x16xf32, #tpu.memory_space<vmem>>, vector<1x16xf32>
      %253 = vector.broadcast %252 : vector<1x16xf32> to vector<2x16xf32>
      %254 = arith.addf %251, %253 : vector<2x16xf32>
      %cst_123 = arith.constant 0.000000e+00 : f32
      %255 = vector.broadcast %cst_123 : f32 to vector<2x16xf32>
      %256 = arith.maximumf %254, %255 : vector<2x16xf32>
      %c0_124 = arith.constant 0 : index
      %c0_125 = arith.constant 0 : index
      %257 = vector.load %arg31[%c0_124, %c0_125] : memref<16x5xf32, #tpu.memory_space<vmem>>, vector<16x5xf32>
      %cst_126 = arith.constant dense<0.000000e+00> : vector<2x5xf32>
      %258 = tpu.matmul %256, %257, %cst_126 {dimension_numbers = #tpu.dot_dimension_numbers<[1], [0], [0], [1], [0, 0, 1, 1], [], []>} : vector<2x16xf32>, vector<16x5xf32>, vector<2x5xf32> -> vector<2x5xf32>
      %cst_127 = arith.constant 2.500000e-01 : f32
      %259 = vector.broadcast %cst_127 : f32 to vector<2x5xf32>
      %260 = arith.mulf %258, %259 : vector<2x5xf32>
      %c0_128 = arith.constant 0 : index
      %c0_129 = arith.constant 0 : index
      %261 = vector.load %arg34[%c0_128, %c0_129] : memref<2x5xf32, #tpu.memory_space<vmem>>, vector<2x5xf32>
      tpu.vector_store %arg34[%c0_128, %c0_129], %260 {strides = array<i32>} : memref<2x5xf32, #tpu.memory_space<vmem>>, vector<2x5xf32>,
      %c0_130 = arith.constant 0 : index
      %c0_131 = arith.constant 0 : index
      %262 = vector.load %arg32[%c0_130, %c0_131] : memref<16x5xf32, #tpu.memory_space<vmem>>, vector<16x5xf32>
      %cst_132 = arith.constant dense<0.000000e+00> : vector<2x5xf32>
      %263 = tpu.matmul %256, %262, %cst_132 {dimension_numbers = #tpu.dot_dimension_numbers<[1], [0], [0], [1], [0, 0, 1, 1], [], []>} : vector<2x16xf32>, vector<16x5xf32>, vector<2x5xf32> -> vector<2x5xf32>
      %c0_133 = arith.constant 0 : index
      %c0_134 = arith.constant 0 : index
      %264 = vector.load %arg33[%c0_133, %c0_134] : memref<2x5xf32, #tpu.memory_space<vmem>>, vector<2x5xf32>
      tpu.vector_store %arg33[%c0_133, %c0_134], %263 {strides = array<i32>} : memref<2x5xf32, #tpu.memory_space<vmem>>, vector<2x5xf32>,
      %c0_135 = arith.constant 0 : index
      %c0_136 = arith.constant 0 : index
      %265 = vector.load %arg35[%c0_135, %c0_136] : memref<2x16xf32, #tpu.memory_space<vmem>>, vector<2x16xf32>
      tpu.vector_store %arg35[%c0_135, %c0_136], %256 {strides = array<i32>} : memref<2x16xf32, #tpu.memory_space<vmem>>, vector<2x16xf32>,
    } else {
    }
    return
  }
  func.func @transform_0(%arg0: i32) -> (i32, i32) {
    %c0_i32 = arith.constant 0 : i32
    %c0_i32_0 = arith.constant 0 : i32
    %c0_i32_1 = arith.constant 0 : i32
    return %c0_i32, %c0_i32_0 : i32, i32
  }
  func.func @transform_1(%arg0: i32) -> (i32, i32) {
    %c0_i32 = arith.constant 0 : i32
    %c0_i32_0 = arith.constant 0 : i32
    %c0_i32_1 = arith.constant 0 : i32
    return %c0_i32, %c0_i32_0 : i32, i32
  }
  func.func @transform_2(%arg0: i32) -> (i32, i32) {
    %c0_i32 = arith.constant 0 : i32
    %c0_i32_0 = arith.constant 0 : i32
    %c0_i32_1 = arith.constant 0 : i32
    return %c0_i32, %c0_i32_0 : i32, i32
  }
  func.func @transform_3(%arg0: i32) -> (i32, i32) {
    %c0_i32 = arith.constant 0 : i32
    %c0_i32_0 = arith.constant 0 : i32
    %c0_i32_1 = arith.constant 0 : i32
    return %c0_i32, %c0_i32_0 : i32, i32
  }
  func.func @transform_4(%arg0: i32) -> (i32, i32) {
    %c0_i32 = arith.constant 0 : i32
    %c0_i32_0 = arith.constant 0 : i32
    %c0_i32_1 = arith.constant 0 : i32
    return %c0_i32, %c0_i32_0 : i32, i32
  }
  func.func @transform_5(%arg0: i32) -> (i32, i32) {
    %c0_i32 = arith.constant 0 : i32
    %c0_i32_0 = arith.constant 0 : i32
    %c0_i32_1 = arith.constant 0 : i32
    return %c0_i32, %c0_i32_0 : i32, i32
  }
  func.func @transform_6(%arg0: i32) -> (i32, i32) {
    %c0_i32 = arith.constant 0 : i32
    %c0_i32_0 = arith.constant 0 : i32
    %c0_i32_1 = arith.constant 0 : i32
    return %c0_i32, %c0_i32_0 : i32, i32
  }
  func.func @transform_7(%arg0: i32) -> (i32, i32, i32) {
    %c0_i32 = arith.constant 0 : i32
    %c0_i32_0 = arith.constant 0 : i32
    %c0_i32_1 = arith.constant 0 : i32
    return %arg0, %c0_i32, %c0_i32_0 : i32, i32, i32
  }
  func.func @transform_8(%arg0: i32) -> (i32, i32, i32) {
    %c0_i32 = arith.constant 0 : i32
    %c0_i32_0 = arith.constant 0 : i32
    %c0_i32_1 = arith.constant 0 : i32
    return %arg0, %c0_i32, %c0_i32_0 : i32, i32, i32
  }
  func.func @transform_9(%arg0: i32) -> (i32, i32, i32) {
    %c0_i32 = arith.constant 0 : i32
    %c0_i32_0 = arith.constant 0 : i32
    %c0_i32_1 = arith.constant 0 : i32
    return %arg0, %c0_i32, %c0_i32_0 : i32, i32, i32
  }
  func.func @transform_10(%arg0: i32) -> (i32, i32, i32) {
    %c0_i32 = arith.constant 0 : i32
    %c0_i32_0 = arith.constant 0 : i32
    %c0_i32_1 = arith.constant 0 : i32
    return %arg0, %c0_i32, %c0_i32_0 : i32, i32, i32
  }
  func.func @transform_11(%arg0: i32) -> (i32, i32, i32) {
    %c0_i32 = arith.constant 0 : i32
    %c0_i32_0 = arith.constant 0 : i32
    %c0_i32_1 = arith.constant 0 : i32
    return %arg0, %c0_i32, %c0_i32_0 : i32, i32, i32
  }
  func.func @transform_12(%arg0: i32) -> (i32, i32, i32) {
    %c0_i32 = arith.constant 0 : i32
    %c0_i32_0 = arith.constant 0 : i32
    %c0_i32_1 = arith.constant 0 : i32
    return %arg0, %c0_i32, %c0_i32_0 : i32, i32, i32
  }
  func.func @transform_13(%arg0: i32) -> (i32, i32, i32) {
    %c0_i32 = arith.constant 0 : i32
    %c0_i32_0 = arith.constant 0 : i32
    %c0_i32_1 = arith.constant 0 : i32
    return %arg0, %c0_i32, %c0_i32_0 : i32, i32, i32
  }
  func.func @transform_14(%arg0: i32) -> (i32, i32, i32) {
    %c0_i32 = arith.constant 0 : i32
    %c0_i32_0 = arith.constant 0 : i32
    %c0_i32_1 = arith.constant 0 : i32
    return %arg0, %c0_i32, %c0_i32_0 : i32, i32, i32
  }
  func.func @transform_15(%arg0: i32) -> (i32, i32, i32) {
    %c0_i32 = arith.constant 0 : i32
    %c0_i32_0 = arith.constant 0 : i32
    %c0_i32_1 = arith.constant 0 : i32
    return %arg0, %c0_i32, %c0_i32_0 : i32, i32, i32
  }
  func.func @transform_16(%arg0: i32) -> (i32, i32, i32) {
    %c0_i32 = arith.constant 0 : i32
    %c0_i32_0 = arith.constant 0 : i32
    %c0_i32_1 = arith.constant 0 : i32
    return %arg0, %c0_i32, %c0_i32_0 : i32, i32, i32
  }
  func.func @transform_17(%arg0: i32) -> (i32, i32, i32) {
    %c0_i32 = arith.constant 0 : i32
    %c0_i32_0 = arith.constant 0 : i32
    %c0_i32_1 = arith.constant 0 : i32
    return %arg0, %c0_i32, %c0_i32_0 : i32, i32, i32
  }
  func.func @transform_18(%arg0: i32) -> (i32, i32, i32) {
    %c0_i32 = arith.constant 0 : i32
    %c0_i32_0 = arith.constant 0 : i32
    %c0_i32_1 = arith.constant 0 : i32
    return %arg0, %c0_i32, %c0_i32_0 : i32, i32, i32
  }
  func.func @transform_19(%arg0: i32) -> (i32, i32, i32) {
    %c0_i32 = arith.constant 0 : i32
    %c0_i32_0 = arith.constant 0 : i32
    %c0_i32_1 = arith.constant 0 : i32
    return %arg0, %c0_i32, %c0_i32_0 : i32, i32, i32
  }
  func.func @transform_20(%arg0: i32) -> (i32, i32, i32) {
    %c0_i32 = arith.constant 0 : i32
    %c0_i32_0 = arith.constant 0 : i32
    %c0_i32_1 = arith.constant 0 : i32
    return %arg0, %c0_i32, %c0_i32_0 : i32, i32, i32
  }
  func.func @transform_21(%arg0: i32) -> (i32, i32, i32) {
    %c0_i32 = arith.constant 0 : i32
    %c0_i32_0 = arith.constant 0 : i32
    %c0_i32_1 = arith.constant 0 : i32
    return %arg0, %c0_i32, %c0_i32_0 : i32, i32, i32
  }
  func.func @transform_22(%arg0: i32) -> (i32, i32, i32) {
    %c0_i32 = arith.constant 0 : i32
    %c0_i32_0 = arith.constant 0 : i32
    %c0_i32_1 = arith.constant 0 : i32
    return %arg0, %c0_i32, %c0_i32_0 : i32, i32, i32
  }
  func.func @transform_23(%arg0: i32) -> (i32, i32, i32) {
    %c0_i32 = arith.constant 0 : i32
    %c0_i32_0 = arith.constant 0 : i32
    %c0_i32_1 = arith.constant 0 : i32
    return %arg0, %c0_i32, %c0_i32_0 : i32, i32, i32
  }
  func.func @transform_24(%arg0: i32) -> (i32, i32, i32) {
    %c0_i32 = arith.constant 0 : i32
    %c0_i32_0 = arith.constant 0 : i32
    %c0_i32_1 = arith.constant 0 : i32
    return %arg0, %c0_i32, %c0_i32_0 : i32, i32, i32
  }
  func.func @transform_25(%arg0: i32) -> (i32, i32) {
    %c0_i32 = arith.constant 0 : i32
    %c0_i32_0 = arith.constant 0 : i32
    %c0_i32_1 = arith.constant 0 : i32
    return %c0_i32, %c0_i32_0 : i32, i32
  }
  func.func @transform_26(%arg0: i32) -> (i32, i32) {
    %c0_i32 = arith.constant 0 : i32
    %c0_i32_0 = arith.constant 0 : i32
    %c0_i32_1 = arith.constant 0 : i32
    return %c0_i32, %c0_i32_0 : i32, i32
  }
  func.func @transform_27(%arg0: i32) -> (i32, i32) {
    %c0_i32 = arith.constant 0 : i32
    %c0_i32_0 = arith.constant 0 : i32
    %c0_i32_1 = arith.constant 0 : i32
    return %c0_i32, %c0_i32_0 : i32, i32
  }
  func.func @transform_28(%arg0: i32) -> (i32, i32) {
    %c0_i32 = arith.constant 0 : i32
    %c0_i32_0 = arith.constant 0 : i32
    %c0_i32_1 = arith.constant 0 : i32
    return %c0_i32, %c0_i32_0 : i32, i32
  }
  func.func @transform_29(%arg0: i32) -> (i32, i32) {
    %c0_i32 = arith.constant 0 : i32
    %c0_i32_0 = arith.constant 0 : i32
    %c0_i32_1 = arith.constant 0 : i32
    return %c0_i32, %c0_i32_0 : i32, i32
  }
  func.func @transform_30(%arg0: i32) -> (i32, i32) {
    %c0_i32 = arith.constant 0 : i32
    %c0_i32_0 = arith.constant 0 : i32
    %c0_i32_1 = arith.constant 0 : i32
    return %c0_i32, %c0_i32_0 : i32, i32
  }
  func.func @transform_31(%arg0: i32) -> (i32, i32) {
    %c0_i32 = arith.constant 0 : i32
    %c0_i32_0 = arith.constant 0 : i32
    %c0_i32_1 = arith.constant 0 : i32
    return %c0_i32, %c0_i32_0 : i32, i32
  }
  func.func @transform_32(%arg0: i32) -> (i32, i32) {
    %c0_i32 = arith.constant 0 : i32
    %c0_i32_0 = arith.constant 0 : i32
    %c0_i32_1 = arith.constant 0 : i32
    return %c0_i32, %c0_i32_0 : i32, i32
  }
  func.func @transform_33(%arg0: i32) -> (i32, i32) {
    %c0_i32 = arith.constant 0 : i32
    %c0_i32_0 = arith.constant 0 : i32
    %c0_i32_1 = arith.constant 0 : i32
    return %c0_i32, %c0_i32_0 : i32, i32
  }
  func.func @transform_34(%arg0: i32) -> (i32, i32) {
    %c0_i32 = arith.constant 0 : i32
    %c0_i32_0 = arith.constant 0 : i32
    %c0_i32_1 = arith.constant 0 : i32
    return %c0_i32, %c0_i32_0 : i32, i32
  }
}

</mosaic_0001>

<llo_original>
// kernel: tpu_custom_call.1
$region0: #{tpu_custom_call.1}
  #allocation0 [shape = 'u32[]', space=smem, size = 0x4, offset = 0x4, fixed_abs, tag = 'smem constant byte address 0x4 - core index']
  #allocation1 [shape = 'u32[144,128]{1,0:T(1,128)}', space=vmem, size = 0x12000, scoped, tag = 'internal scratch']
  #allocation2 [shape = 'f32[48,64]{1,0:T(8,128)}', space=vmem, size = 0x6000, scoped, tag = 'scratch operand']
  %s0 = inlined_call_operand.smem [shape: u32[35], index: -1, kind: input, shape index: {}]
  %s1 = sld [smem:[%s0]]
  %s2 = scalar_lea.smem %s0, 1
  %s3 = sld [smem:[%s2]]
  %s4 = scalar_lea.smem %s0, 2
  %s5 = sld [smem:[%s4]]
  %s6 = scalar_lea.smem %s0, 3
  %s7 = sld [smem:[%s6]]
  %s8 = scalar_lea.smem %s0, 4
  %s9 = sld [smem:[%s8]]
  %s10 = scalar_lea.smem %s0, 5
  %s11 = sld [smem:[%s10]]
  %s12 = scalar_lea.smem %s0, 6
  %s13 = sld [smem:[%s12]]
  %s14 = scalar_lea.smem %s0, 7
  %s15 = sld [smem:[%s14]]
  %s16 = scalar_lea.smem %s0, 8
  %s17 = sld [smem:[%s16]]
  %s18 = scalar_lea.smem %s0, 9
  %s19 = sld [smem:[%s18]]
  %s20 = scalar_lea.smem %s0, 10
  %s21 = sld [smem:[%s20]]
  %s22 = scalar_lea.smem %s0, 11
  %s23 = sld [smem:[%s22]]
  %s24 = scalar_lea.smem %s0, 12
  %s25 = sld [smem:[%s24]]
  %s26 = scalar_lea.smem %s0, 13
  %s27 = sld [smem:[%s26]]
  %s28 = scalar_lea.smem %s0, 14
  %s29 = sld [smem:[%s28]]
  %s30 = scalar_lea.smem %s0, 15
  %s31 = sld [smem:[%s30]]
  %s32 = scalar_lea.smem %s0, 16
  %s33 = sld [smem:[%s32]]
  %s34 = scalar_lea.smem %s0, 17
  %s35 = sld [smem:[%s34]]
  %s36 = scalar_lea.smem %s0, 18
  %s37 = sld [smem:[%s36]]
  %s38 = scalar_lea.smem %s0, 19
  %s39 = sld [smem:[%s38]]
  %s40 = scalar_lea.smem %s0, 20
  %s41 = sld [smem:[%s40]]
  %s42 = scalar_lea.smem %s0, 21
  %s43 = sld [smem:[%s42]]
  %s44 = scalar_lea.smem %s0, 22
  %s45 = sld [smem:[%s44]]
  %s46 = scalar_lea.smem %s0, 23
  %s47 = sld [smem:[%s46]]
  %s48 = scalar_lea.smem %s0, 24
  %s49 = sld [smem:[%s48]]
  %s50 = scalar_lea.smem %s0, 25
  %s51 = sld [smem:[%s50]]
  %s52 = scalar_lea.smem %s0, 26
  %s53 = sld [smem:[%s52]]
  %s54 = scalar_lea.smem %s0, 27
  %s55 = sld [smem:[%s54]]
  %s56 = scalar_lea.smem %s0, 28
  %s57 = sld [smem:[%s56]]
  %s58 = scalar_lea.smem %s0, 29
  %s59 = sld [smem:[%s58]]
  %s60 = scalar_lea.smem %s0, 30
  %s61 = sld [smem:[%s60]]
  %s62 = scalar_lea.smem %s0, 31
  %s63 = sld [smem:[%s62]]
  %s64 = scalar_lea.smem %s0, 32
  %s65 = sld [smem:[%s64]]
  %s66 = scalar_lea.smem %s0, 33
  %s67 = sld [smem:[%s66]]
  %s68 = scalar_lea.smem %s0, 34
  %s69 = sld [smem:[%s68]]
  %70 = xla_tuple %s65, %s67, %s69
  %s71 = sld [smem:[#allocation0]]
  $region185: #{tpu_custom_call.1} parent=0
    _
  %s73 = ssub.s32 1, %s71
  %s74 = scalar_select 0, %s73, %s71
  $region1: #{tpu_custom_call.1} parent=0
    #allocation3 [shape = 'u8[1024]{0}', space=vmem, size = 0x400, scoped, tag = 'output window, operand 0, single buffered']
    #allocation4 [shape = 's32[2]{0}', space=sflag, size = 0x8, scoped, tag = 'scoped memory for tpu_custom_call.1']
    #allocation5 [shape = 'u8[1024]{0}', space=vmem, size = 0x400, scoped, tag = 'output window, operand 1, single buffered']
    #allocation6 [shape = 's32[1]{0}', space=sflag, size = 0x4, scoped, tag = 'scoped memory for tpu_custom_call.1']
    #allocation7 [shape = 'u8[1024]{0}', space=vmem, size = 0x400, scoped, tag = 'output window, operand 2, single buffered']
    %75 = vsyncpa [#allocation4], 0
    %76 = vsyncpa [#allocation6], 0
    loop: start=0, step=1, limit=4
    $region2: #{tpu_custom_call.1} parent=1 // loop_pre_header
      _
    $region3: #{tpu_custom_call.1} parent=1 // loop_header
      %s78 = sphi 0, %s82
      %p79 = scmp.ge.s32.totalorder %s78, 4
      %s86 = sphi 0, %s86
      %s88 = sphi 0, %s86
      %s89 = sphi 0, %s88
      %s103 = sphi 0, %s89
      %s107 = sphi 0, %s107
      %s109 = sphi 0, %s107
      %s110 = sphi 0, %s109
      %s124 = sphi 0, %s110
      %s128 = sphi 0, %s128
      %s130 = sphi 0, %s128
      %s131 = sphi 0, %s130
      %s145 = sphi 0, %s131
      %s149 = sphi 0, %s149
      %s151 = sphi 0, %s149
      %s152 = sphi 0, %s151
      %s166 = sphi 0, %s152
      %s170 = sphi 0, %s170
      %s172 = sphi 0, %s170
      %s173 = sphi 0, %s172
      %s187 = sphi 0, %s173
      %s191 = sphi 0, %s191
      %s193 = sphi 0, %s191
      %s194 = sphi 0, %s193
      %s208 = sphi 0, %s194
      %s212 = sphi 0, %s212
      %s214 = sphi 0, %s212
      %s215 = sphi 0, %s214
      %s229 = sphi 0, %s215
      %s235 = sphi 0, %s237
      %s238 = sphi 0, %s235
      %s239 = sphi 0, %s238
      %s255 = sphi 0, %s239
      %s261 = sphi 0, %s263
      %s264 = sphi 0, %s261
      %s265 = sphi 0, %s264
      %s281 = sphi 0, %s265
      %s287 = sphi 0, %s289
      %s290 = sphi 0, %s287
      %s291 = sphi 0, %s290
      %s307 = sphi 0, %s291
      %s313 = sphi 0, %s315
      %s316 = sphi 0, %s313
      %s317 = sphi 0, %s316
      %s333 = sphi 0, %s317
      %s339 = sphi 0, %s341
      %s342 = sphi 0, %s339
      %s343 = sphi 0, %s342
      %s359 = sphi 0, %s343
      %s365 = sphi 0, %s367
      %s368 = sphi 0, %s365
      %s369 = sphi 0, %s368
      %s385 = sphi 0, %s369
      %s391 = sphi 0, %s393
      %s394 = sphi 0, %s391
      %s395 = sphi 0, %s394
      %s411 = sphi 0, %s395
      %s417 = sphi 0, %s419
      %s420 = sphi 0, %s417
      %s421 = sphi 0, %s420
      %s437 = sphi 0, %s421
      %s443 = sphi 0, %s445
      %s446 = sphi 0, %s443
      %s447 = sphi 0, %s446
      %s463 = sphi 0, %s447
      %s469 = sphi 0, %s471
      %s472 = sphi 0, %s469
      %s473 = sphi 0, %s472
      %s489 = sphi 0, %s473
      %s495 = sphi 0, %s497
      %s498 = sphi 0, %s495
      %s499 = sphi 0, %s498
      %s515 = sphi 0, %s499
      %s521 = sphi 0, %s523
      %s524 = sphi 0, %s521
      %s525 = sphi 0, %s524
      %s541 = sphi 0, %s525
      %s547 = sphi 0, %s549
      %s550 = sphi 0, %s547
      %s551 = sphi 0, %s550
      %s567 = sphi 0, %s551
      %s573 = sphi 0, %s575
      %s576 = sphi 0, %s573
      %s577 = sphi 0, %s576
      %s593 = sphi 0, %s577
      %s599 = sphi 0, %s601
      %s602 = sphi 0, %s599
      %s603 = sphi 0, %s602
      %s619 = sphi 0, %s603
      %s625 = sphi 0, %s627
      %s628 = sphi 0, %s625
      %s629 = sphi 0, %s628
      %s645 = sphi 0, %s629
      %s651 = sphi 0, %s653
      %s654 = sphi 0, %s651
      %s655 = sphi 0, %s654
      %s671 = sphi 0, %s655
      %s677 = sphi 0, %s679
      %s680 = sphi 0, %s677
      %s681 = sphi 0, %s680
      %s697 = sphi 0, %s681
      %s701 = sphi 0, %s701
      %s703 = sphi 0, %s701
      %s704 = sphi 0, %s703
      %s718 = sphi 0, %s704
      %s722 = sphi 0, %s722
      %s724 = sphi 0, %s722
      %s725 = sphi 0, %s724
      %s739 = sphi 0, %s725
      %s743 = sphi 0, %s743
      %s745 = sphi 0, %s743
      %s746 = sphi 0, %s745
      %s760 = sphi 0, %s746
      %s764 = sphi 0, %s764
      %s766 = sphi 0, %s764
      %s767 = sphi 0, %s766
      %s781 = sphi 0, %s767
      %s785 = sphi 0, %s785
      %s787 = sphi 0, %s785
      %s788 = sphi 0, %s787
      %s802 = sphi 0, %s788
      %s806 = sphi 0, %s806
      %s808 = sphi 0, %s806
      %s809 = sphi 0, %s808
      %s823 = sphi 0, %s809
      %s827 = sphi 0, %s827
      %s829 = sphi 0, %s827
      %s830 = sphi 0, %s829
      %s844 = sphi 0, %s830
      %s848 = sphi 0, %s848
      %s850 = sphi 0, %s848
      %s851 = sphi 0, %s850
      %s865 = sphi 0, %s851
      %s869 = sphi 0, %s869
      %s871 = sphi 0, %s869
      %s872 = sphi 0, %s871
      %s886 = sphi 0, %s872
      %s890 = sphi 0, %s890
      %s892 = sphi 0, %s890
      %s893 = sphi 0, %s892
      %s907 = sphi 0, %s893
    $region4: #{tpu_custom_call.1} parent=1 // loop_header_branch
      %81 = sbr.rel (%p79) target = $region8
    $region5: #{tpu_custom_call.1} parent=1 // loop_body
      %s83 = ssub.s32 %s78, 1
      %s84 = ssub.s32 %s78, 2
      %s85 = sadd.s32 %s78, 1
      %s87 = sadd.s32 %s86, 1
      %p90 = scmp.eq.s32.totalorder %s78, 1
      %p91 = scmp.ne.s32.totalorder %s86, %s88
      %p92 = scmp.eq.s32.totalorder %s78, 0
      %p93 = por %p91, %p92
      %p94 = scmp.ne.s32.totalorder %s86, %s88
      %p95 = scmp.eq.s32.totalorder %s83, 1
      %p96 = por %p94, %p95
      %p97 = scmp.ne.s32.totalorder %s88, %s89
      %p98 = scmp.eq.s32.totalorder %s83, 0
      %p99 = por %p97, %p98
      %p100 = scmp.ne.s32.totalorder %s88, %s89
      %p101 = scmp.eq.s32.totalorder %s84, 1
      %p102 = por %p100, %p101
      %p104 = scmp.ne.s32.totalorder %s89, %s103
      %p105 = scmp.eq.s32.totalorder %s84, 0
      %p106 = por %p104, %p105
      %s108 = sadd.s32 %s107, 1
      %p111 = scmp.eq.s32.totalorder %s78, 1
      %p112 = scmp.ne.s32.totalorder %s107, %s109
      %p113 = scmp.eq.s32.totalorder %s78, 0
      %p114 = por %p112, %p113
      %p115 = scmp.ne.s32.totalorder %s107, %s109
      %p116 = scmp.eq.s32.totalorder %s83, 1
      %p117 = por %p115, %p116
      %p118 = scmp.ne.s32.totalorder %s109, %s110
      %p119 = scmp.eq.s32.totalorder %s83, 0
      %p120 = por %p118, %p119
      %p121 = scmp.ne.s32.totalorder %s109, %s110
      %p122 = scmp.eq.s32.totalorder %s84, 1
      %p123 = por %p121, %p122
      %p125 = scmp.ne.s32.totalorder %s110, %s124
      %p126 = scmp.eq.s32.totalorder %s84, 0
      %p127 = por %p125, %p126
      %s129 = sadd.s32 %s128, 1
      %p132 = scmp.eq.s32.totalorder %s78, 1
      %p133 = scmp.ne.s32.totalorder %s128, %s130
      %p134 = scmp.eq.s32.totalorder %s78, 0
      %p135 = por %p133, %p134
      %p136 = scmp.ne.s32.totalorder %s128, %s130
      %p137 = scmp.eq.s32.totalorder %s83, 1
      %p138 = por %p136, %p137
      %p139 = scmp.ne.s32.totalorder %s130, %s131
      %p140 = scmp.eq.s32.totalorder %s83, 0
      %p141 = por %p139, %p140
      %p142 = scmp.ne.s32.totalorder %s130, %s131
      %p143 = scmp.eq.s32.totalorder %s84, 1
      %p144 = por %p142, %p143
      %p146 = scmp.ne.s32.totalorder %s131, %s145
      %p147 = scmp.eq.s32.totalorder %s84, 0
      %p148 = por %p146, %p147
      %s150 = sadd.s32 %s149, 1
      %p153 = scmp.eq.s32.totalorder %s78, 1
      %p154 = scmp.ne.s32.totalorder %s149, %s151
      %p155 = scmp.eq.s32.totalorder %s78, 0
      %p156 = por %p154, %p155
      %p157 = scmp.ne.s32.totalorder %s149, %s151
      %p158 = scmp.eq.s32.totalorder %s83, 1
      %p159 = por %p157, %p158
      %p160 = scmp.ne.s32.totalorder %s151, %s152
      %p161 = scmp.eq.s32.totalorder %s83, 0
      %p162 = por %p160, %p161
      %p163 = scmp.ne.s32.totalorder %s151, %s152
      %p164 = scmp.eq.s32.totalorder %s84, 1
      %p165 = por %p163, %p164
      %p167 = scmp.ne.s32.totalorder %s152, %s166
      %p168 = scmp.eq.s32.totalorder %s84, 0
      %p169 = por %p167, %p168
      %s171 = sadd.s32 %s170, 1
      %p174 = scmp.eq.s32.totalorder %s78, 1
      %p175 = scmp.ne.s32.totalorder %s170, %s172
      %p176 = scmp.eq.s32.totalorder %s78, 0
      %p177 = por %p175, %p176
      %p178 = scmp.ne.s32.totalorder %s170, %s172
      %p179 = scmp.eq.s32.totalorder %s83, 1
      %p180 = por %p178, %p179
      %p181 = scmp.ne.s32.totalorder %s172, %s173
      %p182 = scmp.eq.s32.totalorder %s83, 0
      %p183 = por %p181, %p182
      %p184 = scmp.ne.s32.totalorder %s172, %s173
      %p185 = scmp.eq.s32.totalorder %s84, 1
      %p186 = por %p184, %p185
      %p188 = scmp.ne.s32.totalorder %s173, %s187
      %p189 = scmp.eq.s32.totalorder %s84, 0
      %p190 = por %p188, %p189
      %s192 = sadd.s32 %s191, 1
      %p195 = scmp.eq.s32.totalorder %s78, 1
      %p196 = scmp.ne.s32.totalorder %s191, %s193
      %p197 = scmp.eq.s32.totalorder %s78, 0
      %p198 = por %p196, %p197
      %p199 = scmp.ne.s32.totalorder %s191, %s193
      %p200 = scmp.eq.s32.totalorder %s83, 1
      %p201 = por %p199, %p200
      %p202 = scmp.ne.s32.totalorder %s193, %s194
      %p203 = scmp.eq.s32.totalorder %s83, 0
      %p204 = por %p202, %p203
      %p205 = scmp.ne.s32.totalorder %s193, %s194
      %p206 = scmp.eq.s32.totalorder %s84, 1
      %p207 = por %p205, %p206
      %p209 = scmp.ne.s32.totalorder %s194, %s208
      %p210 = scmp.eq.s32.totalorder %s84, 0
      %p211 = por %p209, %p210
      %s213 = sadd.s32 %s212, 1
      %p216 = scmp.eq.s32.totalorder %s78, 1
      %p217 = scmp.ne.s32.totalorder %s212, %s214
      %p218 = scmp.eq.s32.totalorder %s78, 0
      %p219 = por %p217, %p218
      %p220 = scmp.ne.s32.totalorder %s212, %s214
      %p221 = scmp.eq.s32.totalorder %s83, 1
      %p222 = por %p220, %p221
      %p223 = scmp.ne.s32.totalorder %s214, %s215
      %p224 = scmp.eq.s32.totalorder %s83, 0
      %p225 = por %p223, %p224
      %p226 = scmp.ne.s32.totalorder %s214, %s215
      %p227 = scmp.eq.s32.totalorder %s84, 1
      %p228 = por %p226, %p227
      %p230 = scmp.ne.s32.totalorder %s215, %s229
      %p231 = scmp.eq.s32.totalorder %s84, 0
      %p232 = por %p230, %p231
      %s233 = ssub.s32 %s78, %s85
      %p234 = scmp.eq.s32.totalorder %s233, 0
      %s236 = sadd.s32 %s235, 1
      %s237 = scalar_select %p234, %s235, %s236
      %p240 = pneg %p234
      %p241 = scmp.eq.s32.totalorder %s78, 1
      %p242 = por %p240, %p241
      %p243 = scmp.ne.s32.totalorder %s235, %s238
      %p244 = scmp.eq.s32.totalorder %s78, 0
      %p245 = por %p243, %p244
      %p246 = scmp.ne.s32.totalorder %s235, %s238
      %p247 = scmp.eq.s32.totalorder %s83, 1
      %p248 = por %p246, %p247
      %p249 = scmp.ne.s32.totalorder %s238, %s239
      %p250 = scmp.eq.s32.totalorder %s83, 0
      %p251 = por %p249, %p250
      %p252 = scmp.ne.s32.totalorder %s238, %s239
      %p253 = scmp.eq.s32.totalorder %s84, 1
      %p254 = por %p252, %p253
      %p256 = scmp.ne.s32.totalorder %s239, %s255
      %p257 = scmp.eq.s32.totalorder %s84, 0
      %p258 = por %p256, %p257
      %s259 = ssub.s32 %s78, %s85
      %p260 = scmp.eq.s32.totalorder %s259, 0
      %s262 = sadd.s32 %s261, 1
      %s263 = scalar_select %p260, %s261, %s262
      %p266 = pneg %p260
      %p267 = scmp.eq.s32.totalorder %s78, 1
      %p268 = por %p266, %p267
      %p269 = scmp.ne.s32.totalorder %s261, %s264
      %p270 = scmp.eq.s32.totalorder %s78, 0
      %p271 = por %p269, %p270
      %p272 = scmp.ne.s32.totalorder %s261, %s264
      %p273 = scmp.eq.s32.totalorder %s83, 1
      %p274 = por %p272, %p273
      %p275 = scmp.ne.s32.totalorder %s264, %s265
      %p276 = scmp.eq.s32.totalorder %s83, 0
      %p277 = por %p275, %p276
      %p278 = scmp.ne.s32.totalorder %s264, %s265
      %p279 = scmp.eq.s32.totalorder %s84, 1
      %p280 = por %p278, %p279
      %p282 = scmp.ne.s32.totalorder %s265, %s281
      %p283 = scmp.eq.s32.totalorder %s84, 0
      %p284 = por %p282, %p283
      %s285 = ssub.s32 %s78, %s85
      %p286 = scmp.eq.s32.totalorder %s285, 0
      %s288 = sadd.s32 %s287, 1
      %s289 = scalar_select %p286, %s287, %s288
      %p292 = pneg %p286
      %p293 = scmp.eq.s32.totalorder %s78, 1
      %p294 = por %p292, %p293
      %p295 = scmp.ne.s32.totalorder %s287, %s290
      %p296 = scmp.eq.s32.totalorder %s78, 0
      %p297 = por %p295, %p296
      %p298 = scmp.ne.s32.totalorder %s287, %s290
      %p299 = scmp.eq.s32.totalorder %s83, 1
      %p300 = por %p298, %p299
      %p301 = scmp.ne.s32.totalorder %s290, %s291
      %p302 = scmp.eq.s32.totalorder %s83, 0
      %p303 = por %p301, %p302
      %p304 = scmp.ne.s32.totalorder %s290, %s291
      %p305 = scmp.eq.s32.totalorder %s84, 1
      %p306 = por %p304, %p305
      %p308 = scmp.ne.s32.totalorder %s291, %s307
      %p309 = scmp.eq.s32.totalorder %s84, 0
      %p310 = por %p308, %p309
      %s311 = ssub.s32 %s78, %s85
      %p312 = scmp.eq.s32.totalorder %s311, 0
      %s314 = sadd.s32 %s313, 1
      %s315 = scalar_select %p312, %s313, %s314
      %p318 = pneg %p312
      %p319 = scmp.eq.s32.totalorder %s78, 1
      %p320 = por %p318, %p319
      %p321 = scmp.ne.s32.totalorder %s313, %s316
      %p322 = scmp.eq.s32.totalorder %s78, 0
      %p323 = por %p321, %p322
      %p324 = scmp.ne.s32.totalorder %s313, %s316
      %p325 = scmp.eq.s32.totalorder %s83, 1
      %p326 = por %p324, %p325
      %p327 = scmp.ne.s32.totalorder %s316, %s317
      %p328 = scmp.eq.s32.totalorder %s83, 0
      %p329 = por %p327, %p328
      %p330 = scmp.ne.s32.totalorder %s316, %s317
      %p331 = scmp.eq.s32.totalorder %s84, 1
      %p332 = por %p330, %p331
      %p334 = scmp.ne.s32.totalorder %s317, %s333
      %p335 = scmp.eq.s32.totalorder %s84, 0
      %p336 = por %p334, %p335
      %s337 = ssub.s32 %s78, %s85
      %p338 = scmp.eq.s32.totalorder %s337, 0
      %s340 = sadd.s32 %s339, 1
      %s341 = scalar_select %p338, %s339, %s340
      %p344 = pneg %p338
      %p345 = scmp.eq.s32.totalorder %s78, 1
      %p346 = por %p344, %p345
      %p347 = scmp.ne.s32.totalorder %s339, %s342
      %p348 = scmp.eq.s32.totalorder %s78, 0
      %p349 = por %p347, %p348
      %p350 = scmp.ne.s32.totalorder %s339, %s342
      %p351 = scmp.eq.s32.totalorder %s83, 1
      %p352 = por %p350, %p351
      %p353 = scmp.ne.s32.totalorder %s342, %s343
      %p354 = scmp.eq.s32.totalorder %s83, 0
      %p355 = por %p353, %p354
      %p356 = scmp.ne.s32.totalorder %s342, %s343
      %p357 = scmp.eq.s32.totalorder %s84, 1
      %p358 = por %p356, %p357
      %p360 = scmp.ne.s32.totalorder %s343, %s359
      %p361 = scmp.eq.s32.totalorder %s84, 0
      %p362 = por %p360, %p361
      %s363 = ssub.s32 %s78, %s85
      %p364 = scmp.eq.s32.totalorder %s363, 0
      %s366 = sadd.s32 %s365, 1
      %s367 = scalar_select %p364, %s365, %s366
      %p370 = pneg %p364
      %p371 = scmp.eq.s32.totalorder %s78, 1
      %p372 = por %p370, %p371
      %p373 = scmp.ne.s32.totalorder %s365, %s368
      %p374 = scmp.eq.s32.totalorder %s78, 0
      %p375 = por %p373, %p374
      %p376 = scmp.ne.s32.totalorder %s365, %s368
      %p377 = scmp.eq.s32.totalorder %s83, 1
      %p378 = por %p376, %p377
      %p379 = scmp.ne.s32.totalorder %s368, %s369
      %p380 = scmp.eq.s32.totalorder %s83, 0
      %p381 = por %p379, %p380
      %p382 = scmp.ne.s32.totalorder %s368, %s369
      %p383 = scmp.eq.s32.totalorder %s84, 1
      %p384 = por %p382, %p383
      %p386 = scmp.ne.s32.totalorder %s369, %s385
      %p387 = scmp.eq.s32.totalorder %s84, 0
      %p388 = por %p386, %p387
      %s389 = ssub.s32 %s78, %s85
      %p390 = scmp.eq.s32.totalorder %s389, 0
      %s392 = sadd.s32 %s391, 1
      %s393 = scalar_select %p390, %s391, %s392
      %p396 = pneg %p390
      %p397 = scmp.eq.s32.totalorder %s78, 1
      %p398 = por %p396, %p397
      %p399 = scmp.ne.s32.totalorder %s391, %s394
      %p400 = scmp.eq.s32.totalorder %s78, 0
      %p401 = por %p399, %p400
      %p402 = scmp.ne.s32.totalorder %s391, %s394
      %p403 = scmp.eq.s32.totalorder %s83, 1
      %p404 = por %p402, %p403
      %p405 = scmp.ne.s32.totalorder %s394, %s395
      %p406 = scmp.eq.s32.totalorder %s83, 0
      %p407 = por %p405, %p406
      %p408 = scmp.ne.s32.totalorder %s394, %s395
      %p409 = scmp.eq.s32.totalorder %s84, 1
      %p410 = por %p408, %p409
      %p412 = scmp.ne.s32.totalorder %s395, %s411
      %p413 = scmp.eq.s32.totalorder %s84, 0
      %p414 = por %p412, %p413
      %s415 = ssub.s32 %s78, %s85
      %p416 = scmp.eq.s32.totalorder %s415, 0
      %s418 = sadd.s32 %s417, 1
      %s419 = scalar_select %p416, %s417, %s418
      %p422 = pneg %p416
      %p423 = scmp.eq.s32.totalorder %s78, 1
      %p424 = por %p422, %p423
      %p425 = scmp.ne.s32.totalorder %s417, %s420
      %p426 = scmp.eq.s32.totalorder %s78, 0
      %p427 = por %p425, %p426
      %p428 = scmp.ne.s32.totalorder %s417, %s420
      %p429 = scmp.eq.s32.totalorder %s83, 1
      %p430 = por %p428, %p429
      %p431 = scmp.ne.s32.totalorder %s420, %s421
      %p432 = scmp.eq.s32.totalorder %s83, 0
      %p433 = por %p431, %p432
      %p434 = scmp.ne.s32.totalorder %s420, %s421
      %p435 = scmp.eq.s32.totalorder %s84, 1
      %p436 = por %p434, %p435
      %p438 = scmp.ne.s32.totalorder %s421, %s437
      %p439 = scmp.eq.s32.totalorder %s84, 0
      %p440 = por %p438, %p439
      %s441 = ssub.s32 %s78, %s85
      %p442 = scmp.eq.s32.totalorder %s441, 0
      %s444 = sadd.s32 %s443, 1
      %s445 = scalar_select %p442, %s443, %s444
      %p448 = pneg %p442
      %p449 = scmp.eq.s32.totalorder %s78, 1
      %p450 = por %p448, %p449
      %p451 = scmp.ne.s32.totalorder %s443, %s446
      %p452 = scmp.eq.s32.totalorder %s78, 0
      %p453 = por %p451, %p452
      %p454 = scmp.ne.s32.totalorder %s443, %s446
      %p455 = scmp.eq.s32.totalorder %s83, 1
      %p456 = por %p454, %p455
      %p457 = scmp.ne.s32.totalorder %s446, %s447
      %p458 = scmp.eq.s32.totalorder %s83, 0
      %p459 = por %p457, %p458
      %p460 = scmp.ne.s32.totalorder %s446, %s447
      %p461 = scmp.eq.s32.totalorder %s84, 1
      %p462 = por %p460, %p461
      %p464 = scmp.ne.s32.totalorder %s447, %s463
      %p465 = scmp.eq.s32.totalorder %s84, 0
      %p466 = por %p464, %p465
      %s467 = ssub.s32 %s78, %s85
      %p468 = scmp.eq.s32.totalorder %s467, 0
      %s470 = sadd.s32 %s469, 1
      %s471 = scalar_select %p468, %s469, %s470
      %p474 = pneg %p468
      %p475 = scmp.eq.s32.totalorder %s78, 1
      %p476 = por %p474, %p475
      %p477 = scmp.ne.s32.totalorder %s469, %s472
      %p478 = scmp.eq.s32.totalorder %s78, 0
      %p479 = por %p477, %p478
      %p480 = scmp.ne.s32.totalorder %s469, %s472
      %p481 = scmp.eq.s32.totalorder %s83, 1
      %p482 = por %p480, %p481
      %p483 = scmp.ne.s32.totalorder %s472, %s473
      %p484 = scmp.eq.s32.totalorder %s83, 0
      %p485 = por %p483, %p484
      %p486 = scmp.ne.s32.totalorder %s472, %s473
      %p487 = scmp.eq.s32.totalorder %s84, 1
      %p488 = por %p486, %p487
      %p490 = scmp.ne.s32.totalorder %s473, %s489
      %p491 = scmp.eq.s32.totalorder %s84, 0
      %p492 = por %p490, %p491
      %s493 = ssub.s32 %s78, %s85
      %p494 = scmp.eq.s32.totalorder %s493, 0
      %s496 = sadd.s32 %s495, 1
      %s497 = scalar_select %p494, %s495, %s496
      %p500 = pneg %p494
      %p501 = scmp.eq.s32.totalorder %s78, 1
      %p502 = por %p500, %p501
      %p503 = scmp.ne.s32.totalorder %s495, %s498
      %p504 = scmp.eq.s32.totalorder %s78, 0
      %p505 = por %p503, %p504
      %p506 = scmp.ne.s32.totalorder %s495, %s498
      %p507 = scmp.eq.s32.totalorder %s83, 1
      %p508 = por %p506, %p507
      %p509 = scmp.ne.s32.totalorder %s498, %s499
      %p510 = scmp.eq.s32.totalorder %s83, 0
      %p511 = por %p509, %p510
      %p512 = scmp.ne.s32.totalorder %s498, %s499
      %p513 = scmp.eq.s32.totalorder %s84, 1
      %p514 = por %p512, %p513
      %p516 = scmp.ne.s32.totalorder %s499, %s515
      %p517 = scmp.eq.s32.totalorder %s84, 0
      %p518 = por %p516, %p517
      %s519 = ssub.s32 %s78, %s85
      %p520 = scmp.eq.s32.totalorder %s519, 0
      %s522 = sadd.s32 %s521, 1
      %s523 = scalar_select %p520, %s521, %s522
      %p526 = pneg %p520
      %p527 = scmp.eq.s32.totalorder %s78, 1
      %p528 = por %p526, %p527
      %p529 = scmp.ne.s32.totalorder %s521, %s524
      %p530 = scmp.eq.s32.totalorder %s78, 0
      %p531 = por %p529, %p530
      %p532 = scmp.ne.s32.totalorder %s521, %s524
      %p533 = scmp.eq.s32.totalorder %s83, 1
      %p534 = por %p532, %p533
      %p535 = scmp.ne.s32.totalorder %s524, %s525
      %p536 = scmp.eq.s32.totalorder %s83, 0
      %p537 = por %p535, %p536
      %p538 = scmp.ne.s32.totalorder %s524, %s525
      %p539 = scmp.eq.s32.totalorder %s84, 1
      %p540 = por %p538, %p539
      %p542 = scmp.ne.s32.totalorder %s525, %s541
      %p543 = scmp.eq.s32.totalorder %s84, 0
      %p544 = por %p542, %p543
      %s545 = ssub.s32 %s78, %s85
      %p546 = scmp.eq.s32.totalorder %s545, 0
      %s548 = sadd.s32 %s547, 1
      %s549 = scalar_select %p546, %s547, %s548
      %p552 = pneg %p546
      %p553 = scmp.eq.s32.totalorder %s78, 1
      %p554 = por %p552, %p553
      %p555 = scmp.ne.s32.totalorder %s547, %s550
      %p556 = scmp.eq.s32.totalorder %s78, 0
      %p557 = por %p555, %p556
      %p558 = scmp.ne.s32.totalorder %s547, %s550
      %p559 = scmp.eq.s32.totalorder %s83, 1
      %p560 = por %p558, %p559
      %p561 = scmp.ne.s32.totalorder %s550, %s551
      %p562 = scmp.eq.s32.totalorder %s83, 0
      %p563 = por %p561, %p562
      %p564 = scmp.ne.s32.totalorder %s550, %s551
      %p565 = scmp.eq.s32.totalorder %s84, 1
      %p566 = por %p564, %p565
      %p568 = scmp.ne.s32.totalorder %s551, %s567
      %p569 = scmp.eq.s32.totalorder %s84, 0
      %p570 = por %p568, %p569
      %s571 = ssub.s32 %s78, %s85
      %p572 = scmp.eq.s32.totalorder %s571, 0
      %s574 = sadd.s32 %s573, 1
      %s575 = scalar_select %p572, %s573, %s574
      %p578 = pneg %p572
      %p579 = scmp.eq.s32.totalorder %s78, 1
      %p580 = por %p578, %p579
      %p581 = scmp.ne.s32.totalorder %s573, %s576
      %p582 = scmp.eq.s32.totalorder %s78, 0
      %p583 = por %p581, %p582
      %p584 = scmp.ne.s32.totalorder %s573, %s576
      %p585 = scmp.eq.s32.totalorder %s83, 1
      %p586 = por %p584, %p585
      %p587 = scmp.ne.s32.totalorder %s576, %s577
      %p588 = scmp.eq.s32.totalorder %s83, 0
      %p589 = por %p587, %p588
      %p590 = scmp.ne.s32.totalorder %s576, %s577
      %p591 = scmp.eq.s32.totalorder %s84, 1
      %p592 = por %p590, %p591
      %p594 = scmp.ne.s32.totalorder %s577, %s593
      %p595 = scmp.eq.s32.totalorder %s84, 0
      %p596 = por %p594, %p595
      %s597 = ssub.s32 %s78, %s85
      %p598 = scmp.eq.s32.totalorder %s597, 0
      %s600 = sadd.s32 %s599, 1
      %s601 = scalar_select %p598, %s599, %s600
      %p604 = pneg %p598
      %p605 = scmp.eq.s32.totalorder %s78, 1
      %p606 = por %p604, %p605
      %p607 = scmp.ne.s32.totalorder %s599, %s602
      %p608 = scmp.eq.s32.totalorder %s78, 0
      %p609 = por %p607, %p608
      %p610 = scmp.ne.s32.totalorder %s599, %s602
      %p611 = scmp.eq.s32.totalorder %s83, 1
      %p612 = por %p610, %p611
      %p613 = scmp.ne.s32.totalorder %s602, %s603
      %p614 = scmp.eq.s32.totalorder %s83, 0
      %p615 = por %p613, %p614
      %p616 = scmp.ne.s32.totalorder %s602, %s603
      %p617 = scmp.eq.s32.totalorder %s84, 1
      %p618 = por %p616, %p617
      %p620 = scmp.ne.s32.totalorder %s603, %s619
      %p621 = scmp.eq.s32.totalorder %s84, 0
      %p622 = por %p620, %p621
      %s623 = ssub.s32 %s78, %s85
      %p624 = scmp.eq.s32.totalorder %s623, 0
      %s626 = sadd.s32 %s625, 1
      %s627 = scalar_select %p624, %s625, %s626
      %p630 = pneg %p624
      %p631 = scmp.eq.s32.totalorder %s78, 1
      %p632 = por %p630, %p631
      %p633 = scmp.ne.s32.totalorder %s625, %s628
      %p634 = scmp.eq.s32.totalorder %s78, 0
      %p635 = por %p633, %p634
      %p636 = scmp.ne.s32.totalorder %s625, %s628
      %p637 = scmp.eq.s32.totalorder %s83, 1
      %p638 = por %p636, %p637
      %p639 = scmp.ne.s32.totalorder %s628, %s629
      %p640 = scmp.eq.s32.totalorder %s83, 0
      %p641 = por %p639, %p640
      %p642 = scmp.ne.s32.totalorder %s628, %s629
      %p643 = scmp.eq.s32.totalorder %s84, 1
      %p644 = por %p642, %p643
      %p646 = scmp.ne.s32.totalorder %s629, %s645
      %p647 = scmp.eq.s32.totalorder %s84, 0
      %p648 = por %p646, %p647
      %s649 = ssub.s32 %s78, %s85
      %p650 = scmp.eq.s32.totalorder %s649, 0
      %s652 = sadd.s32 %s651, 1
      %s653 = scalar_select %p650, %s651, %s652
      %p656 = pneg %p650
      %p657 = scmp.eq.s32.totalorder %s78, 1
      %p658 = por %p656, %p657
      %p659 = scmp.ne.s32.totalorder %s651, %s654
      %p660 = scmp.eq.s32.totalorder %s78, 0
      %p661 = por %p659, %p660
      %p662 = scmp.ne.s32.totalorder %s651, %s654
      %p663 = scmp.eq.s32.totalorder %s83, 1
      %p664 = por %p662, %p663
      %p665 = scmp.ne.s32.totalorder %s654, %s655
      %p666 = scmp.eq.s32.totalorder %s83, 0
      %p667 = por %p665, %p666
      %p668 = scmp.ne.s32.totalorder %s654, %s655
      %p669 = scmp.eq.s32.totalorder %s84, 1
      %p670 = por %p668, %p669
      %p672 = scmp.ne.s32.totalorder %s655, %s671
      %p673 = scmp.eq.s32.totalorder %s84, 0
      %p674 = por %p672, %p673
      %s675 = ssub.s32 %s78, %s85
      %p676 = scmp.eq.s32.totalorder %s675, 0
      %s678 = sadd.s32 %s677, 1
      %s679 = scalar_select %p676, %s677, %s678
      %p682 = pneg %p676
      %p683 = scmp.eq.s32.totalorder %s78, 1
      %p684 = por %p682, %p683
      %p685 = scmp.ne.s32.totalorder %s677, %s680
      %p686 = scmp.eq.s32.totalorder %s78, 0
      %p687 = por %p685, %p686
      %p688 = scmp.ne.s32.totalorder %s677, %s680
      %p689 = scmp.eq.s32.totalorder %s83, 1
      %p690 = por %p688, %p689
      %p691 = scmp.ne.s32.totalorder %s680, %s681
      %p692 = scmp.eq.s32.totalorder %s83, 0
      %p693 = por %p691, %p692
      %p694 = scmp.ne.s32.totalorder %s680, %s681
      %p695 = scmp.eq.s32.totalorder %s84, 1
      %p696 = por %p694, %p695
      %p698 = scmp.ne.s32.totalorder %s681, %s697
      %p699 = scmp.eq.s32.totalorder %s84, 0
      %p700 = por %p698, %p699
      %s702 = sadd.s32 %s701, 1
      %p705 = scmp.eq.s32.totalorder %s78, 1
      %p706 = scmp.ne.s32.totalorder %s701, %s703
      %p707 = scmp.eq.s32.totalorder %s78, 0
      %p708 = por %p706, %p707
      %p709 = scmp.ne.s32.totalorder %s701, %s703
      %p710 = scmp.eq.s32.totalorder %s83, 1
      %p711 = por %p709, %p710
      %p712 = scmp.ne.s32.totalorder %s703, %s704
      %p713 = scmp.eq.s32.totalorder %s83, 0
      %p714 = por %p712, %p713
      %p715 = scmp.ne.s32.totalorder %s703, %s704
      %p716 = scmp.eq.s32.totalorder %s84, 1
      %p717 = por %p715, %p716
      %p719 = scmp.ne.s32.totalorder %s704, %s718
      %p720 = scmp.eq.s32.totalorder %s84, 0
      %p721 = por %p719, %p720
      %s723 = sadd.s32 %s722, 1
      %p726 = scmp.eq.s32.totalorder %s78, 1
      %p727 = scmp.ne.s32.totalorder %s722, %s724
      %p728 = scmp.eq.s32.totalorder %s78, 0
      %p729 = por %p727, %p728
      %p730 = scmp.ne.s32.totalorder %s722, %s724
      %p731 = scmp.eq.s32.totalorder %s83, 1
      %p732 = por %p730, %p731
      %p733 = scmp.ne.s32.totalorder %s724, %s725
      %p734 = scmp.eq.s32.totalorder %s83, 0
      %p735 = por %p733, %p734
      %p736 = scmp.ne.s32.totalorder %s724, %s725
      %p737 = scmp.eq.s32.totalorder %s84, 1
      %p738 = por %p736, %p737
      %p740 = scmp.ne.s32.totalorder %s725, %s739
      %p741 = scmp.eq.s32.totalorder %s84, 0
      %p742 = por %p740, %p741
      %s744 = sadd.s32 %s743, 1
      %p747 = scmp.eq.s32.totalorder %s78, 1
      %p748 = scmp.ne.s32.totalorder %s743, %s745
      %p749 = scmp.eq.s32.totalorder %s78, 0
      %p750 = por %p748, %p749
      %p751 = scmp.ne.s32.totalorder %s743, %s745
      %p752 = scmp.eq.s32.totalorder %s83, 1
      %p753 = por %p751, %p752
      %p754 = scmp.ne.s32.totalorder %s745, %s746
      %p755 = scmp.eq.s32.totalorder %s83, 0
      %p756 = por %p754, %p755
      %p757 = scmp.ne.s32.totalorder %s745, %s746
      %p758 = scmp.eq.s32.totalorder %s84, 1
      %p759 = por %p757, %p758
      %p761 = scmp.ne.s32.totalorder %s746, %s760
      %p762 = scmp.eq.s32.totalorder %s84, 0
      %p763 = por %p761, %p762
      %s765 = sadd.s32 %s764, 1
      %p768 = scmp.eq.s32.totalorder %s78, 1
      %p769 = scmp.ne.s32.totalorder %s764, %s766
      %p770 = scmp.eq.s32.totalorder %s78, 0
      %p771 = por %p769, %p770
      %p772 = scmp.ne.s32.totalorder %s764, %s766
      %p773 = scmp.eq.s32.totalorder %s83, 1
      %p774 = por %p772, %p773
      %p775 = scmp.ne.s32.totalorder %s766, %s767
      %p776 = scmp.eq.s32.totalorder %s83, 0
      %p777 = por %p775, %p776
      %p778 = scmp.ne.s32.totalorder %s766, %s767
      %p779 = scmp.eq.s32.totalorder %s84, 1
      %p780 = por %p778, %p779
      %p782 = scmp.ne.s32.totalorder %s767, %s781
      %p783 = scmp.eq.s32.totalorder %s84, 0
      %p784 = por %p782, %p783
      %s786 = sadd.s32 %s785, 1
      %p789 = scmp.eq.s32.totalorder %s78, 1
      %p790 = scmp.ne.s32.totalorder %s785, %s787
      %p791 = scmp.eq.s32.totalorder %s78, 0
      %p792 = por %p790, %p791
      %p793 = scmp.ne.s32.totalorder %s785, %s787
      %p794 = scmp.eq.s32.totalorder %s83, 1
      %p795 = por %p793, %p794
      %p796 = scmp.ne.s32.totalorder %s787, %s788
      %p797 = scmp.eq.s32.totalorder %s83, 0
      %p798 = por %p796, %p797
      %p799 = scmp.ne.s32.totalorder %s787, %s788
      %p800 = scmp.eq.s32.totalorder %s84, 1
      %p801 = por %p799, %p800
      %p803 = scmp.ne.s32.totalorder %s788, %s802
      %p804 = scmp.eq.s32.totalorder %s84, 0
      %p805 = por %p803, %p804
      %s807 = sadd.s32 %s806, 1
      %p810 = scmp.eq.s32.totalorder %s78, 1
      %p811 = scmp.ne.s32.totalorder %s806, %s808
      %p812 = scmp.eq.s32.totalorder %s78, 0
      %p813 = por %p811, %p812
      %p814 = scmp.ne.s32.totalorder %s806, %s808
      %p815 = scmp.eq.s32.totalorder %s83, 1
      %p816 = por %p814, %p815
      %p817 = scmp.ne.s32.totalorder %s808, %s809
      %p818 = scmp.eq.s32.totalorder %s83, 0
      %p819 = por %p817, %p818
      %p820 = scmp.ne.s32.totalorder %s808, %s809
      %p821 = scmp.eq.s32.totalorder %s84, 1
      %p822 = por %p820, %p821
      %p824 = scmp.ne.s32.totalorder %s809, %s823
      %p825 = scmp.eq.s32.totalorder %s84, 0
      %p826 = por %p824, %p825
      %s828 = sadd.s32 %s827, 1
      %p831 = scmp.eq.s32.totalorder %s78, 1
      %p832 = scmp.ne.s32.totalorder %s827, %s829
      %p833 = scmp.eq.s32.totalorder %s78, 0
      %p834 = por %p832, %p833
      %p835 = scmp.ne.s32.totalorder %s827, %s829
      %p836 = scmp.eq.s32.totalorder %s83, 1
      %p837 = por %p835, %p836
      %p838 = scmp.ne.s32.totalorder %s829, %s830
      %p839 = scmp.eq.s32.totalorder %s83, 0
      %p840 = por %p838, %p839
      %p841 = scmp.ne.s32.totalorder %s829, %s830
      %p842 = scmp.eq.s32.totalorder %s84, 1
      %p843 = por %p841, %p842
      %p845 = scmp.ne.s32.totalorder %s830, %s844
      %p846 = scmp.eq.s32.totalorder %s84, 0
      %p847 = por %p845, %p846
      %s849 = sadd.s32 %s848, 1
      %p852 = scmp.eq.s32.totalorder %s78, 1
      %p853 = scmp.ne.s32.totalorder %s848, %s850
      %p854 = scmp.eq.s32.totalorder %s78, 0
      %p855 = por %p853, %p854
      %p856 = scmp.ne.s32.totalorder %s848, %s850
      %p857 = scmp.eq.s32.totalorder %s83, 1
      %p858 = por %p856, %p857
      %p859 = scmp.ne.s32.totalorder %s850, %s851
      %p860 = scmp.eq.s32.totalorder %s83, 0
      %p861 = por %p859, %p860
      %p862 = scmp.ne.s32.totalorder %s850, %s851
      %p863 = scmp.eq.s32.totalorder %s84, 1
      %p864 = por %p862, %p863
      %p866 = scmp.ne.s32.totalorder %s851, %s865
      %p867 = scmp.eq.s32.totalorder %s84, 0
      %p868 = por %p866, %p867
      %s870 = sadd.s32 %s869, 1
      %p873 = scmp.eq.s32.totalorder %s78, 1
      %p874 = scmp.ne.s32.totalorder %s869, %s871
      %p875 = scmp.eq.s32.totalorder %s78, 0
      %p876 = por %p874, %p875
      %p877 = scmp.ne.s32.totalorder %s869, %s871
      %p878 = scmp.eq.s32.totalorder %s83, 1
      %p879 = por %p877, %p878
      %p880 = scmp.ne.s32.totalorder %s871, %s872
      %p881 = scmp.eq.s32.totalorder %s83, 0
      %p882 = por %p880, %p881
      %p883 = scmp.ne.s32.totalorder %s871, %s872
      %p884 = scmp.eq.s32.totalorder %s84, 1
      %p885 = por %p883, %p884
      %p887 = scmp.ne.s32.totalorder %s872, %s886
      %p888 = scmp.eq.s32.totalorder %s84, 0
      %p889 = por %p887, %p888
      %s891 = sadd.s32 %s890, 1
      %p894 = scmp.eq.s32.totalorder %s78, 1
      %p895 = scmp.ne.s32.totalorder %s890, %s892
      %p896 = scmp.eq.s32.totalorder %s78, 0
      %p897 = por %p895, %p896
      %p898 = scmp.ne.s32.totalorder %s890, %s892
      %p899 = scmp.eq.s32.totalorder %s83, 1
      %p900 = por %p898, %p899
      %p901 = scmp.ne.s32.totalorder %s892, %s893
      %p902 = scmp.eq.s32.totalorder %s83, 0
      %p903 = por %p901, %p902
      %p904 = scmp.ne.s32.totalorder %s892, %s893
      %p905 = scmp.eq.s32.totalorder %s84, 1
      %p906 = por %p904, %p905
      %p908 = scmp.ne.s32.totalorder %s893, %s907
      %p909 = scmp.eq.s32.totalorder %s84, 0
      %p910 = por %p908, %p909
      %p911 = scmp.le.s32.totalorder 1, %s78
      %p912 = scmp.lt.s32.totalorder %s78, 3
      %p913 = pnand %p911, %p912
      %p914 = pneg %p913
      // Predicated region
      $region9: #{tpu_custom_call.1} parent=5 // pred_check
        _
      $region10: #{tpu_custom_call.1} parent=5 // pred_check_branch
        %916 = sbr.rel (%p913) target = $region12
      $region11: #{tpu_custom_call.1} parent=5 // pred_region
        %s917 = ssub.s32 %s78, 1
        // Predicated region
        $region13: #{tpu_custom_call.1} parent=11 // pred_check
          %p918 = pneg %p99
        $region14: #{tpu_custom_call.1} parent=11 // pred_check_branch
          %920 = sbr.rel (%p918) target = $region16
        $region15: #{tpu_custom_call.1} parent=11 // pred_region
          _
        $region16: #{tpu_custom_call.1} parent=11 // pred_fallthru
          _
        // Predicated region
        $region17: #{tpu_custom_call.1} parent=11 // pred_check
          %p921 = pneg %p120
        $region18: #{tpu_custom_call.1} parent=11 // pred_check_branch
          %923 = sbr.rel (%p921) target = $region20
        $region19: #{tpu_custom_call.1} parent=11 // pred_region
          _
        $region20: #{tpu_custom_call.1} parent=11 // pred_fallthru
          _
        // Predicated region
        $region21: #{tpu_custom_call.1} parent=11 // pred_check
          %p924 = pneg %p141
        $region22: #{tpu_custom_call.1} parent=11 // pred_check_branch
          %926 = sbr.rel (%p924) target = $region24
        $region23: #{tpu_custom_call.1} parent=11 // pred_region
          _
        $region24: #{tpu_custom_call.1} parent=11 // pred_fallthru
          _
        // Predicated region
        $region25: #{tpu_custom_call.1} parent=11 // pred_check
          %p927 = pneg %p162
        $region26: #{tpu_custom_call.1} parent=11 // pred_check_branch
          %929 = sbr.rel (%p927) target = $region28
        $region27: #{tpu_custom_call.1} parent=11 // pred_region
          _
        $region28: #{tpu_custom_call.1} parent=11 // pred_fallthru
          _
        // Predicated region
        $region29: #{tpu_custom_call.1} parent=11 // pred_check
          %p930 = pneg %p183
        $region30: #{tpu_custom_call.1} parent=11 // pred_check_branch
          %932 = sbr.rel (%p930) target = $region32
        $region31: #{tpu_custom_call.1} parent=11 // pred_region
          _
        $region32: #{tpu_custom_call.1} parent=11 // pred_fallthru
          _
        // Predicated region
        $region33: #{tpu_custom_call.1} parent=11 // pred_check
          %p933 = pneg %p204
        $region34: #{tpu_custom_call.1} parent=11 // pred_check_branch
          %935 = sbr.rel (%p933) target = $region36
        $region35: #{tpu_custom_call.1} parent=11 // pred_region
          _
        $region36: #{tpu_custom_call.1} parent=11 // pred_fallthru
          _
        // Predicated region
        $region37: #{tpu_custom_call.1} parent=11 // pred_check
          %p936 = pneg %p225
        $region38: #{tpu_custom_call.1} parent=11 // pred_check_branch
          %938 = sbr.rel (%p936) target = $region40
        $region39: #{tpu_custom_call.1} parent=11 // pred_region
          _
        $region40: #{tpu_custom_call.1} parent=11 // pred_fallthru
          _
        // Predicated region
        $region41: #{tpu_custom_call.1} parent=11 // pred_check
          %p939 = pneg %p714
        $region42: #{tpu_custom_call.1} parent=11 // pred_check_branch
          %941 = sbr.rel (%p939) target = $region44
        $region43: #{tpu_custom_call.1} parent=11 // pred_region
          _
        $region44: #{tpu_custom_call.1} parent=11 // pred_fallthru
          _
        // Predicated region
        $region45: #{tpu_custom_call.1} parent=11 // pred_check
          %p942 = pneg %p735
        $region46: #{tpu_custom_call.1} parent=11 // pred_check_branch
          %944 = sbr.rel (%p942) target = $region48
        $region47: #{tpu_custom_call.1} parent=11 // pred_region
          _
        $region48: #{tpu_custom_call.1} parent=11 // pred_fallthru
          _
        // Predicated region
        $region49: #{tpu_custom_call.1} parent=11 // pred_check
          %p945 = pneg %p756
        $region50: #{tpu_custom_call.1} parent=11 // pred_check_branch
          %947 = sbr.rel (%p945) target = $region52
        $region51: #{tpu_custom_call.1} parent=11 // pred_region
          _
        $region52: #{tpu_custom_call.1} parent=11 // pred_fallthru
          _
        // Predicated region
        $region53: #{tpu_custom_call.1} parent=11 // pred_check
          %p948 = pneg %p777
        $region54: #{tpu_custom_call.1} parent=11 // pred_check_branch
          %950 = sbr.rel (%p948) target = $region56
        $region55: #{tpu_custom_call.1} parent=11 // pred_region
          _
        $region56: #{tpu_custom_call.1} parent=11 // pred_fallthru
          _
        // Predicated region
        $region57: #{tpu_custom_call.1} parent=11 // pred_check
          %p951 = pneg %p798
        $region58: #{tpu_custom_call.1} parent=11 // pred_check_branch
          %953 = sbr.rel (%p951) target = $region60
        $region59: #{tpu_custom_call.1} parent=11 // pred_region
          _
        $region60: #{tpu_custom_call.1} parent=11 // pred_fallthru
          _
        // Predicated region
        $region61: #{tpu_custom_call.1} parent=11 // pred_check
          %p954 = pneg %p819
        $region62: #{tpu_custom_call.1} parent=11 // pred_check_branch
          %956 = sbr.rel (%p954) target = $region64
        $region63: #{tpu_custom_call.1} parent=11 // pred_region
          _
        $region64: #{tpu_custom_call.1} parent=11 // pred_fallthru
          _
        // Predicated region
        $region65: #{tpu_custom_call.1} parent=11 // pred_check
          %p957 = pneg %p840
        $region66: #{tpu_custom_call.1} parent=11 // pred_check_branch
          %959 = sbr.rel (%p957) target = $region68
        $region67: #{tpu_custom_call.1} parent=11 // pred_region
          _
        $region68: #{tpu_custom_call.1} parent=11 // pred_fallthru
          _
      $region12: #{tpu_custom_call.1} parent=5 // pred_fallthru
        _
      %p960 = scmp.lt.s32.totalorder %s78, 2
      // Predicated region
      $region69: #{tpu_custom_call.1} parent=5 // pred_check
        %p961 = pneg %p960
      $region70: #{tpu_custom_call.1} parent=5 // pred_check_branch
        %963 = sbr.rel (%p961) target = $region72
      $region71: #{tpu_custom_call.1} parent=5 // pred_region
        // Predicated region
        $region73: #{tpu_custom_call.1} parent=71 // pred_check
          %p964 = pneg %p245
        $region74: #{tpu_custom_call.1} parent=71 // pred_check_branch
          %966 = sbr.rel (%p964) target = $region76
        $region75: #{tpu_custom_call.1} parent=71 // pred_region
          %p967 = scmp.lt.s32.totalorder %s78, 1
          %s968 = scalar_select %p967, %s78, 1
          %s969 = scalar_lea.vmem %s15, %s968
        $region76: #{tpu_custom_call.1} parent=71 // pred_fallthru
          _
        // Predicated region
        $region77: #{tpu_custom_call.1} parent=71 // pred_check
          %p970 = pneg %p271
        $region78: #{tpu_custom_call.1} parent=71 // pred_check_branch
          %972 = sbr.rel (%p970) target = $region80
        $region79: #{tpu_custom_call.1} parent=71 // pred_region
          %p973 = scmp.lt.s32.totalorder %s78, 1
          %s974 = scalar_select %p973, %s78, 1
          %s975 = scalar_lea.vmem %s17, %s974
        $region80: #{tpu_custom_call.1} parent=71 // pred_fallthru
          _
        // Predicated region
        $region81: #{tpu_custom_call.1} parent=71 // pred_check
          %p976 = pneg %p297
        $region82: #{tpu_custom_call.1} parent=71 // pred_check_branch
          %978 = sbr.rel (%p976) target = $region84
        $region83: #{tpu_custom_call.1} parent=71 // pred_region
          %p979 = scmp.lt.s32.totalorder %s78, 1
          %s980 = scalar_select %p979, %s78, 1
          %s981 = smul.addr %s980, 16
          %s982 = smul.addr %s981, 8
          %s983 = scalar_lea.vmem %s19, %s982
        $region84: #{tpu_custom_call.1} parent=71 // pred_fallthru
          _
        // Predicated region
        $region85: #{tpu_custom_call.1} parent=71 // pred_check
          %p984 = pneg %p323
        $region86: #{tpu_custom_call.1} parent=71 // pred_check_branch
          %986 = sbr.rel (%p984) target = $region88
        $region87: #{tpu_custom_call.1} parent=71 // pred_region
          %p987 = scmp.lt.s32.totalorder %s78, 1
          %s988 = scalar_select %p987, %s78, 1
          %s989 = smul.addr %s988, 2
          %s990 = scalar_lea.vmem %s21, %s989
        $region88: #{tpu_custom_call.1} parent=71 // pred_fallthru
          _
        // Predicated region
        $region89: #{tpu_custom_call.1} parent=71 // pred_check
          %p991 = pneg %p349
        $region90: #{tpu_custom_call.1} parent=71 // pred_check_branch
          %993 = sbr.rel (%p991) target = $region92
        $region91: #{tpu_custom_call.1} parent=71 // pred_region
          %p994 = scmp.lt.s32.totalorder %s78, 1
          %s995 = scalar_select %p994, %s78, 1
          %s996 = smul.addr %s995, 8
          %s997 = smul.addr %s996, 8
          %s998 = scalar_lea.vmem %s23, %s997
        $region92: #{tpu_custom_call.1} parent=71 // pred_fallthru
          _
        // Predicated region
        $region93: #{tpu_custom_call.1} parent=71 // pred_check
          %p999 = pneg %p375
        $region94: #{tpu_custom_call.1} parent=71 // pred_check_branch
          %1001 = sbr.rel (%p999) target = $region96
        $region95: #{tpu_custom_call.1} parent=71 // pred_region
          %p1002 = scmp.lt.s32.totalorder %s78, 1
          %s1003 = scalar_select %p1002, %s78, 1
          %s1004 = scalar_lea.vmem %s25, %s1003
        $region96: #{tpu_custom_call.1} parent=71 // pred_fallthru
          _
        // Predicated region
        $region97: #{tpu_custom_call.1} parent=71 // pred_check
          %p1005 = pneg %p401
        $region98: #{tpu_custom_call.1} parent=71 // pred_check_branch
          %1007 = sbr.rel (%p1005) target = $region100
        $region99: #{tpu_custom_call.1} parent=71 // pred_region
          %p1008 = scmp.lt.s32.totalorder %s78, 1
          %s1009 = scalar_select %p1008, %s78, 1
          %s1010 = scalar_lea.vmem %s27, %s1009
        $region100: #{tpu_custom_call.1} parent=71 // pred_fallthru
          _
        // Predicated region
        $region101: #{tpu_custom_call.1} parent=71 // pred_check
          %p1011 = pneg %p427
        $region102: #{tpu_custom_call.1} parent=71 // pred_check_branch
          %1013 = sbr.rel (%p1011) target = $region104
        $region103: #{tpu_custom_call.1} parent=71 // pred_region
          %p1014 = scmp.lt.s32.totalorder %s78, 1
          %s1015 = scalar_select %p1014, %s78, 1
          %s1016 = scalar_lea.vmem %s29, %s1015
        $region104: #{tpu_custom_call.1} parent=71 // pred_fallthru
          _
        // Predicated region
        $region105: #{tpu_custom_call.1} parent=71 // pred_check
          %p1017 = pneg %p453
        $region106: #{tpu_custom_call.1} parent=71 // pred_check_branch
          %1019 = sbr.rel (%p1017) target = $region108
        $region107: #{tpu_custom_call.1} parent=71 // pred_region
          %p1020 = scmp.lt.s32.totalorder %s78, 1
          %s1021 = scalar_select %p1020, %s78, 1
          %s1022 = smul.addr %s1021, 8
          %s1023 = smul.addr %s1022, 8
          %s1024 = scalar_lea.vmem %s31, %s1023
        $region108: #{tpu_custom_call.1} parent=71 // pred_fallthru
          _
        // Predicated region
        $region109: #{tpu_custom_call.1} parent=71 // pred_check
          %p1025 = pneg %p479
        $region110: #{tpu_custom_call.1} parent=71 // pred_check_branch
          %1027 = sbr.rel (%p1025) target = $region112
        $region111: #{tpu_custom_call.1} parent=71 // pred_region
          %p1028 = scmp.lt.s32.totalorder %s78, 1
          %s1029 = scalar_select %p1028, %s78, 1
          %s1030 = scalar_lea.vmem %s33, %s1029
        $region112: #{tpu_custom_call.1} parent=71 // pred_fallthru
          _
        // Predicated region
        $region113: #{tpu_custom_call.1} parent=71 // pred_check
          %p1031 = pneg %p505
        $region114: #{tpu_custom_call.1} parent=71 // pred_check_branch
          %1033 = sbr.rel (%p1031) target = $region116
        $region115: #{tpu_custom_call.1} parent=71 // pred_region
          %p1034 = scmp.lt.s32.totalorder %s78, 1
          %s1035 = scalar_select %p1034, %s78, 1
          %s1036 = smul.addr %s1035, 2
          %s1037 = smul.addr %s1036, 8
          %s1038 = scalar_lea.vmem %s35, %s1037
        $region116: #{tpu_custom_call.1} parent=71 // pred_fallthru
          _
        // Predicated region
        $region117: #{tpu_custom_call.1} parent=71 // pred_check
          %p1039 = pneg %p531
        $region118: #{tpu_custom_call.1} parent=71 // pred_check_branch
          %1041 = sbr.rel (%p1039) target = $region120
        $region119: #{tpu_custom_call.1} parent=71 // pred_region
          %p1042 = scmp.lt.s32.totalorder %s78, 1
          %s1043 = scalar_select %p1042, %s78, 1
          %s1044 = scalar_lea.vmem %s37, %s1043
        $region120: #{tpu_custom_call.1} parent=71 // pred_fallthru
          _
        // Predicated region
        $region121: #{tpu_custom_call.1} parent=71 // pred_check
          %p1045 = pneg %p557
        $region122: #{tpu_custom_call.1} parent=71 // pred_check_branch
          %1047 = sbr.rel (%p1045) target = $region124
        $region123: #{tpu_custom_call.1} parent=71 // pred_region
          %p1048 = scmp.lt.s32.totalorder %s78, 1
          %s1049 = scalar_select %p1048, %s78, 1
          %s1050 = scalar_lea.vmem %s39, %s1049
        $region124: #{tpu_custom_call.1} parent=71 // pred_fallthru
          _
        // Predicated region
        $region125: #{tpu_custom_call.1} parent=71 // pred_check
          %p1051 = pneg %p583
        $region126: #{tpu_custom_call.1} parent=71 // pred_check_branch
          %1053 = sbr.rel (%p1051) target = $region128
        $region127: #{tpu_custom_call.1} parent=71 // pred_region
          %p1054 = scmp.lt.s32.totalorder %s78, 1
          %s1055 = scalar_select %p1054, %s78, 1
          %s1056 = scalar_lea.vmem %s41, %s1055
        $region128: #{tpu_custom_call.1} parent=71 // pred_fallthru
          _
        // Predicated region
        $region129: #{tpu_custom_call.1} parent=71 // pred_check
          %p1057 = pneg %p609
        $region130: #{tpu_custom_call.1} parent=71 // pred_check_branch
          %1059 = sbr.rel (%p1057) target = $region132
        $region131: #{tpu_custom_call.1} parent=71 // pred_region
          %p1060 = scmp.lt.s32.totalorder %s78, 1
          %s1061 = scalar_select %p1060, %s78, 1
          %s1062 = smul.addr %s1061, 16
          %s1063 = smul.addr %s1062, 8
          %s1064 = scalar_lea.vmem %s43, %s1063
        $region132: #{tpu_custom_call.1} parent=71 // pred_fallthru
          _
        // Predicated region
        $region133: #{tpu_custom_call.1} parent=71 // pred_check
          %p1065 = pneg %p635
        $region134: #{tpu_custom_call.1} parent=71 // pred_check_branch
          %1067 = sbr.rel (%p1065) target = $region136
        $region135: #{tpu_custom_call.1} parent=71 // pred_region
          %p1068 = scmp.lt.s32.totalorder %s78, 1
          %s1069 = scalar_select %p1068, %s78, 1
          %s1070 = smul.addr %s1069, 2
          %s1071 = scalar_lea.vmem %s45, %s1070
        $region136: #{tpu_custom_call.1} parent=71 // pred_fallthru
          _
        // Predicated region
        $region137: #{tpu_custom_call.1} parent=71 // pred_check
          %p1072 = pneg %p661
        $region138: #{tpu_custom_call.1} parent=71 // pred_check_branch
          %1074 = sbr.rel (%p1072) target = $region140
        $region139: #{tpu_custom_call.1} parent=71 // pred_region
          %p1075 = scmp.lt.s32.totalorder %s78, 1
          %s1076 = scalar_select %p1075, %s78, 1
          %s1077 = smul.addr %s1076, 32
          %s1078 = smul.addr %s1077, 8
          %s1079 = scalar_lea.vmem %s47, %s1078
        $region140: #{tpu_custom_call.1} parent=71 // pred_fallthru
          _
        // Predicated region
        $region141: #{tpu_custom_call.1} parent=71 // pred_check
          %p1080 = pneg %p687
        $region142: #{tpu_custom_call.1} parent=71 // pred_check_branch
          %1082 = sbr.rel (%p1080) target = $region144
        $region143: #{tpu_custom_call.1} parent=71 // pred_region
          %p1083 = scmp.lt.s32.totalorder %s78, 1
          %s1084 = scalar_select %p1083, %s78, 1
          %s1085 = scalar_lea.vmem %s49, %s1084
        $region144: #{tpu_custom_call.1} parent=71 // pred_fallthru
          _
      $region72: #{tpu_custom_call.1} parent=5 // pred_fallthru
        _
      %p1086 = scmp.le.s32.totalorder 1, %s78
      %p1087 = scmp.lt.s32.totalorder %s78, 3
      %p1088 = pnand %p1086, %p1087
      %p1089 = pneg %p1088
      // Predicated region
      $region145: #{tpu_custom_call.1} parent=5 // pred_check
        _
      $region146: #{tpu_custom_call.1} parent=5 // pred_check_branch
        %1091 = sbr.rel (%p1088) target = $region148
      $region147: #{tpu_custom_call.1} parent=5 // pred_region
        %s1092 = ssub.s32 %s78, 1
        %p1093 = pneg %p99
        %p1094 = pneg %p96
        %p1095 = pneg %p120
        %p1096 = pneg %p117
        %p1097 = pneg %p141
        %p1098 = pneg %p138
        %p1099 = pneg %p162
        %p1100 = pneg %p159
        %p1101 = pneg %p183
        %p1102 = pneg %p180
        %p1103 = pneg %p204
        %p1104 = pneg %p201
        %p1105 = pneg %p225
        %p1106 = pneg %p222
        %p1107 = scmp.lt.s32.totalorder %s83, 1
        %s1108 = scalar_select %p1107, %s83, 1
        %s1109 = scalar_lea.vmem %s15, %s1108
        %p1110 = pneg %p251
        %p1111 = pneg %p248
        %p1112 = scmp.lt.s32.totalorder %s83, 1
        %s1113 = scalar_select %p1112, %s83, 1
        %s1114 = scalar_lea.vmem %s17, %s1113
        %p1115 = pneg %p277
        %p1116 = pneg %p274
        %p1117 = scmp.lt.s32.totalorder %s83, 1
        %s1118 = scalar_select %p1117, %s83, 1
        %s1119 = smul.addr %s1118, 16
        %s1120 = smul.addr %s1119, 8
        %s1121 = scalar_lea.vmem %s19, %s1120
        %p1122 = pneg %p303
        %p1123 = pneg %p300
        %p1124 = scmp.lt.s32.totalorder %s83, 1
        %s1125 = scalar_select %p1124, %s83, 1
        %s1126 = smul.addr %s1125, 2
        %s1127 = scalar_lea.vmem %s21, %s1126
        %p1128 = pneg %p329
        %p1129 = pneg %p326
        %p1130 = scmp.lt.s32.totalorder %s83, 1
        %s1131 = scalar_select %p1130, %s83, 1
        %s1132 = smul.addr %s1131, 8
        %s1133 = smul.addr %s1132, 8
        %s1134 = scalar_lea.vmem %s23, %s1133
        %p1135 = pneg %p355
        %p1136 = pneg %p352
        %p1137 = scmp.lt.s32.totalorder %s83, 1
        %s1138 = scalar_select %p1137, %s83, 1
        %s1139 = scalar_lea.vmem %s25, %s1138
        %p1140 = pneg %p381
        %p1141 = pneg %p378
        %p1142 = scmp.lt.s32.totalorder %s83, 1
        %s1143 = scalar_select %p1142, %s83, 1
        %s1144 = scalar_lea.vmem %s27, %s1143
        %p1145 = pneg %p407
        %p1146 = pneg %p404
        %p1147 = scmp.lt.s32.totalorder %s83, 1
        %s1148 = scalar_select %p1147, %s83, 1
        %s1149 = scalar_lea.vmem %s29, %s1148
        %p1150 = pneg %p433
        %p1151 = pneg %p430
        %p1152 = scmp.lt.s32.totalorder %s83, 1
        %s1153 = scalar_select %p1152, %s83, 1
        %s1154 = smul.addr %s1153, 8
        %s1155 = smul.addr %s1154, 8
        %s1156 = scalar_lea.vmem %s31, %s1155
        %p1157 = pneg %p459
        %p1158 = pneg %p456
        %p1159 = scmp.lt.s32.totalorder %s83, 1
        %s1160 = scalar_select %p1159, %s83, 1
        %s1161 = scalar_lea.vmem %s33, %s1160
        %p1162 = pneg %p485
        %p1163 = pneg %p482
        %p1164 = scmp.lt.s32.totalorder %s83, 1
        %s1165 = scalar_select %p1164, %s83, 1
        %s1166 = smul.addr %s1165, 2
        %s1167 = smul.addr %s1166, 8
        %s1168 = scalar_lea.vmem %s35, %s1167
        %p1169 = pneg %p511
        %p1170 = pneg %p508
        %p1171 = scmp.lt.s32.totalorder %s83, 1
        %s1172 = scalar_select %p1171, %s83, 1
        %s1173 = scalar_lea.vmem %s37, %s1172
        %p1174 = pneg %p537
        %p1175 = pneg %p534
        %p1176 = scmp.lt.s32.totalorder %s83, 1
        %s1177 = scalar_select %p1176, %s83, 1
        %s1178 = scalar_lea.vmem %s39, %s1177
        %p1179 = pneg %p563
        %p1180 = pneg %p560
        %p1181 = scmp.lt.s32.totalorder %s83, 1
        %s1182 = scalar_select %p1181, %s83, 1
        %s1183 = scalar_lea.vmem %s41, %s1182
        %p1184 = pneg %p589
        %p1185 = pneg %p586
        %p1186 = scmp.lt.s32.totalorder %s83, 1
        %s1187 = scalar_select %p1186, %s83, 1
        %s1188 = smul.addr %s1187, 16
        %s1189 = smul.addr %s1188, 8
        %s1190 = scalar_lea.vmem %s43, %s1189
        %p1191 = pneg %p615
        %p1192 = pneg %p612
        %p1193 = scmp.lt.s32.totalorder %s83, 1
        %s1194 = scalar_select %p1193, %s83, 1
        %s1195 = smul.addr %s1194, 2
        %s1196 = scalar_lea.vmem %s45, %s1195
        %p1197 = pneg %p641
        %p1198 = pneg %p638
        %p1199 = scmp.lt.s32.totalorder %s83, 1
        %s1200 = scalar_select %p1199, %s83, 1
        %s1201 = smul.addr %s1200, 32
        %s1202 = smul.addr %s1201, 8
        %s1203 = scalar_lea.vmem %s47, %s1202
        %p1204 = pneg %p667
        %p1205 = pneg %p664
        %p1206 = scmp.lt.s32.totalorder %s83, 1
        %s1207 = scalar_select %p1206, %s83, 1
        %s1208 = scalar_lea.vmem %s49, %s1207
        %p1209 = pneg %p693
        %p1210 = pneg %p690
        %p1211 = pneg %p714
        %p1212 = pneg %p711
        %p1213 = pneg %p735
        %p1214 = pneg %p732
        %p1215 = pneg %p756
        %p1216 = pneg %p753
        %p1217 = pneg %p777
        %p1218 = pneg %p774
        %p1219 = pneg %p798
        %p1220 = pneg %p795
        %p1221 = pneg %p819
        %p1222 = pneg %p816
        %p1223 = pneg %p840
        %p1224 = pneg %p837
        %p1225 = pneg %p861
        %p1226 = pneg %p858
        %p1227 = pneg %p882
        %p1228 = pneg %p879
        %p1229 = pneg %p903
        %p1230 = pneg %p900
        %p1231 = scmp.lt.s32.totalorder %s83, 1
        %s1232 = scalar_select %p1231, %s83, 1
        %s1233 = scalar_lea.vmem %s15, %s1232
        %p1234 = scmp.lt.s32.totalorder %s83, 1
        %s1235 = scalar_select %p1234, %s83, 1
        %s1236 = scalar_lea.vmem %s17, %s1235
        %p1237 = scmp.lt.s32.totalorder %s83, 1
        %s1238 = scalar_select %p1237, %s83, 1
        %s1239 = smul.addr %s1238, 16
        %s1240 = smul.addr %s1239, 8
        %s1241 = scalar_lea.vmem %s19, %s1240
        %p1242 = scmp.lt.s32.totalorder %s83, 1
        %s1243 = scalar_select %p1242, %s83, 1
        %s1244 = smul.addr %s1243, 2
        %s1245 = scalar_lea.vmem %s21, %s1244
        %p1246 = scmp.lt.s32.totalorder %s83, 1
        %s1247 = scalar_select %p1246, %s83, 1
        %s1248 = smul.addr %s1247, 8
        %s1249 = smul.addr %s1248, 8
        %s1250 = scalar_lea.vmem %s23, %s1249
        %p1251 = scmp.lt.s32.totalorder %s83, 1
        %s1252 = scalar_select %p1251, %s83, 1
        %s1253 = scalar_lea.vmem %s25, %s1252
        %p1254 = scmp.lt.s32.totalorder %s83, 1
        %s1255 = scalar_select %p1254, %s83, 1
        %s1256 = scalar_lea.vmem %s27, %s1255
        %p1257 = scmp.lt.s32.totalorder %s83, 1
        %s1258 = scalar_select %p1257, %s83, 1
        %s1259 = scalar_lea.vmem %s29, %s1258
        %p1260 = scmp.lt.s32.totalorder %s83, 1
        %s1261 = scalar_select %p1260, %s83, 1
        %s1262 = smul.addr %s1261, 8
        %s1263 = smul.addr %s1262, 8
        %s1264 = scalar_lea.vmem %s31, %s1263
        %p1265 = scmp.lt.s32.totalorder %s83, 1
        %s1266 = scalar_select %p1265, %s83, 1
        %s1267 = scalar_lea.vmem %s33, %s1266
        %p1268 = scmp.lt.s32.totalorder %s83, 1
        %s1269 = scalar_select %p1268, %s83, 1
        %s1270 = smul.addr %s1269, 2
        %s1271 = smul.addr %s1270, 8
        %s1272 = scalar_lea.vmem %s35, %s1271
        %p1273 = scmp.lt.s32.totalorder %s83, 1
        %s1274 = scalar_select %p1273, %s83, 1
        %s1275 = scalar_lea.vmem %s37, %s1274
        %p1276 = scmp.lt.s32.totalorder %s83, 1
        %s1277 = scalar_select %p1276, %s83, 1
        %s1278 = scalar_lea.vmem %s39, %s1277
        %p1279 = scmp.lt.s32.totalorder %s83, 1
        %s1280 = scalar_select %p1279, %s83, 1
        %s1281 = scalar_lea.vmem %s41, %s1280
        %p1282 = scmp.lt.s32.totalorder %s83, 1
        %s1283 = scalar_select %p1282, %s83, 1
        %s1284 = smul.addr %s1283, 16
        %s1285 = smul.addr %s1284, 8
        %s1286 = scalar_lea.vmem %s43, %s1285
        %p1287 = scmp.lt.s32.totalorder %s83, 1
        %s1288 = scalar_select %p1287, %s83, 1
        %s1289 = smul.addr %s1288, 2
        %s1290 = scalar_lea.vmem %s45, %s1289
        %p1291 = scmp.lt.s32.totalorder %s83, 1
        %s1292 = scalar_select %p1291, %s83, 1
        %s1293 = smul.addr %s1292, 32
        %s1294 = smul.addr %s1293, 8
        %s1295 = scalar_lea.vmem %s47, %s1294
        %p1296 = scmp.lt.s32.totalorder %s83, 1
        %s1297 = scalar_select %p1296, %s83, 1
        %s1298 = scalar_lea.vmem %s49, %s1297
        %p1299 = scmp.eq.s32.totalorder %s83, 0
        // Predicated region
        $region149: #{tpu_custom_call.1} parent=147 // pred_check
          %p1300 = pneg %p1299
        $region150: #{tpu_custom_call.1} parent=147 // pred_check_branch
          %1302 = sbr.rel (%p1300) target = $region152
        $region151: #{tpu_custom_call.1} parent=147 // pred_region
          %v1303 = vld [vmem:[%s1] sm:$0xff]
          %v1304 = vld [vmem:[%s1 + $0x8] sm:$0xff]
          %v1305 = vld [vmem:[%s1 + $0x10] sm:$0xff]
          %v1306 = vld [vmem:[%s1 + $0x18] sm:$0xff]
          %v1307 = vld [vmem:[%s1 + $0x20] sm:$0xff]
          %v1308 = vld [vmem:[%s1 + $0x28] sm:$0xff]
          %v1309 = vld [vmem:[%s1 + $0x30] sm:$0xff]
          %v1310 = vld [vmem:[%s1 + $0x38] sm:$0xff]
          %v1311 = vld [vmem:[%s1 + $0x40] sm:$0xff]
          %v1312 = vld [vmem:[%s1 + $0x48] sm:$0xff]
          %v1313 = vld [vmem:[%s1 + $0x50] sm:$0xff]
          %v1314 = vld [vmem:[%s1 + $0x58] sm:$0xff]
          %v1315 = vld [vmem:[%s3] sm:$0xff]
          %v1316 = vld [vmem:[%s3 + $0x8] sm:$0xff]
          %v1317 = vld [vmem:[%s3 + $0x10] sm:$0xff]
          %v1318 = vld [vmem:[%s3 + $0x18] sm:$0xff]
          %v1319 = vld [vmem:[%s3 + $0x20] sm:$0xff]
          %v1320 = vld [vmem:[%s3 + $0x28] sm:$0xff]
          %v1321 = vld [vmem:[%s3 + $0x30] sm:$0xff]
          %v1322 = vld [vmem:[%s3 + $0x38] sm:$0xff]
          %v1323 = vld [vmem:[%s3 + $0x40] sm:$0xff]
          %v1324 = vld [vmem:[%s3 + $0x48] sm:$0xff]
          %v1325 = vld [vmem:[%s3 + $0x50] sm:$0xff]
          %v1326 = vld [vmem:[%s3 + $0x58] sm:$0xff]
          %v1327 = vld [vmem:[%s3 + $0x60] sm:$0xff]
          %v1328 = vld [vmem:[%s3 + $0x68] sm:$0xff]
          %v1329 = vld [vmem:[%s3 + $0x70] sm:$0xff]
          %v1330 = vld [vmem:[%s3 + $0x78] sm:$0xff]
          %v1331 = vld [vmem:[%s3 + $0x80] sm:$0xff]
          %v1332 = vld [vmem:[%s3 + $0x88] sm:$0xff]
          %v1333 = vld [vmem:[%s3 + $0x90] sm:$0xff]
          %v1334 = vld [vmem:[%s3 + $0x98] sm:$0xff]
          %v1335 = vld [vmem:[%s3 + $0xa0] sm:$0xff]
          %v1336 = vld [vmem:[%s3 + $0xa8] sm:$0xff]
          %v1337 = vld [vmem:[%s3 + $0xb0] sm:$0xff]
          %v1338 = vld [vmem:[%s3 + $0xb8] sm:$0xff]
          %vm1339 = vcmask 523264
          %v1341 = vsel %vm1339, %v1304, 0
          %v1344 = vsel %vm1339, %v1306, 0
          %v1347 = vsel %vm1339, %v1308, 0
          %v1350 = vsel %vm1339, %v1310, 0
          %v1353 = vsel %vm1339, %v1312, 0
          %v1356 = vsel %vm1339, %v1314, 0
          %1358 = vmatprep.subr.mxu0 0.0
          %1359 = vmatpush1.msra.mxu0 %v1330
          %1360 = vmatprep.subr.mxu0 0.0
          %1361 = vmatpush1.msra.mxu0 %v1329
          %1362 = vmatprep.subr.mxu0 0.0
          %1363 = vmatpush1.msra.mxu0 %v1328
          %1364 = vmatprep.subr.mxu0 0.0
          %1365 = vmatpush1.msra.mxu0 %v1327
          %1366 = vmatprep.subr.mxu0 0.0
          %1367 = vmatpush1.msra.mxu0 %v1326
          %1368 = vmatprep.subr.mxu0 0.0
          %1369 = vmatpush1.msra.mxu0 %v1325
          %1370 = vmatprep.subr.mxu0 0.0
          %1371 = vmatpush1.msra.mxu0 %v1324
          %1372 = vmatprep.subr.mxu0 0.0
          %1373 = vmatpush1.msra.mxu0 %v1323
          %1374 = vmatprep.subr.mxu0 0.0
          %1375 = vmatpush1.msra.mxu0 %v1322
          %1376 = vmatprep.subr.mxu0 0.0
          %1377 = vmatpush1.msra.mxu0 %v1321
          %1378 = vmatprep.subr.mxu0 0.0
          %1379 = vmatpush1.msra.mxu0 %v1320
          %1380 = vmatprep.subr.mxu0 0.0
          %1381 = vmatpush1.msra.mxu0 %v1319
          %1382 = vmatprep.subr.mxu0 0.0
          %1383 = vmatpush1.msra.mxu0 %v1318
          %1384 = vmatprep.subr.mxu0 0.0
          %1385 = vmatpush1.msra.mxu0 %v1317
          %1386 = vmatprep.subr.mxu0 0.0
          %1387 = vmatpush1.msra.mxu0 %v1316
          %1388 = vmatprep.subr.mxu0 0.0
          %1389 = vmatpush1.msra.mxu0 %v1315
          %1390 = vmatprep.subr.mxu0 0.0
          %1391 = vmatpush2.msra.mxu0 0.0
          %1392 = vmatprep.subr.mxu0 0.0
          %1393 = vmatpush2.msra.mxu0 0.0
          %1394 = vmatprep.subr.mxu0 0.0
          %1395 = vmatpush2.msra.mxu0 0.0
          %1396 = vmatprep.subr.mxu0 0.0
          %1397 = vmatpush2.msra.mxu0 0.0
          %1398 = vmatprep.subr.mxu0 0.0
          %1399 = vmatpush2.msra.mxu0 0.0
          %1400 = vmatprep.subr.mxu0 0.0
          %1401 = vmatpush2.msra.mxu0 0.0
          %1402 = vmatprep.subr.mxu0 0.0
          %1403 = vmatpush2.msra.mxu0 0.0
          %1404 = vmatprep.subr.mxu0 0.0
          %1405 = vmatpush2.msra.mxu0 0.0
          %1406 = vmatprep.subr.mxu0 0.0
          %1407 = vmatpush2.msra.mxu0 %v1338
          %1408 = vmatprep.subr.mxu0 0.0
          %1409 = vmatpush2.msra.mxu0 %v1337
          %1410 = vmatprep.subr.mxu0 0.0
          %1411 = vmatpush2.msra.mxu0 %v1336
          %1412 = vmatprep.subr.mxu0 0.0
          %1413 = vmatpush2.msra.mxu0 %v1335
          %1414 = vmatprep.subr.mxu0 0.0
          %1415 = vmatpush2.msra.mxu0 %v1334
          %1416 = vmatprep.subr.mxu0 0.0
          %1417 = vmatpush2.msra.mxu0 %v1333
          %1418 = vmatprep.subr.mxu0 0.0
          %1419 = vmatpush2.msra.mxu0 %v1332
          %1420 = vmatprep.subr.mxu0 0.0
          %1421 = vmatpush2.msra.mxu0 %v1331
          %1422 = vmatprep.mubr.f32.mxu0 %v1341
          %1423 = vmatmul.mubr.f32.gmra.mxu0 %v1303
          %v1424 = vpop.f32.mrf.mxu0
          %v1425 = vadd.f32 0.0, %v1424
          %v1426 = vpop.f32.mrf.mxu0
          %1427 = vmatprep.mubr.f32.mxu0 %v1344
          %1428 = vmatmul.mubr.f32.gmra.mxu0 %v1305
          %v1429 = vpop.f32.mrf.mxu0
          %v1430 = vadd.f32 0.0, %v1429
          %v1431 = vpop.f32.mrf.mxu0
          %1432 = vmatprep.mubr.f32.mxu0 %v1347
          %1433 = vmatmul.mubr.f32.gmra.mxu0 %v1307
          %v1434 = vpop.f32.mrf.mxu0
          %v1435 = vadd.f32 0.0, %v1434
          %v1436 = vpop.f32.mrf.mxu0
          %1437 = vmatprep.mubr.f32.mxu0 %v1350
          %1438 = vmatmul.mubr.f32.gmra.mxu0 %v1309
          %v1439 = vpop.f32.mrf.mxu0
          %v1440 = vadd.f32 0.0, %v1439
          %v1441 = vpop.f32.mrf.mxu0
          %1442 = vmatprep.mubr.f32.mxu0 %v1353
          %1443 = vmatmul.mubr.f32.gmra.mxu0 %v1311
          %v1444 = vpop.f32.mrf.mxu0
          %v1445 = vadd.f32 0.0, %v1444
          %v1446 = vpop.f32.mrf.mxu0
          %1447 = vmatprep.mubr.f32.mxu0 %v1356
          %1448 = vmatmul.mubr.f32.gmra.mxu0 %v1313
          %v1449 = vpop.f32.mrf.mxu0
          %v1450 = vadd.f32 0.0, %v1449
          %v1451 = vpop.f32.mrf.mxu0
          %1452 = vdwg.mxu0
          %v1453 = vlaneseq
          %v1454 = vshrl.u32 %v1453, 7
          %v1455 = vadd.s32 %v1454, 8
          %v1456 = vadd.s32 %v1454, 16
          %vm1457 = vcmp.eq.s32.totalorder %v1454, 0
          %vm1458 = vcmp.eq.s32.totalorder %v1455, 0
          %vm1459 = vcmp.eq.s32.totalorder %v1456, 0
          %v1460 = vld [vmem:[%s5] sm:$0x1]
          %v1462 = vlaneseq
          %v1463 = vshrl.u32 %v1462, 7
          %v1464 = vsub.s32 0, %v1463
          %v1465 = vrot.slane %v1460, %v1464
          %v1467 = vsel %vm1457, %v1465, %v1425
          %v1468 = vsel %vm1458, %v1465, %v1430
          %v1469 = vsel %vm1459, %v1465, %v1435
          %v1470 = vsel %vm1457, %v1465, %v1440
          %v1471 = vsel %vm1458, %v1465, %v1445
          %v1472 = vsel %vm1459, %v1465, %v1450
          %v1473 = vld [vmem:[%s7] sm:$0xff]
          %v1474 = vld [vmem:[%s7 + $0x8] sm:$0xff]
          %v1475 = vld [vmem:[%s7 + $0x10] sm:$0xff]
          %v1476 = vadd.f32 %v1467, %v1473
          %v1477 = vadd.f32 %v1468, %v1474
          %v1478 = vadd.f32 %v1469, %v1475
          %v1479 = vadd.f32 %v1470, %v1473
          %v1480 = vadd.f32 %v1471, %v1474
          %v1481 = vadd.f32 %v1472, %v1475
          %v1482 = vld [vmem:[%s11] sm:$0x1]
          %v1483 = vld [vmem:[%s13] sm:$0x1]
          %v1484 = vsel %vm1339, %v1476, 0.0
          %1485 = vadd.xlane.f32.xlu0 %v1484
          %v1486 = vpop.xlane.xlu0 %1485
          %v1487 = vsel %vm1339, %v1477, 0.0
          %1488 = vadd.xlane.f32.xlu0 %v1487
          %v1489 = vpop.xlane.xlu0 %1488
          %v1490 = vsel %vm1339, %v1478, 0.0
          %1491 = vadd.xlane.f32.xlu0 %v1490
          %v1492 = vpop.xlane.xlu0 %1491
          %v1493 = vsel %vm1339, %v1479, 0.0
          %1494 = vadd.xlane.f32.xlu0 %v1493
          %v1495 = vpop.xlane.xlu0 %1494
          %v1496 = vsel %vm1339, %v1480, 0.0
          %1497 = vadd.xlane.f32.xlu0 %v1496
          %v1498 = vpop.xlane.xlu0 %1497
          %v1499 = vsel %vm1339, %v1481, 0.0
          %1500 = vadd.xlane.f32.xlu0 %v1499
          %v1501 = vpop.xlane.xlu0 %1500
          %v1502 = vrcp.pop 64.0
          %v1503 = vmul.f32 %v1486, %v1502
          %v1504 = vmul.f32 %v1489, %v1502
          %v1505 = vmul.f32 %v1492, %v1502
          %v1506 = vmul.f32 %v1495, %v1502
          %v1507 = vmul.f32 %v1498, %v1502
          %v1508 = vmul.f32 %v1501, %v1502
          %v1509 = vsub.f32 %v1476, %v1503
          %v1510 = vsub.f32 %v1477, %v1504
          %v1511 = vsub.f32 %v1478, %v1505
          %v1512 = vsub.f32 %v1479, %v1506
          %v1513 = vsub.f32 %v1480, %v1507
          %v1514 = vsub.f32 %v1481, %v1508
          %v1515 = vmul.f32 %v1509, %v1509
          %v1516 = vmul.f32 %v1510, %v1510
          %v1517 = vmul.f32 %v1511, %v1511
          %v1518 = vmul.f32 %v1512, %v1512
          %v1519 = vmul.f32 %v1513, %v1513
          %v1520 = vmul.f32 %v1514, %v1514
          %v1521 = vsel %vm1339, %v1515, 0.0
          %1522 = vadd.xlane.f32.xlu0 %v1521
          %v1523 = vpop.xlane.xlu0 %1522
          %v1524 = vsel %vm1339, %v1516, 0.0
          %1525 = vadd.xlane.f32.xlu0 %v1524
          %v1526 = vpop.xlane.xlu0 %1525
          %v1527 = vsel %vm1339, %v1517, 0.0
          %1528 = vadd.xlane.f32.xlu0 %v1527
          %v1529 = vpop.xlane.xlu0 %1528
          %v1530 = vsel %vm1339, %v1518, 0.0
          %1531 = vadd.xlane.f32.xlu0 %v1530
          %v1532 = vpop.xlane.xlu0 %1531
          %v1533 = vsel %vm1339, %v1519, 0.0
          %1534 = vadd.xlane.f32.xlu0 %v1533
          %v1535 = vpop.xlane.xlu0 %1534
          %v1536 = vsel %vm1339, %v1520, 0.0
          %1537 = vadd.xlane.f32.xlu0 %v1536
          %v1538 = vpop.xlane.xlu0 %1537
          %v1539 = vmul.f32 %v1523, %v1502
          %v1540 = vmul.f32 %v1526, %v1502
          %v1541 = vmul.f32 %v1529, %v1502
          %v1542 = vmul.f32 %v1532, %v1502
          %v1543 = vmul.f32 %v1535, %v1502
          %v1544 = vmul.f32 %v1538, %v1502
          %v1545 = vadd.f32 %v1539, 1e-05
          %v1546 = vadd.f32 %v1540, 1e-05
          %v1547 = vadd.f32 %v1541, 1e-05
          %v1548 = vadd.f32 %v1542, 1e-05
          %v1549 = vadd.f32 %v1543, 1e-05
          %v1550 = vadd.f32 %v1544, 1e-05
          %v1551 = vrsqrt.pop %v1545
          %v1552 = vrsqrt.pop %v1546
          %v1553 = vrsqrt.pop %v1547
          %v1554 = vrsqrt.pop %v1548
          %v1555 = vrsqrt.pop %v1549
          %v1556 = vrsqrt.pop %v1550
          %v1557 = vmul.f32 %v1509, %v1551
          %v1558 = vmul.f32 %v1510, %v1552
          %v1559 = vmul.f32 %v1511, %v1553
          %v1560 = vmul.f32 %v1512, %v1554
          %v1561 = vmul.f32 %v1513, %v1555
          %v1562 = vmul.f32 %v1514, %v1556
          %v1564 = vlaneseq
          %v1565 = vshrl.u32 %v1564, 7
          %v1566 = vsub.s32 0, %v1565
          %v1567 = vrot.slane %v1482, %v1566
          %v1569 = vmul.f32 %v1557, %v1567
          %v1570 = vmul.f32 %v1558, %v1567
          %v1571 = vmul.f32 %v1559, %v1567
          %v1572 = vmul.f32 %v1560, %v1567
          %v1573 = vmul.f32 %v1561, %v1567
          %v1574 = vmul.f32 %v1562, %v1567
          %v1576 = vlaneseq
          %v1577 = vshrl.u32 %v1576, 7
          %v1578 = vsub.s32 0, %v1577
          %v1579 = vrot.slane %v1483, %v1578
          %v1581 = vadd.f32 %v1569, %v1579
          %v1582 = vadd.f32 %v1570, %v1579
          %v1583 = vadd.f32 %v1571, %v1579
          %v1584 = vadd.f32 %v1572, %v1579
          %v1585 = vadd.f32 %v1573, %v1579
          %v1586 = vadd.f32 %v1574, %v1579
          %1587 = vst.msk [vmem:[#allocation2] sm:$0xff] %vm1339, %v1581
          %1588 = vst.msk [vmem:[#allocation2 + $0x8] sm:$0xff] %vm1339, %v1582
          %1589 = vst.msk [vmem:[#allocation2 + $0x10] sm:$0xff] %vm1339, %v1583
          %1590 = vst.msk [vmem:[#allocation2 + $0x18] sm:$0xff] %vm1339, %v1584
          %1591 = vst.msk [vmem:[#allocation2 + $0x20] sm:$0xff] %vm1339, %v1585
          %1592 = vst.msk [vmem:[#allocation2 + $0x28] sm:$0xff] %vm1339, %v1586
        $region152: #{tpu_custom_call.1} parent=147 // pred_fallthru
          _
        %v1593 = vld [vmem:[#allocation2] sm:$0xff]
        %v1594 = vld [vmem:[#allocation2 + $0x8] sm:$0xff]
        %v1595 = vld [vmem:[#allocation2 + $0x10] sm:$0xff]
        %v1596 = vld [vmem:[#allocation2 + $0x18] sm:$0xff]
        %v1597 = vld [vmem:[#allocation2 + $0x20] sm:$0xff]
        %v1598 = vld [vmem:[#allocation2 + $0x28] sm:$0xff]
        %v1599 = vld [vmem:[%s1233] sm:$0x1]
        %v1600 = vld [vmem:[%s1236] sm:$0x1]
        %vm1601 = vcmask 523264
        %v1602 = vsel %vm1601, %v1593, 0.0
        %1603 = vadd.xlane.f32.xlu0 %v1602
        %v1604 = vpop.xlane.xlu0 %1603
        %v1605 = vsel %vm1601, %v1594, 0.0
        %1606 = vadd.xlane.f32.xlu0 %v1605
        %v1607 = vpop.xlane.xlu0 %1606
        %v1608 = vsel %vm1601, %v1595, 0.0
        %1609 = vadd.xlane.f32.xlu0 %v1608
        %v1610 = vpop.xlane.xlu0 %1609
        %v1611 = vsel %vm1601, %v1596, 0.0
        %1612 = vadd.xlane.f32.xlu0 %v1611
        %v1613 = vpop.xlane.xlu0 %1612
        %v1614 = vsel %vm1601, %v1597, 0.0
        %1615 = vadd.xlane.f32.xlu0 %v1614
        %v1616 = vpop.xlane.xlu0 %1615
        %v1617 = vsel %vm1601, %v1598, 0.0
        %1618 = vadd.xlane.f32.xlu0 %v1617
        %v1619 = vpop.xlane.xlu0 %1618
        %v1620 = vrcp.pop 64.0
        %v1621 = vmul.f32 %v1604, %v1620
        %v1622 = vmul.f32 %v1607, %v1620
        %v1623 = vmul.f32 %v1610, %v1620
        %v1624 = vmul.f32 %v1613, %v1620
        %v1625 = vmul.f32 %v1616, %v1620
        %v1626 = vmul.f32 %v1619, %v1620
        %v1627 = vsub.f32 %v1593, %v1621
        %v1628 = vsub.f32 %v1594, %v1622
        %v1629 = vsub.f32 %v1595, %v1623
        %v1630 = vsub.f32 %v1596, %v1624
        %v1631 = vsub.f32 %v1597, %v1625
        %v1632 = vsub.f32 %v1598, %v1626
        %v1633 = vmul.f32 %v1627, %v1627
        %v1634 = vmul.f32 %v1628, %v1628
        %v1635 = vmul.f32 %v1629, %v1629
        %v1636 = vmul.f32 %v1630, %v1630
        %v1637 = vmul.f32 %v1631, %v1631
        %v1638 = vmul.f32 %v1632, %v1632
        %v1639 = vsel %vm1601, %v1633, 0.0
        %1640 = vadd.xlane.f32.xlu0 %v1639
        %v1641 = vpop.xlane.xlu0 %1640
        %v1642 = vsel %vm1601, %v1634, 0.0
        %1643 = vadd.xlane.f32.xlu0 %v1642
        %v1644 = vpop.xlane.xlu0 %1643
        %v1645 = vsel %vm1601, %v1635, 0.0
        %1646 = vadd.xlane.f32.xlu0 %v1645
        %v1647 = vpop.xlane.xlu0 %1646
        %v1648 = vsel %vm1601, %v1636, 0.0
        %1649 = vadd.xlane.f32.xlu0 %v1648
        %v1650 = vpop.xlane.xlu0 %1649
        %v1651 = vsel %vm1601, %v1637, 0.0
        %1652 = vadd.xlane.f32.xlu0 %v1651
        %v1653 = vpop.xlane.xlu0 %1652
        %v1654 = vsel %vm1601, %v1638, 0.0
        %1655 = vadd.xlane.f32.xlu0 %v1654
        %v1656 = vpop.xlane.xlu0 %1655
        %v1657 = vmul.f32 %v1641, %v1620
        %v1658 = vmul.f32 %v1644, %v1620
        %v1659 = vmul.f32 %v1647, %v1620
        %v1660 = vmul.f32 %v1650, %v1620
        %v1661 = vmul.f32 %v1653, %v1620
        %v1662 = vmul.f32 %v1656, %v1620
        %v1663 = vadd.f32 %v1657, 1e-05
        %v1664 = vadd.f32 %v1658, 1e-05
        %v1665 = vadd.f32 %v1659, 1e-05
        %v1666 = vadd.f32 %v1660, 1e-05
        %v1667 = vadd.f32 %v1661, 1e-05
        %v1668 = vadd.f32 %v1662, 1e-05
        %v1669 = vrsqrt.pop %v1663
        %v1670 = vrsqrt.pop %v1664
        %v1671 = vrsqrt.pop %v1665
        %v1672 = vrsqrt.pop %v1666
        %v1673 = vrsqrt.pop %v1667
        %v1674 = vrsqrt.pop %v1668
        %v1675 = vmul.f32 %v1627, %v1669
        %v1676 = vmul.f32 %v1628, %v1670
        %v1677 = vmul.f32 %v1629, %v1671
        %v1678 = vmul.f32 %v1630, %v1672
        %v1679 = vmul.f32 %v1631, %v1673
        %v1680 = vmul.f32 %v1632, %v1674
        %v1682 = vlaneseq
        %v1683 = vshrl.u32 %v1682, 7
        %v1684 = vsub.s32 0, %v1683
        %v1685 = vrot.slane %v1599, %v1684
        %v1687 = vmul.f32 %v1675, %v1685
        %v1688 = vmul.f32 %v1676, %v1685
        %v1689 = vmul.f32 %v1677, %v1685
        %v1690 = vmul.f32 %v1678, %v1685
        %v1691 = vmul.f32 %v1679, %v1685
        %v1692 = vmul.f32 %v1680, %v1685
        %v1694 = vlaneseq
        %v1695 = vshrl.u32 %v1694, 7
        %v1696 = vsub.s32 0, %v1695
        %v1697 = vrot.slane %v1600, %v1696
        %v1699 = vadd.f32 %v1687, %v1697
        %v1700 = vadd.f32 %v1688, %v1697
        %v1701 = vadd.f32 %v1689, %v1697
        %v1702 = vadd.f32 %v1690, %v1697
        %v1703 = vadd.f32 %v1691, %v1697
        %v1704 = vadd.f32 %v1692, %v1697
        %v1705 = vld [vmem:[%s1241] sm:$0xff]
        %v1706 = vld [vmem:[%s1241 + $0x8] sm:$0xff]
        %v1707 = vld [vmem:[%s1241 + $0x10] sm:$0xff]
        %v1708 = vld [vmem:[%s1241 + $0x18] sm:$0xff]
        %v1709 = vld [vmem:[%s1241 + $0x20] sm:$0xff]
        %v1710 = vld [vmem:[%s1241 + $0x28] sm:$0xff]
        %v1711 = vld [vmem:[%s1241 + $0x30] sm:$0xff]
        %v1712 = vld [vmem:[%s1241 + $0x38] sm:$0xff]
        %v1713 = vld [vmem:[%s1241 + $0x40] sm:$0xff]
        %v1714 = vld [vmem:[%s1241 + $0x48] sm:$0xff]
        %v1715 = vld [vmem:[%s1241 + $0x50] sm:$0xff]
        %v1716 = vld [vmem:[%s1241 + $0x58] sm:$0xff]
        %v1717 = vld [vmem:[%s1241 + $0x60] sm:$0xff]
        %v1718 = vld [vmem:[%s1241 + $0x68] sm:$0xff]
        %v1719 = vld [vmem:[%s1241 + $0x70] sm:$0xff]
        %v1720 = vld [vmem:[%s1241 + $0x78] sm:$0xff]
        %v1721 = vld [vmem:[%s1245] sm:$0x3]
        %v1723 = vlaneseq
        %v1724 = vshrl.u32 %v1723, 7
        %v1725 = vsub.s32 0, %v1724
        %v1726 = vrot.slane %v1721, %v1725
        %v1727 = vlaneseq
        %v1728 = vshrl.u32 %v1727, 7
        %v1729 = vsub.s32 1, %v1728
        %v1730 = vrot.slane %v1721, %v1729
        %v1734 = vsel %vm1601, %v1699, 0
        %v1737 = vsel %vm1601, %v1700, 0
        %v1740 = vsel %vm1601, %v1701, 0
        %v1743 = vsel %vm1601, %v1702, 0
        %v1746 = vsel %vm1601, %v1703, 0
        %v1749 = vsel %vm1601, %v1704, 0
        %1751 = vmatprep.subr.mxu0 0.0
        %1752 = vmatpush1.msra.mxu0 0.0
        %1753 = vmatprep.subr.mxu0 0.0
        %1754 = vmatpush1.msra.mxu0 0.0
        %1755 = vmatprep.subr.mxu0 0.0
        %1756 = vmatpush1.msra.mxu0 0.0
        %1757 = vmatprep.subr.mxu0 0.0
        %1758 = vmatpush1.msra.mxu0 0.0
        %1759 = vmatprep.subr.mxu0 0.0
        %1760 = vmatpush1.msra.mxu0 0.0
        %1761 = vmatprep.subr.mxu0 0.0
        %1762 = vmatpush1.msra.mxu0 0.0
        %1763 = vmatprep.subr.mxu0 0.0
        %1764 = vmatpush1.msra.mxu0 0.0
        %1765 = vmatprep.subr.mxu0 0.0
        %1766 = vmatpush1.msra.mxu0 0.0
        %1767 = vmatprep.subr.mxu0 %v1720
        %1768 = vmatpush1.msra.mxu0 %v1719
        %1769 = vmatprep.subr.mxu0 %v1718
        %1770 = vmatpush1.msra.mxu0 %v1717
        %1771 = vmatprep.subr.mxu0 %v1716
        %1772 = vmatpush1.msra.mxu0 %v1715
        %1773 = vmatprep.subr.mxu0 %v1714
        %1774 = vmatpush1.msra.mxu0 %v1713
        %1775 = vmatprep.subr.mxu0 %v1712
        %1776 = vmatpush1.msra.mxu0 %v1711
        %1777 = vmatprep.subr.mxu0 %v1710
        %1778 = vmatpush1.msra.mxu0 %v1709
        %1779 = vmatprep.subr.mxu0 %v1708
        %1780 = vmatpush1.msra.mxu0 %v1707
        %1781 = vmatprep.subr.mxu0 %v1706
        %1782 = vmatpush1.msra.mxu0 %v1705
        %1783 = vmatprep.subr.mxu0 0.0
        %1784 = vmatpush2.msra.mxu0 0.0
        %1785 = vmatprep.subr.mxu0 0.0
        %1786 = vmatpush2.msra.mxu0 0.0
        %1787 = vmatprep.subr.mxu0 0.0
        %1788 = vmatpush2.msra.mxu0 0.0
        %1789 = vmatprep.subr.mxu0 0.0
        %1790 = vmatpush2.msra.mxu0 0.0
        %1791 = vmatprep.subr.mxu0 0.0
        %1792 = vmatpush2.msra.mxu0 0.0
        %1793 = vmatprep.subr.mxu0 0.0
        %1794 = vmatpush2.msra.mxu0 0.0
        %1795 = vmatprep.subr.mxu0 0.0
        %1796 = vmatpush2.msra.mxu0 0.0
        %1797 = vmatprep.subr.mxu0 0.0
        %1798 = vmatpush2.msra.mxu0 0.0
        %1799 = vmatprep.subr.mxu0 0.0
        %1800 = vmatpush2.msra.mxu0 0.0
        %1801 = vmatprep.subr.mxu0 0.0
        %1802 = vmatpush2.msra.mxu0 0.0
        %1803 = vmatprep.subr.mxu0 0.0
        %1804 = vmatpush2.msra.mxu0 0.0
        %1805 = vmatprep.subr.mxu0 0.0
        %1806 = vmatpush2.msra.mxu0 0.0
        %1807 = vmatprep.subr.mxu0 0.0
        %1808 = vmatpush2.msra.mxu0 0.0
        %1809 = vmatprep.subr.mxu0 0.0
        %1810 = vmatpush2.msra.mxu0 0.0
        %1811 = vmatprep.subr.mxu0 0.0
        %1812 = vmatpush2.msra.mxu0 0.0
        %1813 = vmatprep.subr.mxu0 0.0
        %1814 = vmatpush2.msra.mxu0 0.0
        %1815 = vmatprep.mubr.f32.mxu0 0.0
        %1816 = vmatmul.mubr.f32.gmra.mxu0 %v1734
        %v1817 = vpop.f32.mrf.mxu0
        %v1818 = vadd.f32 %v1726, %v1817
        %v1819 = vpop.f32.mrf.mxu0
        %v1820 = vadd.f32 %v1730, %v1819
        %1821 = vmatprep.mubr.f32.mxu0 0.0
        %1822 = vmatmul.mubr.f32.gmra.mxu0 %v1737
        %v1823 = vpop.f32.mrf.mxu0
        %v1824 = vadd.f32 %v1726, %v1823
        %v1825 = vpop.f32.mrf.mxu0
        %v1826 = vadd.f32 %v1730, %v1825
        %1827 = vmatprep.mubr.f32.mxu0 0.0
        %1828 = vmatmul.mubr.f32.gmra.mxu0 %v1740
        %v1829 = vpop.f32.mrf.mxu0
        %v1830 = vadd.f32 %v1726, %v1829
        %v1831 = vpop.f32.mrf.mxu0
        %v1832 = vadd.f32 %v1730, %v1831
        %1833 = vmatprep.mubr.f32.mxu0 0.0
        %1834 = vmatmul.mubr.f32.gmra.mxu0 %v1743
        %v1835 = vpop.f32.mrf.mxu0
        %v1836 = vadd.f32 %v1726, %v1835
        %v1837 = vpop.f32.mrf.mxu0
        %v1838 = vadd.f32 %v1730, %v1837
        %1839 = vmatprep.mubr.f32.mxu0 0.0
        %1840 = vmatmul.mubr.f32.gmra.mxu0 %v1746
        %v1841 = vpop.f32.mrf.mxu0
        %v1842 = vadd.f32 %v1726, %v1841
        %v1843 = vpop.f32.mrf.mxu0
        %v1844 = vadd.f32 %v1730, %v1843
        %1845 = vmatprep.mubr.f32.mxu0 0.0
        %1846 = vmatmul.mubr.f32.gmra.mxu0 %v1749
        %v1847 = vpop.f32.mrf.mxu0
        %v1848 = vadd.f32 %v1726, %v1847
        %v1849 = vpop.f32.mrf.mxu0
        %v1850 = vadd.f32 %v1730, %v1849
        %1851 = vdwg.mxu0
        %v1852 = vld [vmem:[%s9] sm:$0x1]
        %1856 = vrot.lane.b32.xlu0 %v1818, 64
        %v1857 = vpop.permute.xlu0 %1856
        %1858 = vrot.lane.b32.xlu0 %v1824, 64
        %v1859 = vpop.permute.xlu0 %1858
        %1860 = vrot.lane.b32.xlu0 %v1830, 64
        %v1861 = vpop.permute.xlu0 %1860
        %vm1862 = vcmask 130048
        %v1863 = vsel %vm1862, %v1818, 0
        %v1865 = vsel %vm1862, %v1824, 0
        %v1867 = vsel %vm1862, %v1830, 0
        %v1869 = vsel %vm1862, %v1857, 0
        %v1871 = vsel %vm1862, %v1859, 0
        %v1873 = vsel %vm1862, %v1861, 0
        %1875 = vmatprep.subr.mxu0 0.0
        %1876 = vmatpush1.xpose.msra.mxu0 0.0
        %1877 = vmatprep.subr.mxu0 0.0
        %1878 = vmatpush1.xpose.msra.mxu0 0.0
        %1879 = vmatprep.subr.mxu0 0.0
        %1880 = vmatpush1.xpose.msra.mxu0 0.0
        %1881 = vmatprep.subr.mxu0 0.0
        %1882 = vmatpush1.xpose.msra.mxu0 0.0
        %1883 = vmatprep.subr.mxu0 0.0
        %1884 = vmatpush1.xpose.msra.mxu0 0.0
        %1885 = vmatprep.subr.mxu0 0.0
        %1886 = vmatpush1.xpose.msra.mxu0 0.0
        %1887 = vmatprep.subr.mxu0 0.0
        %1888 = vmatpush1.xpose.msra.mxu0 0.0
        %1889 = vmatprep.subr.mxu0 0.0
        %1890 = vmatpush1.xpose.msra.mxu0 0.0
        %1891 = vmatprep.subr.mxu0 0.0
        %1892 = vmatpush1.xpose.msra.mxu0 0.0
        %1893 = vmatprep.subr.mxu0 0.0
        %1894 = vmatpush1.xpose.msra.mxu0 0.0
        %1895 = vmatprep.subr.mxu0 0.0
        %1896 = vmatpush1.xpose.msra.mxu0 0.0
        %1897 = vmatprep.subr.mxu0 0.0
        %1898 = vmatpush1.xpose.msra.mxu0 0.0
        %1899 = vmatprep.subr.mxu0 0.0
        %1900 = vmatpush1.xpose.msra.mxu0 0.0
        %1901 = vmatprep.subr.mxu0 0.0
        %1902 = vmatpush1.xpose.msra.mxu0 %v1873
        %1903 = vmatprep.subr.mxu0 0.0
        %1904 = vmatpush1.xpose.msra.mxu0 %v1871
        %1905 = vmatprep.subr.mxu0 0.0
        %1906 = vmatpush1.xpose.msra.mxu0 %v1869
        %1907 = vmatprep.subr.mxu0 0.0
        %1908 = vmatpush2.xpose.msra.mxu0 0.0
        %1909 = vmatprep.subr.mxu0 0.0
        %1910 = vmatpush2.xpose.msra.mxu0 0.0
        %1911 = vmatprep.subr.mxu0 0.0
        %1912 = vmatpush2.xpose.msra.mxu0 0.0
        %1913 = vmatprep.subr.mxu0 0.0
        %1914 = vmatpush2.xpose.msra.mxu0 0.0
        %1915 = vmatprep.subr.mxu0 0.0
        %1916 = vmatpush2.xpose.msra.mxu0 0.0
        %1917 = vmatprep.subr.mxu0 0.0
        %1918 = vmatpush2.xpose.msra.mxu0 0.0
        %1919 = vmatprep.subr.mxu0 0.0
        %1920 = vmatpush2.xpose.msra.mxu0 0.0
        %1921 = vmatprep.subr.mxu0 0.0
        %1922 = vmatpush2.xpose.msra.mxu0 0.0
        %1923 = vmatprep.subr.mxu0 0.0
        %1924 = vmatpush2.xpose.msra.mxu0 0.0
        %1925 = vmatprep.subr.mxu0 0.0
        %1926 = vmatpush2.xpose.msra.mxu0 0.0
        %1927 = vmatprep.subr.mxu0 0.0
        %1928 = vmatpush2.xpose.msra.mxu0 0.0
        %1929 = vmatprep.subr.mxu0 0.0
        %1930 = vmatpush2.xpose.msra.mxu0 0.0
        %1931 = vmatprep.subr.mxu0 0.0
        %1932 = vmatpush2.xpose.msra.mxu0 0.0
        %1933 = vmatprep.subr.mxu0 0.0
        %1934 = vmatpush2.xpose.msra.mxu0 0.0
        %1935 = vmatprep.subr.mxu0 0.0
        %1936 = vmatpush2.xpose.msra.mxu0 0.0
        %1937 = vmatprep.subr.mxu0 0.0
        %1938 = vmatpush2.xpose.msra.mxu0 0.0
        %1939 = vmatprep.mubr.f32.mxu0 0.0
        %1940 = vmatmul.mubr.f32.gmra.mxu0 %v1863
        %v1941 = vpop.f32.mrf.mxu0
        %v1942 = vadd.f32 0.0, %v1941
        %v1943 = vpop.f32.mrf.mxu0
        %1944 = vmatprep.mubr.f32.mxu0 0.0
        %1945 = vmatmul.mubr.f32.gmra.mxu0 %v1865
        %v1946 = vpop.f32.mrf.mxu0
        %v1947 = vadd.f32 0.0, %v1946
        %v1948 = vpop.f32.mrf.mxu0
        %1949 = vmatprep.mubr.f32.mxu0 0.0
        %1950 = vmatmul.mubr.f32.gmra.mxu0 %v1867
        %v1951 = vpop.f32.mrf.mxu0
        %v1952 = vadd.f32 0.0, %v1951
        %v1953 = vpop.f32.mrf.mxu0
        %1954 = vdwg.mxu0
        %1958 = vrot.lane.b32.xlu0 %v1836, 64
        %v1959 = vpop.permute.xlu0 %1958
        %1960 = vrot.lane.b32.xlu0 %v1842, 64
        %v1961 = vpop.permute.xlu0 %1960
        %1962 = vrot.lane.b32.xlu0 %v1848, 64
        %v1963 = vpop.permute.xlu0 %1962
        %v1964 = vsel %vm1862, %v1836, 0
        %v1966 = vsel %vm1862, %v1842, 0
        %v1968 = vsel %vm1862, %v1848, 0
        %v1970 = vsel %vm1862, %v1959, 0
        %v1972 = vsel %vm1862, %v1961, 0
        %v1974 = vsel %vm1862, %v1963, 0
        %1976 = vmatprep.subr.mxu0 0.0
        %1977 = vmatpush1.xpose.msra.mxu0 0.0
        %1978 = vmatprep.subr.mxu0 0.0
        %1979 = vmatpush1.xpose.msra.mxu0 0.0
        %1980 = vmatprep.subr.mxu0 0.0
        %1981 = vmatpush1.xpose.msra.mxu0 0.0
        %1982 = vmatprep.subr.mxu0 0.0
        %1983 = vmatpush1.xpose.msra.mxu0 0.0
        %1984 = vmatprep.subr.mxu0 0.0
        %1985 = vmatpush1.xpose.msra.mxu0 0.0
        %1986 = vmatprep.subr.mxu0 0.0
        %1987 = vmatpush1.xpose.msra.mxu0 0.0
        %1988 = vmatprep.subr.mxu0 0.0
        %1989 = vmatpush1.xpose.msra.mxu0 0.0
        %1990 = vmatprep.subr.mxu0 0.0
        %1991 = vmatpush1.xpose.msra.mxu0 0.0
        %1992 = vmatprep.subr.mxu0 0.0
        %1993 = vmatpush1.xpose.msra.mxu0 0.0
        %1994 = vmatprep.subr.mxu0 0.0
        %1995 = vmatpush1.xpose.msra.mxu0 0.0
        %1996 = vmatprep.subr.mxu0 0.0
        %1997 = vmatpush1.xpose.msra.mxu0 0.0
        %1998 = vmatprep.subr.mxu0 0.0
        %1999 = vmatpush1.xpose.msra.mxu0 0.0
        %2000 = vmatprep.subr.mxu0 0.0
        %2001 = vmatpush1.xpose.msra.mxu0 0.0
        %2002 = vmatprep.subr.mxu0 0.0
        %2003 = vmatpush1.xpose.msra.mxu0 %v1974
        %2004 = vmatprep.subr.mxu0 0.0
        %2005 = vmatpush1.xpose.msra.mxu0 %v1972
        %2006 = vmatprep.subr.mxu0 0.0
        %2007 = vmatpush1.xpose.msra.mxu0 %v1970
        %2008 = vmatprep.subr.mxu0 0.0
        %2009 = vmatpush2.xpose.msra.mxu0 0.0
        %2010 = vmatprep.subr.mxu0 0.0
        %2011 = vmatpush2.xpose.msra.mxu0 0.0
        %2012 = vmatprep.subr.mxu0 0.0
        %2013 = vmatpush2.xpose.msra.mxu0 0.0
        %2014 = vmatprep.subr.mxu0 0.0
        %2015 = vmatpush2.xpose.msra.mxu0 0.0
        %2016 = vmatprep.subr.mxu0 0.0
        %2017 = vmatpush2.xpose.msra.mxu0 0.0
        %2018 = vmatprep.subr.mxu0 0.0
        %2019 = vmatpush2.xpose.msra.mxu0 0.0
        %2020 = vmatprep.subr.mxu0 0.0
        %2021 = vmatpush2.xpose.msra.mxu0 0.0
        %2022 = vmatprep.subr.mxu0 0.0
        %2023 = vmatpush2.xpose.msra.mxu0 0.0
        %2024 = vmatprep.subr.mxu0 0.0
        %2025 = vmatpush2.xpose.msra.mxu0 0.0
        %2026 = vmatprep.subr.mxu0 0.0
        %2027 = vmatpush2.xpose.msra.mxu0 0.0
        %2028 = vmatprep.subr.mxu0 0.0
        %2029 = vmatpush2.xpose.msra.mxu0 0.0
        %2030 = vmatprep.subr.mxu0 0.0
        %2031 = vmatpush2.xpose.msra.mxu0 0.0
        %2032 = vmatprep.subr.mxu0 0.0
        %2033 = vmatpush2.xpose.msra.mxu0 0.0
        %2034 = vmatprep.subr.mxu0 0.0
        %2035 = vmatpush2.xpose.msra.mxu0 0.0
        %2036 = vmatprep.subr.mxu0 0.0
        %2037 = vmatpush2.xpose.msra.mxu0 0.0
        %2038 = vmatprep.subr.mxu0 0.0
        %2039 = vmatpush2.xpose.msra.mxu0 0.0
        %2040 = vmatprep.mubr.f32.mxu0 0.0
        %2041 = vmatmul.mubr.f32.gmra.mxu0 %v1964
        %v2042 = vpop.f32.mrf.mxu0
        %v2043 = vadd.f32 0.0, %v2042
        %v2044 = vpop.f32.mrf.mxu0
        %2045 = vmatprep.mubr.f32.mxu0 0.0
        %2046 = vmatmul.mubr.f32.gmra.mxu0 %v1966
        %v2047 = vpop.f32.mrf.mxu0
        %v2048 = vadd.f32 0.0, %v2047
        %v2049 = vpop.f32.mrf.mxu0
        %2050 = vmatprep.mubr.f32.mxu0 0.0
        %2051 = vmatmul.mubr.f32.gmra.mxu0 %v1968
        %v2052 = vpop.f32.mrf.mxu0
        %v2053 = vadd.f32 0.0, %v2052
        %v2054 = vpop.f32.mrf.mxu0
        %2055 = vdwg.mxu0
        %v2056 = vmul.f32 %v1942, 0.25
        %v2057 = vmul.f32 %v1947, 0.25
        %v2058 = vmul.f32 %v1952, 0.25
        %v2059 = vmul.f32 %v2043, 0.25
        %v2060 = vmul.f32 %v2048, 0.25
        %v2061 = vmul.f32 %v2053, 0.25
        %v2063 = vlaneseq
        %v2064 = vshrl.u32 %v2063, 7
        %v2065 = vsub.s32 0, %v2064
        %v2066 = vrot.slane %v1852, %v2065
        %v2068 = vadd.f32 %v2056, %v2066
        %v2069 = vadd.f32 %v2057, %v2066
        %v2070 = vadd.f32 %v2058, %v2066
        %v2071 = vadd.f32 %v2059, %v2066
        %v2072 = vadd.f32 %v2060, %v2066
        %v2073 = vadd.f32 %v2061, %v2066
        %vm2074 = vcmask 195584
        %v2075 = vsel %vm2074, %v2068, -inf
        %2076 = vmax.xlane.f32.xlu0 %v2075
        %v2077 = vpop.xlane.xlu0 %2076
        %v2078 = vsel %vm2074, %v2069, -inf
        %2079 = vmax.xlane.f32.xlu0 %v2078
        %v2080 = vpop.xlane.xlu0 %2079
        %v2081 = vsel %vm2074, %v2070, -inf
        %2082 = vmax.xlane.f32.xlu0 %v2081
        %v2083 = vpop.xlane.xlu0 %2082
        %v2084 = vsel %vm2074, %v2071, -inf
        %2085 = vmax.xlane.f32.xlu0 %v2084
        %v2086 = vpop.xlane.xlu0 %2085
        %v2087 = vsel %vm2074, %v2072, -inf
        %2088 = vmax.xlane.f32.xlu0 %v2087
        %v2089 = vpop.xlane.xlu0 %2088
        %v2090 = vsel %vm2074, %v2073, -inf
        %2091 = vmax.xlane.f32.xlu0 %v2090
        %v2092 = vpop.xlane.xlu0 %2091
        %v2093 = vsub.f32 %v2068, %v2077
        %v2094 = vsub.f32 %v2069, %v2080
        %v2095 = vsub.f32 %v2070, %v2083
        %v2096 = vsub.f32 %v2071, %v2086
        %v2097 = vsub.f32 %v2072, %v2089
        %v2098 = vsub.f32 %v2073, %v2092
        %v2099 = vmul.f32 %v2093, 1.442695
        %v2100 = vpow.pop %v2099
        %v2101 = vmul.f32 %v2094, 1.442695
        %v2102 = vpow.pop %v2101
        %v2103 = vmul.f32 %v2095, 1.442695
        %v2104 = vpow.pop %v2103
        %v2105 = vmul.f32 %v2096, 1.442695
        %v2106 = vpow.pop %v2105
        %v2107 = vmul.f32 %v2097, 1.442695
        %v2108 = vpow.pop %v2107
        %v2109 = vmul.f32 %v2098, 1.442695
        %v2110 = vpow.pop %v2109
        %v2111 = vsel %vm2074, %v2100, 0.0
        %2112 = vadd.xlane.f32.xlu0 %v2111
        %v2113 = vpop.xlane.xlu0 %2112
        %v2114 = vsel %vm2074, %v2102, 0.0
        %2115 = vadd.xlane.f32.xlu0 %v2114
        %v2116 = vpop.xlane.xlu0 %2115
        %v2117 = vsel %vm2074, %v2104, 0.0
        %2118 = vadd.xlane.f32.xlu0 %v2117
        %v2119 = vpop.xlane.xlu0 %2118
        %v2120 = vsel %vm2074, %v2106, 0.0
        %2121 = vadd.xlane.f32.xlu0 %v2120
        %v2122 = vpop.xlane.xlu0 %2121
        %v2123 = vsel %vm2074, %v2108, 0.0
        %2124 = vadd.xlane.f32.xlu0 %v2123
        %v2125 = vpop.xlane.xlu0 %2124
        %v2126 = vsel %vm2074, %v2110, 0.0
        %2127 = vadd.xlane.f32.xlu0 %v2126
        %v2128 = vpop.xlane.xlu0 %2127
        %v2129 = vrcp.pop %v2113
        %v2130 = vrcp.pop %v2116
        %v2131 = vrcp.pop %v2119
        %v2132 = vrcp.pop %v2122
        %v2133 = vrcp.pop %v2125
        %v2134 = vrcp.pop %v2128
        %v2135 = vmul.f32 %v2100, %v2129
        %v2136 = vmul.f32 %v2102, %v2130
        %v2137 = vmul.f32 %v2104, %v2131
        %v2138 = vmul.f32 %v2106, %v2132
        %v2139 = vmul.f32 %v2108, %v2133
        %v2140 = vmul.f32 %v2110, %v2134
        %v2142 = vsel %vm2074, %v2135, 0
        %v2145 = vsel %vm2074, %v2136, 0
        %v2148 = vsel %vm2074, %v2137, 0
        %2150 = vmatprep.subr.mxu0 0.0
        %2151 = vmatpush1.msra.mxu0 0.0
        %2152 = vmatprep.subr.mxu0 0.0
        %2153 = vmatpush1.msra.mxu0 0.0
        %2154 = vmatprep.subr.mxu0 0.0
        %2155 = vmatpush1.msra.mxu0 0.0
        %2156 = vmatprep.subr.mxu0 0.0
        %2157 = vmatpush1.msra.mxu0 0.0
        %2158 = vmatprep.subr.mxu0 0.0
        %2159 = vmatpush1.msra.mxu0 0.0
        %2160 = vmatprep.subr.mxu0 0.0
        %2161 = vmatpush1.msra.mxu0 0.0
        %2162 = vmatprep.subr.mxu0 0.0
        %2163 = vmatpush1.msra.mxu0 0.0
        %2164 = vmatprep.subr.mxu0 0.0
        %2165 = vmatpush1.msra.mxu0 0.0
        %2166 = vmatprep.subr.mxu0 0.0
        %2167 = vmatpush1.msra.mxu0 0.0
        %2168 = vmatprep.subr.mxu0 0.0
        %2169 = vmatpush1.msra.mxu0 0.0
        %2170 = vmatprep.subr.mxu0 0.0
        %2171 = vmatpush1.msra.mxu0 0.0
        %2172 = vmatprep.subr.mxu0 0.0
        %2173 = vmatpush1.msra.mxu0 0.0
        %2174 = vmatprep.subr.mxu0 0.0
        %2175 = vmatpush1.msra.mxu0 0.0
        %2176 = vmatprep.subr.mxu0 0.0
        %2177 = vmatpush1.msra.mxu0 %v1832
        %2178 = vmatprep.subr.mxu0 0.0
        %2179 = vmatpush1.msra.mxu0 %v1826
        %2180 = vmatprep.subr.mxu0 0.0
        %2181 = vmatpush1.msra.mxu0 %v1820
        %2182 = vmatprep.subr.mxu0 0.0
        %2183 = vmatpush2.msra.mxu0 0.0
        %2184 = vmatprep.subr.mxu0 0.0
        %2185 = vmatpush2.msra.mxu0 0.0
        %2186 = vmatprep.subr.mxu0 0.0
        %2187 = vmatpush2.msra.mxu0 0.0
        %2188 = vmatprep.subr.mxu0 0.0
        %2189 = vmatpush2.msra.mxu0 0.0
        %2190 = vmatprep.subr.mxu0 0.0
        %2191 = vmatpush2.msra.mxu0 0.0
        %2192 = vmatprep.subr.mxu0 0.0
        %2193 = vmatpush2.msra.mxu0 0.0
        %2194 = vmatprep.subr.mxu0 0.0
        %2195 = vmatpush2.msra.mxu0 0.0
        %2196 = vmatprep.subr.mxu0 0.0
        %2197 = vmatpush2.msra.mxu0 0.0
        %2198 = vmatprep.subr.mxu0 0.0
        %2199 = vmatpush2.msra.mxu0 0.0
        %2200 = vmatprep.subr.mxu0 0.0
        %2201 = vmatpush2.msra.mxu0 0.0
        %2202 = vmatprep.subr.mxu0 0.0
        %2203 = vmatpush2.msra.mxu0 0.0
        %2204 = vmatprep.subr.mxu0 0.0
        %2205 = vmatpush2.msra.mxu0 0.0
        %2206 = vmatprep.subr.mxu0 0.0
        %2207 = vmatpush2.msra.mxu0 0.0
        %2208 = vmatprep.subr.mxu0 0.0
        %2209 = vmatpush2.msra.mxu0 0.0
        %2210 = vmatprep.subr.mxu0 0.0
        %2211 = vmatpush2.msra.mxu0 0.0
        %2212 = vmatprep.subr.mxu0 0.0
        %2213 = vmatpush2.msra.mxu0 0.0
        %2214 = vmatprep.mubr.f32.mxu0 0.0
        %2215 = vmatmul.mubr.f32.gmra.mxu0 %v2142
        %v2216 = vpop.f32.mrf.mxu0
        %v2217 = vadd.f32 0.0, %v2216
        %v2218 = vpop.f32.mrf.mxu0
        %2219 = vmatprep.mubr.f32.mxu0 0.0
        %2220 = vmatmul.mubr.f32.gmra.mxu0 %v2145
        %v2221 = vpop.f32.mrf.mxu0
        %v2222 = vadd.f32 0.0, %v2221
        %v2223 = vpop.f32.mrf.mxu0
        %2224 = vmatprep.mubr.f32.mxu0 0.0
        %2225 = vmatmul.mubr.f32.gmra.mxu0 %v2148
        %v2226 = vpop.f32.mrf.mxu0
        %v2227 = vadd.f32 0.0, %v2226
        %v2228 = vpop.f32.mrf.mxu0
        %2229 = vdwg.mxu0
        %v2231 = vsel %vm2074, %v2138, 0
        %v2234 = vsel %vm2074, %v2139, 0
        %v2237 = vsel %vm2074, %v2140, 0
        %2239 = vmatprep.subr.mxu0 0.0
        %2240 = vmatpush1.msra.mxu0 0.0
        %2241 = vmatprep.subr.mxu0 0.0
        %2242 = vmatpush1.msra.mxu0 0.0
        %2243 = vmatprep.subr.mxu0 0.0
        %2244 = vmatpush1.msra.mxu0 0.0
        %2245 = vmatprep.subr.mxu0 0.0
        %2246 = vmatpush1.msra.mxu0 0.0
        %2247 = vmatprep.subr.mxu0 0.0
        %2248 = vmatpush1.msra.mxu0 0.0
        %2249 = vmatprep.subr.mxu0 0.0
        %2250 = vmatpush1.msra.mxu0 0.0
        %2251 = vmatprep.subr.mxu0 0.0
        %2252 = vmatpush1.msra.mxu0 0.0
        %2253 = vmatprep.subr.mxu0 0.0
        %2254 = vmatpush1.msra.mxu0 0.0
        %2255 = vmatprep.subr.mxu0 0.0
        %2256 = vmatpush1.msra.mxu0 0.0
        %2257 = vmatprep.subr.mxu0 0.0
        %2258 = vmatpush1.msra.mxu0 0.0
        %2259 = vmatprep.subr.mxu0 0.0
        %2260 = vmatpush1.msra.mxu0 0.0
        %2261 = vmatprep.subr.mxu0 0.0
        %2262 = vmatpush1.msra.mxu0 0.0
        %2263 = vmatprep.subr.mxu0 0.0
        %2264 = vmatpush1.msra.mxu0 0.0
        %2265 = vmatprep.subr.mxu0 0.0
        %2266 = vmatpush1.msra.mxu0 %v1850
        %2267 = vmatprep.subr.mxu0 0.0
        %2268 = vmatpush1.msra.mxu0 %v1844
        %2269 = vmatprep.subr.mxu0 0.0
        %2270 = vmatpush1.msra.mxu0 %v1838
        %2271 = vmatprep.subr.mxu0 0.0
        %2272 = vmatpush2.msra.mxu0 0.0
        %2273 = vmatprep.subr.mxu0 0.0
        %2274 = vmatpush2.msra.mxu0 0.0
        %2275 = vmatprep.subr.mxu0 0.0
        %2276 = vmatpush2.msra.mxu0 0.0
        %2277 = vmatprep.subr.mxu0 0.0
        %2278 = vmatpush2.msra.mxu0 0.0
        %2279 = vmatprep.subr.mxu0 0.0
        %2280 = vmatpush2.msra.mxu0 0.0
        %2281 = vmatprep.subr.mxu0 0.0
        %2282 = vmatpush2.msra.mxu0 0.0
        %2283 = vmatprep.subr.mxu0 0.0
        %2284 = vmatpush2.msra.mxu0 0.0
        %2285 = vmatprep.subr.mxu0 0.0
        %2286 = vmatpush2.msra.mxu0 0.0
        %2287 = vmatprep.subr.mxu0 0.0
        %2288 = vmatpush2.msra.mxu0 0.0
        %2289 = vmatprep.subr.mxu0 0.0
        %2290 = vmatpush2.msra.mxu0 0.0
        %2291 = vmatprep.subr.mxu0 0.0
        %2292 = vmatpush2.msra.mxu0 0.0
        %2293 = vmatprep.subr.mxu0 0.0
        %2294 = vmatpush2.msra.mxu0 0.0
        %2295 = vmatprep.subr.mxu0 0.0
        %2296 = vmatpush2.msra.mxu0 0.0
        %2297 = vmatprep.subr.mxu0 0.0
        %2298 = vmatpush2.msra.mxu0 0.0
        %2299 = vmatprep.subr.mxu0 0.0
        %2300 = vmatpush2.msra.mxu0 0.0
        %2301 = vmatprep.subr.mxu0 0.0
        %2302 = vmatpush2.msra.mxu0 0.0
        %2303 = vmatprep.mubr.f32.mxu0 0.0
        %2304 = vmatmul.mubr.f32.gmra.mxu0 %v2231
        %v2305 = vpop.f32.mrf.mxu0
        %v2306 = vadd.f32 0.0, %v2305
        %v2307 = vpop.f32.mrf.mxu0
        %2308 = vmatprep.mubr.f32.mxu0 0.0
        %2309 = vmatmul.mubr.f32.gmra.mxu0 %v2234
        %v2310 = vpop.f32.mrf.mxu0
        %v2311 = vadd.f32 0.0, %v2310
        %v2312 = vpop.f32.mrf.mxu0
        %2313 = vmatprep.mubr.f32.mxu0 0.0
        %2314 = vmatmul.mubr.f32.gmra.mxu0 %v2237
        %v2315 = vpop.f32.mrf.mxu0
        %v2316 = vadd.f32 0.0, %v2315
        %v2317 = vpop.f32.mrf.mxu0
        %2318 = vdwg.mxu0
        %2319 = vrot.lane.b32.xlu0 %v1818, 112
        %v2320 = vpop.permute.xlu0 %2319
        %2321 = vrot.lane.b32.xlu0 %v1824, 112
        %v2322 = vpop.permute.xlu0 %2321
        %2323 = vrot.lane.b32.xlu0 %v1830, 112
        %v2324 = vpop.permute.xlu0 %2323
        %2325 = vrot.lane.b32.xlu0 %v1818, 48
        %v2326 = vpop.permute.xlu0 %2325
        %2327 = vrot.lane.b32.xlu0 %v1824, 48
        %v2328 = vpop.permute.xlu0 %2327
        %2329 = vrot.lane.b32.xlu0 %v1830, 48
        %v2330 = vpop.permute.xlu0 %2329
        %v2331 = vsel %vm1862, %v2320, 0
        %v2333 = vsel %vm1862, %v2322, 0
        %v2335 = vsel %vm1862, %v2324, 0
        %v2337 = vsel %vm1862, %v2326, 0
        %v2339 = vsel %vm1862, %v2328, 0
        %v2341 = vsel %vm1862, %v2330, 0
        %2343 = vmatprep.subr.mxu0 0.0
        %2344 = vmatpush1.xpose.msra.mxu0 0.0
        %2345 = vmatprep.subr.mxu0 0.0
        %2346 = vmatpush1.xpose.msra.mxu0 0.0
        %2347 = vmatprep.subr.mxu0 0.0
        %2348 = vmatpush1.xpose.msra.mxu0 0.0
        %2349 = vmatprep.subr.mxu0 0.0
        %2350 = vmatpush1.xpose.msra.mxu0 0.0
        %2351 = vmatprep.subr.mxu0 0.0
        %2352 = vmatpush1.xpose.msra.mxu0 0.0
        %2353 = vmatprep.subr.mxu0 0.0
        %2354 = vmatpush1.xpose.msra.mxu0 0.0
        %2355 = vmatprep.subr.mxu0 0.0
        %2356 = vmatpush1.xpose.msra.mxu0 0.0
        %2357 = vmatprep.subr.mxu0 0.0
        %2358 = vmatpush1.xpose.msra.mxu0 0.0
        %2359 = vmatprep.subr.mxu0 0.0
        %2360 = vmatpush1.xpose.msra.mxu0 0.0
        %2361 = vmatprep.subr.mxu0 0.0
        %2362 = vmatpush1.xpose.msra.mxu0 0.0
        %2363 = vmatprep.subr.mxu0 0.0
        %2364 = vmatpush1.xpose.msra.mxu0 0.0
        %2365 = vmatprep.subr.mxu0 0.0
        %2366 = vmatpush1.xpose.msra.mxu0 0.0
        %2367 = vmatprep.subr.mxu0 0.0
        %2368 = vmatpush1.xpose.msra.mxu0 0.0
        %2369 = vmatprep.subr.mxu0 0.0
        %2370 = vmatpush1.xpose.msra.mxu0 %v2341
        %2371 = vmatprep.subr.mxu0 0.0
        %2372 = vmatpush1.xpose.msra.mxu0 %v2339
        %2373 = vmatprep.subr.mxu0 0.0
        %2374 = vmatpush1.xpose.msra.mxu0 %v2337
        %2375 = vmatprep.subr.mxu0 0.0
        %2376 = vmatpush2.xpose.msra.mxu0 0.0
        %2377 = vmatprep.subr.mxu0 0.0
        %2378 = vmatpush2.xpose.msra.mxu0 0.0
        %2379 = vmatprep.subr.mxu0 0.0
        %2380 = vmatpush2.xpose.msra.mxu0 0.0
        %2381 = vmatprep.subr.mxu0 0.0
        %2382 = vmatpush2.xpose.msra.mxu0 0.0
        %2383 = vmatprep.subr.mxu0 0.0
        %2384 = vmatpush2.xpose.msra.mxu0 0.0
        %2385 = vmatprep.subr.mxu0 0.0
        %2386 = vmatpush2.xpose.msra.mxu0 0.0
        %2387 = vmatprep.subr.mxu0 0.0
        %2388 = vmatpush2.xpose.msra.mxu0 0.0
        %2389 = vmatprep.subr.mxu0 0.0
        %2390 = vmatpush2.xpose.msra.mxu0 0.0
        %2391 = vmatprep.subr.mxu0 0.0
        %2392 = vmatpush2.xpose.msra.mxu0 0.0
        %2393 = vmatprep.subr.mxu0 0.0
        %2394 = vmatpush2.xpose.msra.mxu0 0.0
        %2395 = vmatprep.subr.mxu0 0.0
        %2396 = vmatpush2.xpose.msra.mxu0 0.0
        %2397 = vmatprep.subr.mxu0 0.0
        %2398 = vmatpush2.xpose.msra.mxu0 0.0
        %2399 = vmatprep.subr.mxu0 0.0
        %2400 = vmatpush2.xpose.msra.mxu0 0.0
        %2401 = vmatprep.subr.mxu0 0.0
        %2402 = vmatpush2.xpose.msra.mxu0 0.0
        %2403 = vmatprep.subr.mxu0 0.0
        %2404 = vmatpush2.xpose.msra.mxu0 0.0
        %2405 = vmatprep.subr.mxu0 0.0
        %2406 = vmatpush2.xpose.msra.mxu0 0.0
        %2407 = vmatprep.mubr.f32.mxu0 0.0
        %2408 = vmatmul.mubr.f32.gmra.mxu0 %v2331
        %v2409 = vpop.f32.mrf.mxu0
        %v2410 = vadd.f32 0.0, %v2409
        %v2411 = vpop.f32.mrf.mxu0
        %2412 = vmatprep.mubr.f32.mxu0 0.0
        %2413 = vmatmul.mubr.f32.gmra.mxu0 %v2333
        %v2414 = vpop.f32.mrf.mxu0
        %v2415 = vadd.f32 0.0, %v2414
        %v2416 = vpop.f32.mrf.mxu0
        %2417 = vmatprep.mubr.f32.mxu0 0.0
        %2418 = vmatmul.mubr.f32.gmra.mxu0 %v2335
        %v2419 = vpop.f32.mrf.mxu0
        %v2420 = vadd.f32 0.0, %v2419
        %v2421 = vpop.f32.mrf.mxu0
        %2422 = vdwg.mxu0
        %2423 = vrot.lane.b32.xlu0 %v1836, 112
        %v2424 = vpop.permute.xlu0 %2423
        %2425 = vrot.lane.b32.xlu0 %v1842, 112
        %v2426 = vpop.permute.xlu0 %2425
        %2427 = vrot.lane.b32.xlu0 %v1848, 112
        %v2428 = vpop.permute.xlu0 %2427
        %2429 = vrot.lane.b32.xlu0 %v1836, 48
        %v2430 = vpop.permute.xlu0 %2429
        %2431 = vrot.lane.b32.xlu0 %v1842, 48
        %v2432 = vpop.permute.xlu0 %2431
        %2433 = vrot.lane.b32.xlu0 %v1848, 48
        %v2434 = vpop.permute.xlu0 %2433
        %v2435 = vsel %vm1862, %v2424, 0
        %v2437 = vsel %vm1862, %v2426, 0
        %v2439 = vsel %vm1862, %v2428, 0
        %v2441 = vsel %vm1862, %v2430, 0
        %v2443 = vsel %vm1862, %v2432, 0
        %v2445 = vsel %vm1862, %v2434, 0
        %2447 = vmatprep.subr.mxu0 0.0
        %2448 = vmatpush1.xpose.msra.mxu0 0.0
        %2449 = vmatprep.subr.mxu0 0.0
        %2450 = vmatpush1.xpose.msra.mxu0 0.0
        %2451 = vmatprep.subr.mxu0 0.0
        %2452 = vmatpush1.xpose.msra.mxu0 0.0
        %2453 = vmatprep.subr.mxu0 0.0
        %2454 = vmatpush1.xpose.msra.mxu0 0.0
        %2455 = vmatprep.subr.mxu0 0.0
        %2456 = vmatpush1.xpose.msra.mxu0 0.0
        %2457 = vmatprep.subr.mxu0 0.0
        %2458 = vmatpush1.xpose.msra.mxu0 0.0
        %2459 = vmatprep.subr.mxu0 0.0
        %2460 = vmatpush1.xpose.msra.mxu0 0.0
        %2461 = vmatprep.subr.mxu0 0.0
        %2462 = vmatpush1.xpose.msra.mxu0 0.0
        %2463 = vmatprep.subr.mxu0 0.0
        %2464 = vmatpush1.xpose.msra.mxu0 0.0
        %2465 = vmatprep.subr.mxu0 0.0
        %2466 = vmatpush1.xpose.msra.mxu0 0.0
        %2467 = vmatprep.subr.mxu0 0.0
        %2468 = vmatpush1.xpose.msra.mxu0 0.0
        %2469 = vmatprep.subr.mxu0 0.0
        %2470 = vmatpush1.xpose.msra.mxu0 0.0
        %2471 = vmatprep.subr.mxu0 0.0
        %2472 = vmatpush1.xpose.msra.mxu0 0.0
        %2473 = vmatprep.subr.mxu0 0.0
        %2474 = vmatpush1.xpose.msra.mxu0 %v2445
        %2475 = vmatprep.subr.mxu0 0.0
        %2476 = vmatpush1.xpose.msra.mxu0 %v2443
        %2477 = vmatprep.subr.mxu0 0.0
        %2478 = vmatpush1.xpose.msra.mxu0 %v2441
        %2479 = vmatprep.subr.mxu0 0.0
        %2480 = vmatpush2.xpose.msra.mxu0 0.0
        %2481 = vmatprep.subr.mxu0 0.0
        %2482 = vmatpush2.xpose.msra.mxu0 0.0
        %2483 = vmatprep.subr.mxu0 0.0
        %2484 = vmatpush2.xpose.msra.mxu0 0.0
        %2485 = vmatprep.subr.mxu0 0.0
        %2486 = vmatpush2.xpose.msra.mxu0 0.0
        %2487 = vmatprep.subr.mxu0 0.0
        %2488 = vmatpush2.xpose.msra.mxu0 0.0
        %2489 = vmatprep.subr.mxu0 0.0
        %2490 = vmatpush2.xpose.msra.mxu0 0.0
        %2491 = vmatprep.subr.mxu0 0.0
        %2492 = vmatpush2.xpose.msra.mxu0 0.0
        %2493 = vmatprep.subr.mxu0 0.0
        %2494 = vmatpush2.xpose.msra.mxu0 0.0
        %2495 = vmatprep.subr.mxu0 0.0
        %2496 = vmatpush2.xpose.msra.mxu0 0.0
        %2497 = vmatprep.subr.mxu0 0.0
        %2498 = vmatpush2.xpose.msra.mxu0 0.0
        %2499 = vmatprep.subr.mxu0 0.0
        %2500 = vmatpush2.xpose.msra.mxu0 0.0
        %2501 = vmatprep.subr.mxu0 0.0
        %2502 = vmatpush2.xpose.msra.mxu0 0.0
        %2503 = vmatprep.subr.mxu0 0.0
        %2504 = vmatpush2.xpose.msra.mxu0 0.0
        %2505 = vmatprep.subr.mxu0 0.0
        %2506 = vmatpush2.xpose.msra.mxu0 0.0
        %2507 = vmatprep.subr.mxu0 0.0
        %2508 = vmatpush2.xpose.msra.mxu0 0.0
        %2509 = vmatprep.subr.mxu0 0.0
        %2510 = vmatpush2.xpose.msra.mxu0 0.0
        %2511 = vmatprep.mubr.f32.mxu0 0.0
        %2512 = vmatmul.mubr.f32.gmra.mxu0 %v2435
        %v2513 = vpop.f32.mrf.mxu0
        %v2514 = vadd.f32 0.0, %v2513
        %v2515 = vpop.f32.mrf.mxu0
        %2516 = vmatprep.mubr.f32.mxu0 0.0
        %2517 = vmatmul.mubr.f32.gmra.mxu0 %v2437
        %v2518 = vpop.f32.mrf.mxu0
        %v2519 = vadd.f32 0.0, %v2518
        %v2520 = vpop.f32.mrf.mxu0
        %2521 = vmatprep.mubr.f32.mxu0 0.0
        %2522 = vmatmul.mubr.f32.gmra.mxu0 %v2439
        %v2523 = vpop.f32.mrf.mxu0
        %v2524 = vadd.f32 0.0, %v2523
        %v2525 = vpop.f32.mrf.mxu0
        %2526 = vdwg.mxu0
        %v2527 = vmul.f32 %v2410, 0.25
        %v2528 = vmul.f32 %v2415, 0.25
        %v2529 = vmul.f32 %v2420, 0.25
        %v2530 = vmul.f32 %v2514, 0.25
        %v2531 = vmul.f32 %v2519, 0.25
        %v2532 = vmul.f32 %v2524, 0.25
        %v2533 = vadd.f32 %v2527, %v2066
        %v2534 = vadd.f32 %v2528, %v2066
        %v2535 = vadd.f32 %v2529, %v2066
        %v2536 = vadd.f32 %v2530, %v2066
        %v2537 = vadd.f32 %v2531, %v2066
        %v2538 = vadd.f32 %v2532, %v2066
        %v2539 = vsel %vm2074, %v2533, -inf
        %2540 = vmax.xlane.f32.xlu0 %v2539
        %v2541 = vpop.xlane.xlu0 %2540
        %v2542 = vsel %vm2074, %v2534, -inf
        %2543 = vmax.xlane.f32.xlu0 %v2542
        %v2544 = vpop.xlane.xlu0 %2543
        %v2545 = vsel %vm2074, %v2535, -inf
        %2546 = vmax.xlane.f32.xlu0 %v2545
        %v2547 = vpop.xlane.xlu0 %2546
        %v2548 = vsel %vm2074, %v2536, -inf
        %2549 = vmax.xlane.f32.xlu0 %v2548
        %v2550 = vpop.xlane.xlu0 %2549
        %v2551 = vsel %vm2074, %v2537, -inf
        %2552 = vmax.xlane.f32.xlu0 %v2551
        %v2553 = vpop.xlane.xlu0 %2552
        %v2554 = vsel %vm2074, %v2538, -inf
        %2555 = vmax.xlane.f32.xlu0 %v2554
        %v2556 = vpop.xlane.xlu0 %2555
        %v2557 = vsub.f32 %v2533, %v2541
        %v2558 = vsub.f32 %v2534, %v2544
        %v2559 = vsub.f32 %v2535, %v2547
        %v2560 = vsub.f32 %v2536, %v2550
        %v2561 = vsub.f32 %v2537, %v2553
        %v2562 = vsub.f32 %v2538, %v2556
        %v2563 = vmul.f32 %v2557, 1.442695
        %v2564 = vpow.pop %v2563
        %v2565 = vmul.f32 %v2558, 1.442695
        %v2566 = vpow.pop %v2565
        %v2567 = vmul.f32 %v2559, 1.442695
        %v2568 = vpow.pop %v2567
        %v2569 = vmul.f32 %v2560, 1.442695
        %v2570 = vpow.pop %v2569
        %v2571 = vmul.f32 %v2561, 1.442695
        %v2572 = vpow.pop %v2571
        %v2573 = vmul.f32 %v2562, 1.442695
        %v2574 = vpow.pop %v2573
        %v2575 = vsel %vm2074, %v2564, 0.0
        %2576 = vadd.xlane.f32.xlu0 %v2575
        %v2577 = vpop.xlane.xlu0 %2576
        %v2578 = vsel %vm2074, %v2566, 0.0
        %2579 = vadd.xlane.f32.xlu0 %v2578
        %v2580 = vpop.xlane.xlu0 %2579
        %v2581 = vsel %vm2074, %v2568, 0.0
        %2582 = vadd.xlane.f32.xlu0 %v2581
        %v2583 = vpop.xlane.xlu0 %2582
        %v2584 = vsel %vm2074, %v2570, 0.0
        %2585 = vadd.xlane.f32.xlu0 %v2584
        %v2586 = vpop.xlane.xlu0 %2585
        %v2587 = vsel %vm2074, %v2572, 0.0
        %2588 = vadd.xlane.f32.xlu0 %v2587
        %v2589 = vpop.xlane.xlu0 %2588
        %v2590 = vsel %vm2074, %v2574, 0.0
        %2591 = vadd.xlane.f32.xlu0 %v2590
        %v2592 = vpop.xlane.xlu0 %2591
        %v2593 = vrcp.pop %v2577
        %v2594 = vrcp.pop %v2580
        %v2595 = vrcp.pop %v2583
        %v2596 = vrcp.pop %v2586
        %v2597 = vrcp.pop %v2589
        %v2598 = vrcp.pop %v2592
        %v2599 = vmul.f32 %v2564, %v2593
        %v2600 = vmul.f32 %v2566, %v2594
        %v2601 = vmul.f32 %v2568, %v2595
        %v2602 = vmul.f32 %v2570, %v2596
        %v2603 = vmul.f32 %v2572, %v2597
        %v2604 = vmul.f32 %v2574, %v2598
        %2608 = vrot.lane.b32.xlu0 %v1820, 112
        %v2609 = vpop.permute.xlu0 %2608
        %2610 = vrot.lane.b32.xlu0 %v1826, 112
        %v2611 = vpop.permute.xlu0 %2610
        %2612 = vrot.lane.b32.xlu0 %v1832, 112
        %v2613 = vpop.permute.xlu0 %2612
        %v2618 = vsel %vm2074, %v2599, 0
        %v2621 = vsel %vm2074, %v2600, 0
        %v2624 = vsel %vm2074, %v2601, 0
        %2626 = vmatprep.subr.mxu0 0.0
        %2627 = vmatpush1.msra.mxu0 0.0
        %2628 = vmatprep.subr.mxu0 0.0
        %2629 = vmatpush1.msra.mxu0 0.0
        %2630 = vmatprep.subr.mxu0 0.0
        %2631 = vmatpush1.msra.mxu0 0.0
        %2632 = vmatprep.subr.mxu0 0.0
        %2633 = vmatpush1.msra.mxu0 0.0
        %2634 = vmatprep.subr.mxu0 0.0
        %2635 = vmatpush1.msra.mxu0 0.0
        %2636 = vmatprep.subr.mxu0 0.0
        %2637 = vmatpush1.msra.mxu0 0.0
        %2638 = vmatprep.subr.mxu0 0.0
        %2639 = vmatpush1.msra.mxu0 0.0
        %2640 = vmatprep.subr.mxu0 0.0
        %2641 = vmatpush1.msra.mxu0 0.0
        %2642 = vmatprep.subr.mxu0 0.0
        %2643 = vmatpush1.msra.mxu0 0.0
        %2644 = vmatprep.subr.mxu0 0.0
        %2645 = vmatpush1.msra.mxu0 0.0
        %2646 = vmatprep.subr.mxu0 0.0
        %2647 = vmatpush1.msra.mxu0 0.0
        %2648 = vmatprep.subr.mxu0 0.0
        %2649 = vmatpush1.msra.mxu0 0.0
        %2650 = vmatprep.subr.mxu0 0.0
        %2651 = vmatpush1.msra.mxu0 0.0
        %2652 = vmatprep.subr.mxu0 0.0
        %2653 = vmatpush1.msra.mxu0 %v2613
        %2654 = vmatprep.subr.mxu0 0.0
        %2655 = vmatpush1.msra.mxu0 %v2611
        %2656 = vmatprep.subr.mxu0 0.0
        %2657 = vmatpush1.msra.mxu0 %v2609
        %2658 = vmatprep.subr.mxu0 0.0
        %2659 = vmatpush2.msra.mxu0 0.0
        %2660 = vmatprep.subr.mxu0 0.0
        %2661 = vmatpush2.msra.mxu0 0.0
        %2662 = vmatprep.subr.mxu0 0.0
        %2663 = vmatpush2.msra.mxu0 0.0
        %2664 = vmatprep.subr.mxu0 0.0
        %2665 = vmatpush2.msra.mxu0 0.0
        %2666 = vmatprep.subr.mxu0 0.0
        %2667 = vmatpush2.msra.mxu0 0.0
        %2668 = vmatprep.subr.mxu0 0.0
        %2669 = vmatpush2.msra.mxu0 0.0
        %2670 = vmatprep.subr.mxu0 0.0
        %2671 = vmatpush2.msra.mxu0 0.0
        %2672 = vmatprep.subr.mxu0 0.0
        %2673 = vmatpush2.msra.mxu0 0.0
        %2674 = vmatprep.subr.mxu0 0.0
        %2675 = vmatpush2.msra.mxu0 0.0
        %2676 = vmatprep.subr.mxu0 0.0
        %2677 = vmatpush2.msra.mxu0 0.0
        %2678 = vmatprep.subr.mxu0 0.0
        %2679 = vmatpush2.msra.mxu0 0.0
        %2680 = vmatprep.subr.mxu0 0.0
        %2681 = vmatpush2.msra.mxu0 0.0
        %2682 = vmatprep.subr.mxu0 0.0
        %2683 = vmatpush2.msra.mxu0 0.0
        %2684 = vmatprep.subr.mxu0 0.0
        %2685 = vmatpush2.msra.mxu0 0.0
        %2686 = vmatprep.subr.mxu0 0.0
        %2687 = vmatpush2.msra.mxu0 0.0
        %2688 = vmatprep.subr.mxu0 0.0
        %2689 = vmatpush2.msra.mxu0 0.0
        %2690 = vmatprep.mubr.f32.mxu0 0.0
        %2691 = vmatmul.mubr.f32.gmra.mxu0 %v2618
        %v2692 = vpop.f32.mrf.mxu0
        %v2693 = vadd.f32 0.0, %v2692
        %v2694 = vpop.f32.mrf.mxu0
        %2695 = vmatprep.mubr.f32.mxu0 0.0
        %2696 = vmatmul.mubr.f32.gmra.mxu0 %v2621
        %v2697 = vpop.f32.mrf.mxu0
        %v2698 = vadd.f32 0.0, %v2697
        %v2699 = vpop.f32.mrf.mxu0
        %2700 = vmatprep.mubr.f32.mxu0 0.0
        %2701 = vmatmul.mubr.f32.gmra.mxu0 %v2624
        %v2702 = vpop.f32.mrf.mxu0
        %v2703 = vadd.f32 0.0, %v2702
        %v2704 = vpop.f32.mrf.mxu0
        %2705 = vdwg.mxu0
        %2709 = vrot.lane.b32.xlu0 %v1838, 112
        %v2710 = vpop.permute.xlu0 %2709
        %2711 = vrot.lane.b32.xlu0 %v1844, 112
        %v2712 = vpop.permute.xlu0 %2711
        %2713 = vrot.lane.b32.xlu0 %v1850, 112
        %v2714 = vpop.permute.xlu0 %2713
        %v2719 = vsel %vm2074, %v2602, 0
        %v2722 = vsel %vm2074, %v2603, 0
        %v2725 = vsel %vm2074, %v2604, 0
        %2727 = vmatprep.subr.mxu0 0.0
        %2728 = vmatpush1.msra.mxu0 0.0
        %2729 = vmatprep.subr.mxu0 0.0
        %2730 = vmatpush1.msra.mxu0 0.0
        %2731 = vmatprep.subr.mxu0 0.0
        %2732 = vmatpush1.msra.mxu0 0.0
        %2733 = vmatprep.subr.mxu0 0.0
        %2734 = vmatpush1.msra.mxu0 0.0
        %2735 = vmatprep.subr.mxu0 0.0
        %2736 = vmatpush1.msra.mxu0 0.0
        %2737 = vmatprep.subr.mxu0 0.0
        %2738 = vmatpush1.msra.mxu0 0.0
        %2739 = vmatprep.subr.mxu0 0.0
        %2740 = vmatpush1.msra.mxu0 0.0
        %2741 = vmatprep.subr.mxu0 0.0
        %2742 = vmatpush1.msra.mxu0 0.0
        %2743 = vmatprep.subr.mxu0 0.0
        %2744 = vmatpush1.msra.mxu0 0.0
        %2745 = vmatprep.subr.mxu0 0.0
        %2746 = vmatpush1.msra.mxu0 0.0
        %2747 = vmatprep.subr.mxu0 0.0
        %2748 = vmatpush1.msra.mxu0 0.0
        %2749 = vmatprep.subr.mxu0 0.0
        %2750 = vmatpush1.msra.mxu0 0.0
        %2751 = vmatprep.subr.mxu0 0.0
        %2752 = vmatpush1.msra.mxu0 0.0
        %2753 = vmatprep.subr.mxu0 0.0
        %2754 = vmatpush1.msra.mxu0 %v2714
        %2755 = vmatprep.subr.mxu0 0.0
        %2756 = vmatpush1.msra.mxu0 %v2712
        %2757 = vmatprep.subr.mxu0 0.0
        %2758 = vmatpush1.msra.mxu0 %v2710
        %2759 = vmatprep.subr.mxu0 0.0
        %2760 = vmatpush2.msra.mxu0 0.0
        %2761 = vmatprep.subr.mxu0 0.0
        %2762 = vmatpush2.msra.mxu0 0.0
        %2763 = vmatprep.subr.mxu0 0.0
        %2764 = vmatpush2.msra.mxu0 0.0
        %2765 = vmatprep.subr.mxu0 0.0
        %2766 = vmatpush2.msra.mxu0 0.0
        %2767 = vmatprep.subr.mxu0 0.0
        %2768 = vmatpush2.msra.mxu0 0.0
        %2769 = vmatprep.subr.mxu0 0.0
        %2770 = vmatpush2.msra.mxu0 0.0
        %2771 = vmatprep.subr.mxu0 0.0
        %2772 = vmatpush2.msra.mxu0 0.0
        %2773 = vmatprep.subr.mxu0 0.0
        %2774 = vmatpush2.msra.mxu0 0.0
        %2775 = vmatprep.subr.mxu0 0.0
        %2776 = vmatpush2.msra.mxu0 0.0
        %2777 = vmatprep.subr.mxu0 0.0
        %2778 = vmatpush2.msra.mxu0 0.0
        %2779 = vmatprep.subr.mxu0 0.0
        %2780 = vmatpush2.msra.mxu0 0.0
        %2781 = vmatprep.subr.mxu0 0.0
        %2782 = vmatpush2.msra.mxu0 0.0
        %2783 = vmatprep.subr.mxu0 0.0
        %2784 = vmatpush2.msra.mxu0 0.0
        %2785 = vmatprep.subr.mxu0 0.0
        %2786 = vmatpush2.msra.mxu0 0.0
        %2787 = vmatprep.subr.mxu0 0.0
        %2788 = vmatpush2.msra.mxu0 0.0
        %2789 = vmatprep.subr.mxu0 0.0
        %2790 = vmatpush2.msra.mxu0 0.0
        %2791 = vmatprep.mubr.f32.mxu0 0.0
        %2792 = vmatmul.mubr.f32.gmra.mxu0 %v2719
        %v2793 = vpop.f32.mrf.mxu0
        %v2794 = vadd.f32 0.0, %v2793
        %v2795 = vpop.f32.mrf.mxu0
        %2796 = vmatprep.mubr.f32.mxu0 0.0
        %2797 = vmatmul.mubr.f32.gmra.mxu0 %v2722
        %v2798 = vpop.f32.mrf.mxu0
        %v2799 = vadd.f32 0.0, %v2798
        %v2800 = vpop.f32.mrf.mxu0
        %2801 = vmatprep.mubr.f32.mxu0 0.0
        %2802 = vmatmul.mubr.f32.gmra.mxu0 %v2725
        %v2803 = vpop.f32.mrf.mxu0
        %v2804 = vadd.f32 0.0, %v2803
        %v2805 = vpop.f32.mrf.mxu0
        %2806 = vdwg.mxu0
        %2807 = vrot.lane.b32.xlu0 %v1818, 96
        %v2808 = vpop.permute.xlu0 %2807
        %2809 = vrot.lane.b32.xlu0 %v1824, 96
        %v2810 = vpop.permute.xlu0 %2809
        %2811 = vrot.lane.b32.xlu0 %v1830, 96
        %v2812 = vpop.permute.xlu0 %2811
        %2813 = vrot.lane.b32.xlu0 %v1818, 32
        %v2814 = vpop.permute.xlu0 %2813
        %2815 = vrot.lane.b32.xlu0 %v1824, 32
        %v2816 = vpop.permute.xlu0 %2815
        %2817 = vrot.lane.b32.xlu0 %v1830, 32
        %v2818 = vpop.permute.xlu0 %2817
        %v2819 = vsel %vm1862, %v2808, 0
        %v2821 = vsel %vm1862, %v2810, 0
        %v2823 = vsel %vm1862, %v2812, 0
        %v2825 = vsel %vm1862, %v2814, 0
        %v2827 = vsel %vm1862, %v2816, 0
        %v2829 = vsel %vm1862, %v2818, 0
        %2831 = vmatprep.subr.mxu0 0.0
        %2832 = vmatpush1.xpose.msra.mxu0 0.0
        %2833 = vmatprep.subr.mxu0 0.0
        %2834 = vmatpush1.xpose.msra.mxu0 0.0
        %2835 = vmatprep.subr.mxu0 0.0
        %2836 = vmatpush1.xpose.msra.mxu0 0.0
        %2837 = vmatprep.subr.mxu0 0.0
        %2838 = vmatpush1.xpose.msra.mxu0 0.0
        %2839 = vmatprep.subr.mxu0 0.0
        %2840 = vmatpush1.xpose.msra.mxu0 0.0
        %2841 = vmatprep.subr.mxu0 0.0
        %2842 = vmatpush1.xpose.msra.mxu0 0.0
        %2843 = vmatprep.subr.mxu0 0.0
        %2844 = vmatpush1.xpose.msra.mxu0 0.0
        %2845 = vmatprep.subr.mxu0 0.0
        %2846 = vmatpush1.xpose.msra.mxu0 0.0
        %2847 = vmatprep.subr.mxu0 0.0
        %2848 = vmatpush1.xpose.msra.mxu0 0.0
        %2849 = vmatprep.subr.mxu0 0.0
        %2850 = vmatpush1.xpose.msra.mxu0 0.0
        %2851 = vmatprep.subr.mxu0 0.0
        %2852 = vmatpush1.xpose.msra.mxu0 0.0
        %2853 = vmatprep.subr.mxu0 0.0
        %2854 = vmatpush1.xpose.msra.mxu0 0.0
        %2855 = vmatprep.subr.mxu0 0.0
        %2856 = vmatpush1.xpose.msra.mxu0 0.0
        %2857 = vmatprep.subr.mxu0 0.0
        %2858 = vmatpush1.xpose.msra.mxu0 %v2829
        %2859 = vmatprep.subr.mxu0 0.0
        %2860 = vmatpush1.xpose.msra.mxu0 %v2827
        %2861 = vmatprep.subr.mxu0 0.0
        %2862 = vmatpush1.xpose.msra.mxu0 %v2825
        %2863 = vmatprep.subr.mxu0 0.0
        %2864 = vmatpush2.xpose.msra.mxu0 0.0
        %2865 = vmatprep.subr.mxu0 0.0
        %2866 = vmatpush2.xpose.msra.mxu0 0.0
        %2867 = vmatprep.subr.mxu0 0.0
        %2868 = vmatpush2.xpose.msra.mxu0 0.0
        %2869 = vmatprep.subr.mxu0 0.0
        %2870 = vmatpush2.xpose.msra.mxu0 0.0
        %2871 = vmatprep.subr.mxu0 0.0
        %2872 = vmatpush2.xpose.msra.mxu0 0.0
        %2873 = vmatprep.subr.mxu0 0.0
        %2874 = vmatpush2.xpose.msra.mxu0 0.0
        %2875 = vmatprep.subr.mxu0 0.0
        %2876 = vmatpush2.xpose.msra.mxu0 0.0
        %2877 = vmatprep.subr.mxu0 0.0
        %2878 = vmatpush2.xpose.msra.mxu0 0.0
        %2879 = vmatprep.subr.mxu0 0.0
        %2880 = vmatpush2.xpose.msra.mxu0 0.0
        %2881 = vmatprep.subr.mxu0 0.0
        %2882 = vmatpush2.xpose.msra.mxu0 0.0
        %2883 = vmatprep.subr.mxu0 0.0
        %2884 = vmatpush2.xpose.msra.mxu0 0.0
        %2885 = vmatprep.subr.mxu0 0.0
        %2886 = vmatpush2.xpose.msra.mxu0 0.0
        %2887 = vmatprep.subr.mxu0 0.0
        %2888 = vmatpush2.xpose.msra.mxu0 0.0
        %2889 = vmatprep.subr.mxu0 0.0
        %2890 = vmatpush2.xpose.msra.mxu0 0.0
        %2891 = vmatprep.subr.mxu0 0.0
        %2892 = vmatpush2.xpose.msra.mxu0 0.0
        %2893 = vmatprep.subr.mxu0 0.0
        %2894 = vmatpush2.xpose.msra.mxu0 0.0
        %2895 = vmatprep.mubr.f32.mxu0 0.0
        %2896 = vmatmul.mubr.f32.gmra.mxu0 %v2819
        %v2897 = vpop.f32.mrf.mxu0
        %v2898 = vadd.f32 0.0, %v2897
        %v2899 = vpop.f32.mrf.mxu0
        %2900 = vmatprep.mubr.f32.mxu0 0.0
        %2901 = vmatmul.mubr.f32.gmra.mxu0 %v2821
        %v2902 = vpop.f32.mrf.mxu0
        %v2903 = vadd.f32 0.0, %v2902
        %v2904 = vpop.f32.mrf.mxu0
        %2905 = vmatprep.mubr.f32.mxu0 0.0
        %2906 = vmatmul.mubr.f32.gmra.mxu0 %v2823
        %v2907 = vpop.f32.mrf.mxu0
        %v2908 = vadd.f32 0.0, %v2907
        %v2909 = vpop.f32.mrf.mxu0
        %2910 = vdwg.mxu0
        %2911 = vrot.lane.b32.xlu0 %v1836, 96
        %v2912 = vpop.permute.xlu0 %2911
        %2913 = vrot.lane.b32.xlu0 %v1842, 96
        %v2914 = vpop.permute.xlu0 %2913
        %2915 = vrot.lane.b32.xlu0 %v1848, 96
        %v2916 = vpop.permute.xlu0 %2915
        %2917 = vrot.lane.b32.xlu0 %v1836, 32
        %v2918 = vpop.permute.xlu0 %2917
        %2919 = vrot.lane.b32.xlu0 %v1842, 32
        %v2920 = vpop.permute.xlu0 %2919
        %2921 = vrot.lane.b32.xlu0 %v1848, 32
        %v2922 = vpop.permute.xlu0 %2921
        %v2923 = vsel %vm1862, %v2912, 0
        %v2925 = vsel %vm1862, %v2914, 0
        %v2927 = vsel %vm1862, %v2916, 0
        %v2929 = vsel %vm1862, %v2918, 0
        %v2931 = vsel %vm1862, %v2920, 0
        %v2933 = vsel %vm1862, %v2922, 0
        %2935 = vmatprep.subr.mxu0 0.0
        %2936 = vmatpush1.xpose.msra.mxu0 0.0
        %2937 = vmatprep.subr.mxu0 0.0
        %2938 = vmatpush1.xpose.msra.mxu0 0.0
        %2939 = vmatprep.subr.mxu0 0.0
        %2940 = vmatpush1.xpose.msra.mxu0 0.0
        %2941 = vmatprep.subr.mxu0 0.0
        %2942 = vmatpush1.xpose.msra.mxu0 0.0
        %2943 = vmatprep.subr.mxu0 0.0
        %2944 = vmatpush1.xpose.msra.mxu0 0.0
        %2945 = vmatprep.subr.mxu0 0.0
        %2946 = vmatpush1.xpose.msra.mxu0 0.0
        %2947 = vmatprep.subr.mxu0 0.0
        %2948 = vmatpush1.xpose.msra.mxu0 0.0
        %2949 = vmatprep.subr.mxu0 0.0
        %2950 = vmatpush1.xpose.msra.mxu0 0.0
        %2951 = vmatprep.subr.mxu0 0.0
        %2952 = vmatpush1.xpose.msra.mxu0 0.0
        %2953 = vmatprep.subr.mxu0 0.0
        %2954 = vmatpush1.xpose.msra.mxu0 0.0
        %2955 = vmatprep.subr.mxu0 0.0
        %2956 = vmatpush1.xpose.msra.mxu0 0.0
        %2957 = vmatprep.subr.mxu0 0.0
        %2958 = vmatpush1.xpose.msra.mxu0 0.0
        %2959 = vmatprep.subr.mxu0 0.0
        %2960 = vmatpush1.xpose.msra.mxu0 0.0
        %2961 = vmatprep.subr.mxu0 0.0
        %2962 = vmatpush1.xpose.msra.mxu0 %v2933
        %2963 = vmatprep.subr.mxu0 0.0
        %2964 = vmatpush1.xpose.msra.mxu0 %v2931
        %2965 = vmatprep.subr.mxu0 0.0
        %2966 = vmatpush1.xpose.msra.mxu0 %v2929
        %2967 = vmatprep.subr.mxu0 0.0
        %2968 = vmatpush2.xpose.msra.mxu0 0.0
        %2969 = vmatprep.subr.mxu0 0.0
        %2970 = vmatpush2.xpose.msra.mxu0 0.0
        %2971 = vmatprep.subr.mxu0 0.0
        %2972 = vmatpush2.xpose.msra.mxu0 0.0
        %2973 = vmatprep.subr.mxu0 0.0
        %2974 = vmatpush2.xpose.msra.mxu0 0.0
        %2975 = vmatprep.subr.mxu0 0.0
        %2976 = vmatpush2.xpose.msra.mxu0 0.0
        %2977 = vmatprep.subr.mxu0 0.0
        %2978 = vmatpush2.xpose.msra.mxu0 0.0
        %2979 = vmatprep.subr.mxu0 0.0
        %2980 = vmatpush2.xpose.msra.mxu0 0.0
        %2981 = vmatprep.subr.mxu0 0.0
        %2982 = vmatpush2.xpose.msra.mxu0 0.0
        %2983 = vmatprep.subr.mxu0 0.0
        %2984 = vmatpush2.xpose.msra.mxu0 0.0
        %2985 = vmatprep.subr.mxu0 0.0
        %2986 = vmatpush2.xpose.msra.mxu0 0.0
        %2987 = vmatprep.subr.mxu0 0.0
        %2988 = vmatpush2.xpose.msra.mxu0 0.0
        %2989 = vmatprep.subr.mxu0 0.0
        %2990 = vmatpush2.xpose.msra.mxu0 0.0
        %2991 = vmatprep.subr.mxu0 0.0
        %2992 = vmatpush2.xpose.msra.mxu0 0.0
        %2993 = vmatprep.subr.mxu0 0.0
        %2994 = vmatpush2.xpose.msra.mxu0 0.0
        %2995 = vmatprep.subr.mxu0 0.0
        %2996 = vmatpush2.xpose.msra.mxu0 0.0
        %2997 = vmatprep.subr.mxu0 0.0
        %2998 = vmatpush2.xpose.msra.mxu0 0.0
        %2999 = vmatprep.mubr.f32.mxu0 0.0
        %3000 = vmatmul.mubr.f32.gmra.mxu0 %v2923
        %v3001 = vpop.f32.mrf.mxu0
        %v3002 = vadd.f32 0.0, %v3001
        %v3003 = vpop.f32.mrf.mxu0
        %3004 = vmatprep.mubr.f32.mxu0 0.0
        %3005 = vmatmul.mubr.f32.gmra.mxu0 %v2925
        %v3006 = vpop.f32.mrf.mxu0
        %v3007 = vadd.f32 0.0, %v3006
        %v3008 = vpop.f32.mrf.mxu0
        %3009 = vmatprep.mubr.f32.mxu0 0.0
        %3010 = vmatmul.mubr.f32.gmra.mxu0 %v2927
        %v3011 = vpop.f32.mrf.mxu0
        %v3012 = vadd.f32 0.0, %v3011
        %v3013 = vpop.f32.mrf.mxu0
        %3014 = vdwg.mxu0
        %v3015 = vmul.f32 %v2898, 0.25
        %v3016 = vmul.f32 %v2903, 0.25
        %v3017 = vmul.f32 %v2908, 0.25
        %v3018 = vmul.f32 %v3002, 0.25
        %v3019 = vmul.f32 %v3007, 0.25
        %v3020 = vmul.f32 %v3012, 0.25
        %v3021 = vadd.f32 %v3015, %v2066
        %v3022 = vadd.f32 %v3016, %v2066
        %v3023 = vadd.f32 %v3017, %v2066
        %v3024 = vadd.f32 %v3018, %v2066
        %v3025 = vadd.f32 %v3019, %v2066
        %v3026 = vadd.f32 %v3020, %v2066
        %v3027 = vsel %vm2074, %v3021, -inf
        %3028 = vmax.xlane.f32.xlu0 %v3027
        %v3029 = vpop.xlane.xlu0 %3028
        %v3030 = vsel %vm2074, %v3022, -inf
        %3031 = vmax.xlane.f32.xlu0 %v3030
        %v3032 = vpop.xlane.xlu0 %3031
        %v3033 = vsel %vm2074, %v3023, -inf
        %3034 = vmax.xlane.f32.xlu0 %v3033
        %v3035 = vpop.xlane.xlu0 %3034
        %v3036 = vsel %vm2074, %v3024, -inf
        %3037 = vmax.xlane.f32.xlu0 %v3036
        %v3038 = vpop.xlane.xlu0 %3037
        %v3039 = vsel %vm2074, %v3025, -inf
        %3040 = vmax.xlane.f32.xlu0 %v3039
        %v3041 = vpop.xlane.xlu0 %3040
        %v3042 = vsel %vm2074, %v3026, -inf
        %3043 = vmax.xlane.f32.xlu0 %v3042
        %v3044 = vpop.xlane.xlu0 %3043
        %v3045 = vsub.f32 %v3021, %v3029
        %v3046 = vsub.f32 %v3022, %v3032
        %v3047 = vsub.f32 %v3023, %v3035
        %v3048 = vsub.f32 %v3024, %v3038
        %v3049 = vsub.f32 %v3025, %v3041
        %v3050 = vsub.f32 %v3026, %v3044
        %v3051 = vmul.f32 %v3045, 1.442695
        %v3052 = vpow.pop %v3051
        %v3053 = vmul.f32 %v3046, 1.442695
        %v3054 = vpow.pop %v3053
        %v3055 = vmul.f32 %v3047, 1.442695
        %v3056 = vpow.pop %v3055
        %v3057 = vmul.f32 %v3048, 1.442695
        %v3058 = vpow.pop %v3057
        %v3059 = vmul.f32 %v3049, 1.442695
        %v3060 = vpow.pop %v3059
        %v3061 = vmul.f32 %v3050, 1.442695
        %v3062 = vpow.pop %v3061
        %v3063 = vsel %vm2074, %v3052, 0.0
        %3064 = vadd.xlane.f32.xlu0 %v3063
        %v3065 = vpop.xlane.xlu0 %3064
        %v3066 = vsel %vm2074, %v3054, 0.0
        %3067 = vadd.xlane.f32.xlu0 %v3066
        %v3068 = vpop.xlane.xlu0 %3067
        %v3069 = vsel %vm2074, %v3056, 0.0
        %3070 = vadd.xlane.f32.xlu0 %v3069
        %v3071 = vpop.xlane.xlu0 %3070
        %v3072 = vsel %vm2074, %v3058, 0.0
        %3073 = vadd.xlane.f32.xlu0 %v3072
        %v3074 = vpop.xlane.xlu0 %3073
        %v3075 = vsel %vm2074, %v3060, 0.0
        %3076 = vadd.xlane.f32.xlu0 %v3075
        %v3077 = vpop.xlane.xlu0 %3076
        %v3078 = vsel %vm2074, %v3062, 0.0
        %3079 = vadd.xlane.f32.xlu0 %v3078
        %v3080 = vpop.xlane.xlu0 %3079
        %v3081 = vrcp.pop %v3065
        %v3082 = vrcp.pop %v3068
        %v3083 = vrcp.pop %v3071
        %v3084 = vrcp.pop %v3074
        %v3085 = vrcp.pop %v3077
        %v3086 = vrcp.pop %v3080
        %v3087 = vmul.f32 %v3052, %v3081
        %v3088 = vmul.f32 %v3054, %v3082
        %v3089 = vmul.f32 %v3056, %v3083
        %v3090 = vmul.f32 %v3058, %v3084
        %v3091 = vmul.f32 %v3060, %v3085
        %v3092 = vmul.f32 %v3062, %v3086
        %3093 = vrot.lane.b32.xlu0 %v1820, 96
        %v3094 = vpop.permute.xlu0 %3093
        %3095 = vrot.lane.b32.xlu0 %v1826, 96
        %v3096 = vpop.permute.xlu0 %3095
        %3097 = vrot.lane.b32.xlu0 %v1832, 96
        %v3098 = vpop.permute.xlu0 %3097
        %v3103 = vsel %vm2074, %v3087, 0
        %v3106 = vsel %vm2074, %v3088, 0
        %v3109 = vsel %vm2074, %v3089, 0
        %3111 = vmatprep.subr.mxu0 0.0
        %3112 = vmatpush1.msra.mxu0 0.0
        %3113 = vmatprep.subr.mxu0 0.0
        %3114 = vmatpush1.msra.mxu0 0.0
        %3115 = vmatprep.subr.mxu0 0.0
        %3116 = vmatpush1.msra.mxu0 0.0
        %3117 = vmatprep.subr.mxu0 0.0
        %3118 = vmatpush1.msra.mxu0 0.0
        %3119 = vmatprep.subr.mxu0 0.0
        %3120 = vmatpush1.msra.mxu0 0.0
        %3121 = vmatprep.subr.mxu0 0.0
        %3122 = vmatpush1.msra.mxu0 0.0
        %3123 = vmatprep.subr.mxu0 0.0
        %3124 = vmatpush1.msra.mxu0 0.0
        %3125 = vmatprep.subr.mxu0 0.0
        %3126 = vmatpush1.msra.mxu0 0.0
        %3127 = vmatprep.subr.mxu0 0.0
        %3128 = vmatpush1.msra.mxu0 0.0
        %3129 = vmatprep.subr.mxu0 0.0
        %3130 = vmatpush1.msra.mxu0 0.0
        %3131 = vmatprep.subr.mxu0 0.0
        %3132 = vmatpush1.msra.mxu0 0.0
        %3133 = vmatprep.subr.mxu0 0.0
        %3134 = vmatpush1.msra.mxu0 0.0
        %3135 = vmatprep.subr.mxu0 0.0
        %3136 = vmatpush1.msra.mxu0 0.0
        %3137 = vmatprep.subr.mxu0 0.0
        %3138 = vmatpush1.msra.mxu0 %v3098
        %3139 = vmatprep.subr.mxu0 0.0
        %3140 = vmatpush1.msra.mxu0 %v3096
        %3141 = vmatprep.subr.mxu0 0.0
        %3142 = vmatpush1.msra.mxu0 %v3094
        %3143 = vmatprep.subr.mxu0 0.0
        %3144 = vmatpush2.msra.mxu0 0.0
        %3145 = vmatprep.subr.mxu0 0.0
        %3146 = vmatpush2.msra.mxu0 0.0
        %3147 = vmatprep.subr.mxu0 0.0
        %3148 = vmatpush2.msra.mxu0 0.0
        %3149 = vmatprep.subr.mxu0 0.0
        %3150 = vmatpush2.msra.mxu0 0.0
        %3151 = vmatprep.subr.mxu0 0.0
        %3152 = vmatpush2.msra.mxu0 0.0
        %3153 = vmatprep.subr.mxu0 0.0
        %3154 = vmatpush2.msra.mxu0 0.0
        %3155 = vmatprep.subr.mxu0 0.0
        %3156 = vmatpush2.msra.mxu0 0.0
        %3157 = vmatprep.subr.mxu0 0.0
        %3158 = vmatpush2.msra.mxu0 0.0
        %3159 = vmatprep.subr.mxu0 0.0
        %3160 = vmatpush2.msra.mxu0 0.0
        %3161 = vmatprep.subr.mxu0 0.0
        %3162 = vmatpush2.msra.mxu0 0.0
        %3163 = vmatprep.subr.mxu0 0.0
        %3164 = vmatpush2.msra.mxu0 0.0
        %3165 = vmatprep.subr.mxu0 0.0
        %3166 = vmatpush2.msra.mxu0 0.0
        %3167 = vmatprep.subr.mxu0 0.0
        %3168 = vmatpush2.msra.mxu0 0.0
        %3169 = vmatprep.subr.mxu0 0.0
        %3170 = vmatpush2.msra.mxu0 0.0
        %3171 = vmatprep.subr.mxu0 0.0
        %3172 = vmatpush2.msra.mxu0 0.0
        %3173 = vmatprep.subr.mxu0 0.0
        %3174 = vmatpush2.msra.mxu0 0.0
        %3175 = vmatprep.mubr.f32.mxu0 0.0
        %3176 = vmatmul.mubr.f32.gmra.mxu0 %v3103
        %v3177 = vpop.f32.mrf.mxu0
        %v3178 = vadd.f32 0.0, %v3177
        %v3179 = vpop.f32.mrf.mxu0
        %3180 = vmatprep.mubr.f32.mxu0 0.0
        %3181 = vmatmul.mubr.f32.gmra.mxu0 %v3106
        %v3182 = vpop.f32.mrf.mxu0
        %v3183 = vadd.f32 0.0, %v3182
        %v3184 = vpop.f32.mrf.mxu0
        %3185 = vmatprep.mubr.f32.mxu0 0.0
        %3186 = vmatmul.mubr.f32.gmra.mxu0 %v3109
        %v3187 = vpop.f32.mrf.mxu0
        %v3188 = vadd.f32 0.0, %v3187
        %v3189 = vpop.f32.mrf.mxu0
        %3190 = vdwg.mxu0
        %3191 = vrot.lane.b32.xlu0 %v1838, 96
        %v3192 = vpop.permute.xlu0 %3191
        %3193 = vrot.lane.b32.xlu0 %v1844, 96
        %v3194 = vpop.permute.xlu0 %3193
        %3195 = vrot.lane.b32.xlu0 %v1850, 96
        %v3196 = vpop.permute.xlu0 %3195
        %v3201 = vsel %vm2074, %v3090, 0
        %v3204 = vsel %vm2074, %v3091, 0
        %v3207 = vsel %vm2074, %v3092, 0
        %3209 = vmatprep.subr.mxu0 0.0
        %3210 = vmatpush1.msra.mxu0 0.0
        %3211 = vmatprep.subr.mxu0 0.0
        %3212 = vmatpush1.msra.mxu0 0.0
        %3213 = vmatprep.subr.mxu0 0.0
        %3214 = vmatpush1.msra.mxu0 0.0
        %3215 = vmatprep.subr.mxu0 0.0
        %3216 = vmatpush1.msra.mxu0 0.0
        %3217 = vmatprep.subr.mxu0 0.0
        %3218 = vmatpush1.msra.mxu0 0.0
        %3219 = vmatprep.subr.mxu0 0.0
        %3220 = vmatpush1.msra.mxu0 0.0
        %3221 = vmatprep.subr.mxu0 0.0
        %3222 = vmatpush1.msra.mxu0 0.0
        %3223 = vmatprep.subr.mxu0 0.0
        %3224 = vmatpush1.msra.mxu0 0.0
        %3225 = vmatprep.subr.mxu0 0.0
        %3226 = vmatpush1.msra.mxu0 0.0
        %3227 = vmatprep.subr.mxu0 0.0
        %3228 = vmatpush1.msra.mxu0 0.0
        %3229 = vmatprep.subr.mxu0 0.0
        %3230 = vmatpush1.msra.mxu0 0.0
        %3231 = vmatprep.subr.mxu0 0.0
        %3232 = vmatpush1.msra.mxu0 0.0
        %3233 = vmatprep.subr.mxu0 0.0
        %3234 = vmatpush1.msra.mxu0 0.0
        %3235 = vmatprep.subr.mxu0 0.0
        %3236 = vmatpush1.msra.mxu0 %v3196
        %3237 = vmatprep.subr.mxu0 0.0
        %3238 = vmatpush1.msra.mxu0 %v3194
        %3239 = vmatprep.subr.mxu0 0.0
        %3240 = vmatpush1.msra.mxu0 %v3192
        %3241 = vmatprep.subr.mxu0 0.0
        %3242 = vmatpush2.msra.mxu0 0.0
        %3243 = vmatprep.subr.mxu0 0.0
        %3244 = vmatpush2.msra.mxu0 0.0
        %3245 = vmatprep.subr.mxu0 0.0
        %3246 = vmatpush2.msra.mxu0 0.0
        %3247 = vmatprep.subr.mxu0 0.0
        %3248 = vmatpush2.msra.mxu0 0.0
        %3249 = vmatprep.subr.mxu0 0.0
        %3250 = vmatpush2.msra.mxu0 0.0
        %3251 = vmatprep.subr.mxu0 0.0
        %3252 = vmatpush2.msra.mxu0 0.0
        %3253 = vmatprep.subr.mxu0 0.0
        %3254 = vmatpush2.msra.mxu0 0.0
        %3255 = vmatprep.subr.mxu0 0.0
        %3256 = vmatpush2.msra.mxu0 0.0
        %3257 = vmatprep.subr.mxu0 0.0
        %3258 = vmatpush2.msra.mxu0 0.0
        %3259 = vmatprep.subr.mxu0 0.0
        %3260 = vmatpush2.msra.mxu0 0.0
        %3261 = vmatprep.subr.mxu0 0.0
        %3262 = vmatpush2.msra.mxu0 0.0
        %3263 = vmatprep.subr.mxu0 0.0
        %3264 = vmatpush2.msra.mxu0 0.0
        %3265 = vmatprep.subr.mxu0 0.0
        %3266 = vmatpush2.msra.mxu0 0.0
        %3267 = vmatprep.subr.mxu0 0.0
        %3268 = vmatpush2.msra.mxu0 0.0
        %3269 = vmatprep.subr.mxu0 0.0
        %3270 = vmatpush2.msra.mxu0 0.0
        %3271 = vmatprep.subr.mxu0 0.0
        %3272 = vmatpush2.msra.mxu0 0.0
        %3273 = vmatprep.mubr.f32.mxu0 0.0
        %3274 = vmatmul.mubr.f32.gmra.mxu0 %v3201
        %v3275 = vpop.f32.mrf.mxu0
        %v3276 = vadd.f32 0.0, %v3275
        %v3277 = vpop.f32.mrf.mxu0
        %3278 = vmatprep.mubr.f32.mxu0 0.0
        %3279 = vmatmul.mubr.f32.gmra.mxu0 %v3204
        %v3280 = vpop.f32.mrf.mxu0
        %v3281 = vadd.f32 0.0, %v3280
        %v3282 = vpop.f32.mrf.mxu0
        %3283 = vmatprep.mubr.f32.mxu0 0.0
        %3284 = vmatmul.mubr.f32.gmra.mxu0 %v3207
        %v3285 = vpop.f32.mrf.mxu0
        %v3286 = vadd.f32 0.0, %v3285
        %v3287 = vpop.f32.mrf.mxu0
        %3288 = vdwg.mxu0
        %3289 = vrot.lane.b32.xlu0 %v1818, 80
        %v3290 = vpop.permute.xlu0 %3289
        %3291 = vrot.lane.b32.xlu0 %v1824, 80
        %v3292 = vpop.permute.xlu0 %3291
        %3293 = vrot.lane.b32.xlu0 %v1830, 80
        %v3294 = vpop.permute.xlu0 %3293
        %3295 = vrot.lane.b32.xlu0 %v1818, 16
        %v3296 = vpop.permute.xlu0 %3295
        %3297 = vrot.lane.b32.xlu0 %v1824, 16
        %v3298 = vpop.permute.xlu0 %3297
        %3299 = vrot.lane.b32.xlu0 %v1830, 16
        %v3300 = vpop.permute.xlu0 %3299
        %v3301 = vsel %vm1862, %v3290, 0
        %v3303 = vsel %vm1862, %v3292, 0
        %v3305 = vsel %vm1862, %v3294, 0
        %v3307 = vsel %vm1862, %v3296, 0
        %v3309 = vsel %vm1862, %v3298, 0
        %v3311 = vsel %vm1862, %v3300, 0
        %3313 = vmatprep.subr.mxu0 0.0
        %3314 = vmatpush1.xpose.msra.mxu0 0.0
        %3315 = vmatprep.subr.mxu0 0.0
        %3316 = vmatpush1.xpose.msra.mxu0 0.0
        %3317 = vmatprep.subr.mxu0 0.0
        %3318 = vmatpush1.xpose.msra.mxu0 0.0
        %3319 = vmatprep.subr.mxu0 0.0
        %3320 = vmatpush1.xpose.msra.mxu0 0.0
        %3321 = vmatprep.subr.mxu0 0.0
        %3322 = vmatpush1.xpose.msra.mxu0 0.0
        %3323 = vmatprep.subr.mxu0 0.0
        %3324 = vmatpush1.xpose.msra.mxu0 0.0
        %3325 = vmatprep.subr.mxu0 0.0
        %3326 = vmatpush1.xpose.msra.mxu0 0.0
        %3327 = vmatprep.subr.mxu0 0.0
        %3328 = vmatpush1.xpose.msra.mxu0 0.0
        %3329 = vmatprep.subr.mxu0 0.0
        %3330 = vmatpush1.xpose.msra.mxu0 0.0
        %3331 = vmatprep.subr.mxu0 0.0
        %3332 = vmatpush1.xpose.msra.mxu0 0.0
        %3333 = vmatprep.subr.mxu0 0.0
        %3334 = vmatpush1.xpose.msra.mxu0 0.0
        %3335 = vmatprep.subr.mxu0 0.0
        %3336 = vmatpush1.xpose.msra.mxu0 0.0
        %3337 = vmatprep.subr.mxu0 0.0
        %3338 = vmatpush1.xpose.msra.mxu0 0.0
        %3339 = vmatprep.subr.mxu0 0.0
        %3340 = vmatpush1.xpose.msra.mxu0 %v3311
        %3341 = vmatprep.subr.mxu0 0.0
        %3342 = vmatpush1.xpose.msra.mxu0 %v3309
        %3343 = vmatprep.subr.mxu0 0.0
        %3344 = vmatpush1.xpose.msra.mxu0 %v3307
        %3345 = vmatprep.subr.mxu0 0.0
        %3346 = vmatpush2.xpose.msra.mxu0 0.0
        %3347 = vmatprep.subr.mxu0 0.0
        %3348 = vmatpush2.xpose.msra.mxu0 0.0
        %3349 = vmatprep.subr.mxu0 0.0
        %3350 = vmatpush2.xpose.msra.mxu0 0.0
        %3351 = vmatprep.subr.mxu0 0.0
        %3352 = vmatpush2.xpose.msra.mxu0 0.0
        %3353 = vmatprep.subr.mxu0 0.0
        %3354 = vmatpush2.xpose.msra.mxu0 0.0
        %3355 = vmatprep.subr.mxu0 0.0
        %3356 = vmatpush2.xpose.msra.mxu0 0.0
        %3357 = vmatprep.subr.mxu0 0.0
        %3358 = vmatpush2.xpose.msra.mxu0 0.0
        %3359 = vmatprep.subr.mxu0 0.0
        %3360 = vmatpush2.xpose.msra.mxu0 0.0
        %3361 = vmatprep.subr.mxu0 0.0
        %3362 = vmatpush2.xpose.msra.mxu0 0.0
        %3363 = vmatprep.subr.mxu0 0.0
        %3364 = vmatpush2.xpose.msra.mxu0 0.0
        %3365 = vmatprep.subr.mxu0 0.0
        %3366 = vmatpush2.xpose.msra.mxu0 0.0
        %3367 = vmatprep.subr.mxu0 0.0
        %3368 = vmatpush2.xpose.msra.mxu0 0.0
        %3369 = vmatprep.subr.mxu0 0.0
        %3370 = vmatpush2.xpose.msra.mxu0 0.0
        %3371 = vmatprep.subr.mxu0 0.0
        %3372 = vmatpush2.xpose.msra.mxu0 0.0
        %3373 = vmatprep.subr.mxu0 0.0
        %3374 = vmatpush2.xpose.msra.mxu0 0.0
        %3375 = vmatprep.subr.mxu0 0.0
        %3376 = vmatpush2.xpose.msra.mxu0 0.0
        %3377 = vmatprep.mubr.f32.mxu0 0.0
        %3378 = vmatmul.mubr.f32.gmra.mxu0 %v3301
        %v3379 = vpop.f32.mrf.mxu0
        %v3380 = vadd.f32 0.0, %v3379
        %v3381 = vpop.f32.mrf.mxu0
        %3382 = vmatprep.mubr.f32.mxu0 0.0
        %3383 = vmatmul.mubr.f32.gmra.mxu0 %v3303
        %v3384 = vpop.f32.mrf.mxu0
        %v3385 = vadd.f32 0.0, %v3384
        %v3386 = vpop.f32.mrf.mxu0
        %3387 = vmatprep.mubr.f32.mxu0 0.0
        %3388 = vmatmul.mubr.f32.gmra.mxu0 %v3305
        %v3389 = vpop.f32.mrf.mxu0
        %v3390 = vadd.f32 0.0, %v3389
        %v3391 = vpop.f32.mrf.mxu0
        %3392 = vdwg.mxu0
        %3393 = vrot.lane.b32.xlu0 %v1836, 80
        %v3394 = vpop.permute.xlu0 %3393
        %3395 = vrot.lane.b32.xlu0 %v1842, 80
        %v3396 = vpop.permute.xlu0 %3395
        %3397 = vrot.lane.b32.xlu0 %v1848, 80
        %v3398 = vpop.permute.xlu0 %3397
        %3399 = vrot.lane.b32.xlu0 %v1836, 16
        %v3400 = vpop.permute.xlu0 %3399
        %3401 = vrot.lane.b32.xlu0 %v1842, 16
        %v3402 = vpop.permute.xlu0 %3401
        %3403 = vrot.lane.b32.xlu0 %v1848, 16
        %v3404 = vpop.permute.xlu0 %3403
        %v3405 = vsel %vm1862, %v3394, 0
        %v3407 = vsel %vm1862, %v3396, 0
        %v3409 = vsel %vm1862, %v3398, 0
        %v3411 = vsel %vm1862, %v3400, 0
        %v3413 = vsel %vm1862, %v3402, 0
        %v3415 = vsel %vm1862, %v3404, 0
        %3417 = vmatprep.subr.mxu0 0.0
        %3418 = vmatpush1.xpose.msra.mxu0 0.0
        %3419 = vmatprep.subr.mxu0 0.0
        %3420 = vmatpush1.xpose.msra.mxu0 0.0
        %3421 = vmatprep.subr.mxu0 0.0
        %3422 = vmatpush1.xpose.msra.mxu0 0.0
        %3423 = vmatprep.subr.mxu0 0.0
        %3424 = vmatpush1.xpose.msra.mxu0 0.0
        %3425 = vmatprep.subr.mxu0 0.0
        %3426 = vmatpush1.xpose.msra.mxu0 0.0
        %3427 = vmatprep.subr.mxu0 0.0
        %3428 = vmatpush1.xpose.msra.mxu0 0.0
        %3429 = vmatprep.subr.mxu0 0.0
        %3430 = vmatpush1.xpose.msra.mxu0 0.0
        %3431 = vmatprep.subr.mxu0 0.0
        %3432 = vmatpush1.xpose.msra.mxu0 0.0
        %3433 = vmatprep.subr.mxu0 0.0
        %3434 = vmatpush1.xpose.msra.mxu0 0.0
        %3435 = vmatprep.subr.mxu0 0.0
        %3436 = vmatpush1.xpose.msra.mxu0 0.0
        %3437 = vmatprep.subr.mxu0 0.0
        %3438 = vmatpush1.xpose.msra.mxu0 0.0
        %3439 = vmatprep.subr.mxu0 0.0
        %3440 = vmatpush1.xpose.msra.mxu0 0.0
        %3441 = vmatprep.subr.mxu0 0.0
        %3442 = vmatpush1.xpose.msra.mxu0 0.0
        %3443 = vmatprep.subr.mxu0 0.0
        %3444 = vmatpush1.xpose.msra.mxu0 %v3415
        %3445 = vmatprep.subr.mxu0 0.0
        %3446 = vmatpush1.xpose.msra.mxu0 %v3413
        %3447 = vmatprep.subr.mxu0 0.0
        %3448 = vmatpush1.xpose.msra.mxu0 %v3411
        %3449 = vmatprep.subr.mxu0 0.0
        %3450 = vmatpush2.xpose.msra.mxu0 0.0
        %3451 = vmatprep.subr.mxu0 0.0
        %3452 = vmatpush2.xpose.msra.mxu0 0.0
        %3453 = vmatprep.subr.mxu0 0.0
        %3454 = vmatpush2.xpose.msra.mxu0 0.0
        %3455 = vmatprep.subr.mxu0 0.0
        %3456 = vmatpush2.xpose.msra.mxu0 0.0
        %3457 = vmatprep.subr.mxu0 0.0
        %3458 = vmatpush2.xpose.msra.mxu0 0.0
        %3459 = vmatprep.subr.mxu0 0.0
        %3460 = vmatpush2.xpose.msra.mxu0 0.0
        %3461 = vmatprep.subr.mxu0 0.0
        %3462 = vmatpush2.xpose.msra.mxu0 0.0
        %3463 = vmatprep.subr.mxu0 0.0
        %3464 = vmatpush2.xpose.msra.mxu0 0.0
        %3465 = vmatprep.subr.mxu0 0.0
        %3466 = vmatpush2.xpose.msra.mxu0 0.0
        %3467 = vmatprep.subr.mxu0 0.0
        %3468 = vmatpush2.xpose.msra.mxu0 0.0
        %3469 = vmatprep.subr.mxu0 0.0
        %3470 = vmatpush2.xpose.msra.mxu0 0.0
        %3471 = vmatprep.subr.mxu0 0.0
        %3472 = vmatpush2.xpose.msra.mxu0 0.0
        %3473 = vmatprep.subr.mxu0 0.0
        %3474 = vmatpush2.xpose.msra.mxu0 0.0
        %3475 = vmatprep.subr.mxu0 0.0
        %3476 = vmatpush2.xpose.msra.mxu0 0.0
        %3477 = vmatprep.subr.mxu0 0.0
        %3478 = vmatpush2.xpose.msra.mxu0 0.0
        %3479 = vmatprep.subr.mxu0 0.0
        %3480 = vmatpush2.xpose.msra.mxu0 0.0
        %3481 = vmatprep.mubr.f32.mxu0 0.0
        %3482 = vmatmul.mubr.f32.gmra.mxu0 %v3405
        %v3483 = vpop.f32.mrf.mxu0
        %v3484 = vadd.f32 0.0, %v3483
        %v3485 = vpop.f32.mrf.mxu0
        %3486 = vmatprep.mubr.f32.mxu0 0.0
        %3487 = vmatmul.mubr.f32.gmra.mxu0 %v3407
        %v3488 = vpop.f32.mrf.mxu0
        %v3489 = vadd.f32 0.0, %v3488
        %v3490 = vpop.f32.mrf.mxu0
        %3491 = vmatprep.mubr.f32.mxu0 0.0
        %3492 = vmatmul.mubr.f32.gmra.mxu0 %v3409
        %v3493 = vpop.f32.mrf.mxu0
        %v3494 = vadd.f32 0.0, %v3493
        %v3495 = vpop.f32.mrf.mxu0
        %3496 = vdwg.mxu0
        %v3497 = vmul.f32 %v3380, 0.25
        %v3498 = vmul.f32 %v3385, 0.25
        %v3499 = vmul.f32 %v3390, 0.25
        %v3500 = vmul.f32 %v3484, 0.25
        %v3501 = vmul.f32 %v3489, 0.25
        %v3502 = vmul.f32 %v3494, 0.25
        %v3503 = vadd.f32 %v3497, %v2066
        %v3504 = vadd.f32 %v3498, %v2066
        %v3505 = vadd.f32 %v3499, %v2066
        %v3506 = vadd.f32 %v3500, %v2066
        %v3507 = vadd.f32 %v3501, %v2066
        %v3508 = vadd.f32 %v3502, %v2066
        %v3509 = vsel %vm2074, %v3503, -inf
        %3510 = vmax.xlane.f32.xlu0 %v3509
        %v3511 = vpop.xlane.xlu0 %3510
        %v3512 = vsel %vm2074, %v3504, -inf
        %3513 = vmax.xlane.f32.xlu0 %v3512
        %v3514 = vpop.xlane.xlu0 %3513
        %v3515 = vsel %vm2074, %v3505, -inf
        %3516 = vmax.xlane.f32.xlu0 %v3515
        %v3517 = vpop.xlane.xlu0 %3516
        %v3518 = vsel %vm2074, %v3506, -inf
        %3519 = vmax.xlane.f32.xlu0 %v3518
        %v3520 = vpop.xlane.xlu0 %3519
        %v3521 = vsel %vm2074, %v3507, -inf
        %3522 = vmax.xlane.f32.xlu0 %v3521
        %v3523 = vpop.xlane.xlu0 %3522
        %v3524 = vsel %vm2074, %v3508, -inf
        %3525 = vmax.xlane.f32.xlu0 %v3524
        %v3526 = vpop.xlane.xlu0 %3525
        %v3527 = vsub.f32 %v3503, %v3511
        %v3528 = vsub.f32 %v3504, %v3514
        %v3529 = vsub.f32 %v3505, %v3517
        %v3530 = vsub.f32 %v3506, %v3520
        %v3531 = vsub.f32 %v3507, %v3523
        %v3532 = vsub.f32 %v3508, %v3526
        %v3533 = vmul.f32 %v3527, 1.442695
        %v3534 = vpow.pop %v3533
        %v3535 = vmul.f32 %v3528, 1.442695
        %v3536 = vpow.pop %v3535
        %v3537 = vmul.f32 %v3529, 1.442695
        %v3538 = vpow.pop %v3537
        %v3539 = vmul.f32 %v3530, 1.442695
        %v3540 = vpow.pop %v3539
        %v3541 = vmul.f32 %v3531, 1.442695
        %v3542 = vpow.pop %v3541
        %v3543 = vmul.f32 %v3532, 1.442695
        %v3544 = vpow.pop %v3543
        %v3545 = vsel %vm2074, %v3534, 0.0
        %3546 = vadd.xlane.f32.xlu0 %v3545
        %v3547 = vpop.xlane.xlu0 %3546
        %v3548 = vsel %vm2074, %v3536, 0.0
        %3549 = vadd.xlane.f32.xlu0 %v3548
        %v3550 = vpop.xlane.xlu0 %3549
        %v3551 = vsel %vm2074, %v3538, 0.0
        %3552 = vadd.xlane.f32.xlu0 %v3551
        %v3553 = vpop.xlane.xlu0 %3552
        %v3554 = vsel %vm2074, %v3540, 0.0
        %3555 = vadd.xlane.f32.xlu0 %v3554
        %v3556 = vpop.xlane.xlu0 %3555
        %v3557 = vsel %vm2074, %v3542, 0.0
        %3558 = vadd.xlane.f32.xlu0 %v3557
        %v3559 = vpop.xlane.xlu0 %3558
        %v3560 = vsel %vm2074, %v3544, 0.0
        %3561 = vadd.xlane.f32.xlu0 %v3560
        %v3562 = vpop.xlane.xlu0 %3561
        %v3563 = vrcp.pop %v3547
        %v3564 = vrcp.pop %v3550
        %v3565 = vrcp.pop %v3553
        %v3566 = vrcp.pop %v3556
        %v3567 = vrcp.pop %v3559
        %v3568 = vrcp.pop %v3562
        %v3569 = vmul.f32 %v3534, %v3563
        %v3570 = vmul.f32 %v3536, %v3564
        %v3571 = vmul.f32 %v3538, %v3565
        %v3572 = vmul.f32 %v3540, %v3566
        %v3573 = vmul.f32 %v3542, %v3567
        %v3574 = vmul.f32 %v3544, %v3568
        %3575 = vrot.lane.b32.xlu0 %v1820, 80
        %v3576 = vpop.permute.xlu0 %3575
        %3577 = vrot.lane.b32.xlu0 %v1826, 80
        %v3578 = vpop.permute.xlu0 %3577
        %3579 = vrot.lane.b32.xlu0 %v1832, 80
        %v3580 = vpop.permute.xlu0 %3579
        %v3585 = vsel %vm2074, %v3569, 0
        %v3588 = vsel %vm2074, %v3570, 0
        %v3591 = vsel %vm2074, %v3571, 0
        %3593 = vmatprep.subr.mxu0 0.0
        %3594 = vmatpush1.msra.mxu0 0.0
        %3595 = vmatprep.subr.mxu0 0.0
        %3596 = vmatpush1.msra.mxu0 0.0
        %3597 = vmatprep.subr.mxu0 0.0
        %3598 = vmatpush1.msra.mxu0 0.0
        %3599 = vmatprep.subr.mxu0 0.0
        %3600 = vmatpush1.msra.mxu0 0.0
        %3601 = vmatprep.subr.mxu0 0.0
        %3602 = vmatpush1.msra.mxu0 0.0
        %3603 = vmatprep.subr.mxu0 0.0
        %3604 = vmatpush1.msra.mxu0 0.0
        %3605 = vmatprep.subr.mxu0 0.0
        %3606 = vmatpush1.msra.mxu0 0.0
        %3607 = vmatprep.subr.mxu0 0.0
        %3608 = vmatpush1.msra.mxu0 0.0
        %3609 = vmatprep.subr.mxu0 0.0
        %3610 = vmatpush1.msra.mxu0 0.0
        %3611 = vmatprep.subr.mxu0 0.0
        %3612 = vmatpush1.msra.mxu0 0.0
        %3613 = vmatprep.subr.mxu0 0.0
        %3614 = vmatpush1.msra.mxu0 0.0
        %3615 = vmatprep.subr.mxu0 0.0
        %3616 = vmatpush1.msra.mxu0 0.0
        %3617 = vmatprep.subr.mxu0 0.0
        %3618 = vmatpush1.msra.mxu0 0.0
        %3619 = vmatprep.subr.mxu0 0.0
        %3620 = vmatpush1.msra.mxu0 %v3580
        %3621 = vmatprep.subr.mxu0 0.0
        %3622 = vmatpush1.msra.mxu0 %v3578
        %3623 = vmatprep.subr.mxu0 0.0
        %3624 = vmatpush1.msra.mxu0 %v3576
        %3625 = vmatprep.subr.mxu0 0.0
        %3626 = vmatpush2.msra.mxu0 0.0
        %3627 = vmatprep.subr.mxu0 0.0
        %3628 = vmatpush2.msra.mxu0 0.0
        %3629 = vmatprep.subr.mxu0 0.0
        %3630 = vmatpush2.msra.mxu0 0.0
        %3631 = vmatprep.subr.mxu0 0.0
        %3632 = vmatpush2.msra.mxu0 0.0
        %3633 = vmatprep.subr.mxu0 0.0
        %3634 = vmatpush2.msra.mxu0 0.0
        %3635 = vmatprep.subr.mxu0 0.0
        %3636 = vmatpush2.msra.mxu0 0.0
        %3637 = vmatprep.subr.mxu0 0.0
        %3638 = vmatpush2.msra.mxu0 0.0
        %3639 = vmatprep.subr.mxu0 0.0
        %3640 = vmatpush2.msra.mxu0 0.0
        %3641 = vmatprep.subr.mxu0 0.0
        %3642 = vmatpush2.msra.mxu0 0.0
        %3643 = vmatprep.subr.mxu0 0.0
        %3644 = vmatpush2.msra.mxu0 0.0
        %3645 = vmatprep.subr.mxu0 0.0
        %3646 = vmatpush2.msra.mxu0 0.0
        %3647 = vmatprep.subr.mxu0 0.0
        %3648 = vmatpush2.msra.mxu0 0.0
        %3649 = vmatprep.subr.mxu0 0.0
        %3650 = vmatpush2.msra.mxu0 0.0
        %3651 = vmatprep.subr.mxu0 0.0
        %3652 = vmatpush2.msra.mxu0 0.0
        %3653 = vmatprep.subr.mxu0 0.0
        %3654 = vmatpush2.msra.mxu0 0.0
        %3655 = vmatprep.subr.mxu0 0.0
        %3656 = vmatpush2.msra.mxu0 0.0
        %3657 = vmatprep.mubr.f32.mxu0 0.0
        %3658 = vmatmul.mubr.f32.gmra.mxu0 %v3585
        %v3659 = vpop.f32.mrf.mxu0
        %v3660 = vadd.f32 0.0, %v3659
        %v3661 = vpop.f32.mrf.mxu0
        %3662 = vmatprep.mubr.f32.mxu0 0.0
        %3663 = vmatmul.mubr.f32.gmra.mxu0 %v3588
        %v3664 = vpop.f32.mrf.mxu0
        %v3665 = vadd.f32 0.0, %v3664
        %v3666 = vpop.f32.mrf.mxu0
        %3667 = vmatprep.mubr.f32.mxu0 0.0
        %3668 = vmatmul.mubr.f32.gmra.mxu0 %v3591
        %v3669 = vpop.f32.mrf.mxu0
        %v3670 = vadd.f32 0.0, %v3669
        %v3671 = vpop.f32.mrf.mxu0
        %3672 = vdwg.mxu0
        %3673 = vrot.lane.b32.xlu0 %v1838, 80
        %v3674 = vpop.permute.xlu0 %3673
        %3675 = vrot.lane.b32.xlu0 %v1844, 80
        %v3676 = vpop.permute.xlu0 %3675
        %3677 = vrot.lane.b32.xlu0 %v1850, 80
        %v3678 = vpop.permute.xlu0 %3677
        %v3683 = vsel %vm2074, %v3572, 0
        %v3686 = vsel %vm2074, %v3573, 0
        %v3689 = vsel %vm2074, %v3574, 0
        %3691 = vmatprep.subr.mxu0 0.0
        %3692 = vmatpush1.msra.mxu0 0.0
        %3693 = vmatprep.subr.mxu0 0.0
        %3694 = vmatpush1.msra.mxu0 0.0
        %3695 = vmatprep.subr.mxu0 0.0
        %3696 = vmatpush1.msra.mxu0 0.0
        %3697 = vmatprep.subr.mxu0 0.0
        %3698 = vmatpush1.msra.mxu0 0.0
        %3699 = vmatprep.subr.mxu0 0.0
        %3700 = vmatpush1.msra.mxu0 0.0
        %3701 = vmatprep.subr.mxu0 0.0
        %3702 = vmatpush1.msra.mxu0 0.0
        %3703 = vmatprep.subr.mxu0 0.0
        %3704 = vmatpush1.msra.mxu0 0.0
        %3705 = vmatprep.subr.mxu0 0.0
        %3706 = vmatpush1.msra.mxu0 0.0
        %3707 = vmatprep.subr.mxu0 0.0
        %3708 = vmatpush1.msra.mxu0 0.0
        %3709 = vmatprep.subr.mxu0 0.0
        %3710 = vmatpush1.msra.mxu0 0.0
        %3711 = vmatprep.subr.mxu0 0.0
        %3712 = vmatpush1.msra.mxu0 0.0
        %3713 = vmatprep.subr.mxu0 0.0
        %3714 = vmatpush1.msra.mxu0 0.0
        %3715 = vmatprep.subr.mxu0 0.0
        %3716 = vmatpush1.msra.mxu0 0.0
        %3717 = vmatprep.subr.mxu0 0.0
        %3718 = vmatpush1.msra.mxu0 %v3678
        %3719 = vmatprep.subr.mxu0 0.0
        %3720 = vmatpush1.msra.mxu0 %v3676
        %3721 = vmatprep.subr.mxu0 0.0
        %3722 = vmatpush1.msra.mxu0 %v3674
        %3723 = vmatprep.subr.mxu0 0.0
        %3724 = vmatpush2.msra.mxu0 0.0
        %3725 = vmatprep.subr.mxu0 0.0
        %3726 = vmatpush2.msra.mxu0 0.0
        %3727 = vmatprep.subr.mxu0 0.0
        %3728 = vmatpush2.msra.mxu0 0.0
        %3729 = vmatprep.subr.mxu0 0.0
        %3730 = vmatpush2.msra.mxu0 0.0
        %3731 = vmatprep.subr.mxu0 0.0
        %3732 = vmatpush2.msra.mxu0 0.0
        %3733 = vmatprep.subr.mxu0 0.0
        %3734 = vmatpush2.msra.mxu0 0.0
        %3735 = vmatprep.subr.mxu0 0.0
        %3736 = vmatpush2.msra.mxu0 0.0
        %3737 = vmatprep.subr.mxu0 0.0
        %3738 = vmatpush2.msra.mxu0 0.0
        %3739 = vmatprep.subr.mxu0 0.0
        %3740 = vmatpush2.msra.mxu0 0.0
        %3741 = vmatprep.subr.mxu0 0.0
        %3742 = vmatpush2.msra.mxu0 0.0
        %3743 = vmatprep.subr.mxu0 0.0
        %3744 = vmatpush2.msra.mxu0 0.0
        %3745 = vmatprep.subr.mxu0 0.0
        %3746 = vmatpush2.msra.mxu0 0.0
        %3747 = vmatprep.subr.mxu0 0.0
        %3748 = vmatpush2.msra.mxu0 0.0
        %3749 = vmatprep.subr.mxu0 0.0
        %3750 = vmatpush2.msra.mxu0 0.0
        %3751 = vmatprep.subr.mxu0 0.0
        %3752 = vmatpush2.msra.mxu0 0.0
        %3753 = vmatprep.subr.mxu0 0.0
        %3754 = vmatpush2.msra.mxu0 0.0
        %3755 = vmatprep.mubr.f32.mxu0 0.0
        %3756 = vmatmul.mubr.f32.gmra.mxu0 %v3683
        %v3757 = vpop.f32.mrf.mxu0
        %v3758 = vadd.f32 0.0, %v3757
        %v3759 = vpop.f32.mrf.mxu0
        %3760 = vmatprep.mubr.f32.mxu0 0.0
        %3761 = vmatmul.mubr.f32.gmra.mxu0 %v3686
        %v3762 = vpop.f32.mrf.mxu0
        %v3763 = vadd.f32 0.0, %v3762
        %v3764 = vpop.f32.mrf.mxu0
        %3765 = vmatprep.mubr.f32.mxu0 0.0
        %3766 = vmatmul.mubr.f32.gmra.mxu0 %v3689
        %v3767 = vpop.f32.mrf.mxu0
        %v3768 = vadd.f32 0.0, %v3767
        %v3769 = vpop.f32.mrf.mxu0
        %3770 = vdwg.mxu0
        %3777 = vrot.lane.b32.xlu0 %v2693, 16
        %v3778 = vpop.permute.xlu0 %3777
        %3779 = vrot.lane.b32.xlu0 %v2698, 16
        %v3780 = vpop.permute.xlu0 %3779
        %3781 = vrot.lane.b32.xlu0 %v2703, 16
        %v3782 = vpop.permute.xlu0 %3781
        %3783 = vrot.lane.b32.xlu0 %v2794, 16
        %v3784 = vpop.permute.xlu0 %3783
        %3785 = vrot.lane.b32.xlu0 %v2799, 16
        %v3786 = vpop.permute.xlu0 %3785
        %3787 = vrot.lane.b32.xlu0 %v2804, 16
        %v3788 = vpop.permute.xlu0 %3787
        %3801 = vrot.lane.b32.xlu0 %v3178, 32
        %v3802 = vpop.permute.xlu0 %3801
        %3803 = vrot.lane.b32.xlu0 %v3183, 32
        %v3804 = vpop.permute.xlu0 %3803
        %3805 = vrot.lane.b32.xlu0 %v3188, 32
        %v3806 = vpop.permute.xlu0 %3805
        %3807 = vrot.lane.b32.xlu0 %v3276, 32
        %v3808 = vpop.permute.xlu0 %3807
        %3809 = vrot.lane.b32.xlu0 %v3281, 32
        %v3810 = vpop.permute.xlu0 %3809
        %3811 = vrot.lane.b32.xlu0 %v3286, 32
        %v3812 = vpop.permute.xlu0 %3811
        %3825 = vrot.lane.b32.xlu0 %v3660, 48
        %v3826 = vpop.permute.xlu0 %3825
        %3827 = vrot.lane.b32.xlu0 %v3665, 48
        %v3828 = vpop.permute.xlu0 %3827
        %3829 = vrot.lane.b32.xlu0 %v3670, 48
        %v3830 = vpop.permute.xlu0 %3829
        %3831 = vrot.lane.b32.xlu0 %v3758, 48
        %v3832 = vpop.permute.xlu0 %3831
        %3833 = vrot.lane.b32.xlu0 %v3763, 48
        %v3834 = vpop.permute.xlu0 %3833
        %3835 = vrot.lane.b32.xlu0 %v3768, 48
        %v3836 = vpop.permute.xlu0 %3835
        %v3843 = vsel %vm1862, %v2217, %v3778
        %v3844 = vsel %vm1862, %v2222, %v3780
        %v3845 = vsel %vm1862, %v2227, %v3782
        %v3846 = vsel %vm1862, %v2306, %v3784
        %v3847 = vsel %vm1862, %v2311, %v3786
        %v3848 = vsel %vm1862, %v2316, %v3788
        %vm3849 = vcmask 261120
        %v3850 = vsel %vm3849, %v3843, %v3802
        %v3851 = vsel %vm3849, %v3844, %v3804
        %v3852 = vsel %vm3849, %v3845, %v3806
        %v3853 = vsel %vm3849, %v3846, %v3808
        %v3854 = vsel %vm3849, %v3847, %v3810
        %v3855 = vsel %vm3849, %v3848, %v3812
        %vm3856 = vcmask 392192
        %v3857 = vsel %vm3856, %v3850, %v3826
        %v3858 = vsel %vm3856, %v3851, %v3828
        %v3859 = vsel %vm3856, %v3852, %v3830
        %v3860 = vsel %vm3856, %v3853, %v3832
        %v3861 = vsel %vm3856, %v3854, %v3834
        %v3862 = vsel %vm3856, %v3855, %v3836
        %v3863 = vld [vmem:[%s1250] sm:$0xff]
        %v3864 = vld [vmem:[%s1250 + $0x8] sm:$0xff]
        %v3865 = vld [vmem:[%s1250 + $0x10] sm:$0xff]
        %v3866 = vld [vmem:[%s1250 + $0x18] sm:$0xff]
        %v3867 = vld [vmem:[%s1250 + $0x20] sm:$0xff]
        %v3868 = vld [vmem:[%s1250 + $0x28] sm:$0xff]
        %v3869 = vld [vmem:[%s1250 + $0x30] sm:$0xff]
        %v3870 = vld [vmem:[%s1250 + $0x38] sm:$0xff]
        %v3872 = vsel %vm1601, %v3857, 0
        %v3875 = vsel %vm1601, %v3858, 0
        %v3878 = vsel %vm1601, %v3859, 0
        %v3881 = vsel %vm1601, %v3860, 0
        %v3884 = vsel %vm1601, %v3861, 0
        %v3887 = vsel %vm1601, %v3862, 0
        %3889 = vmatprep.subr.mxu0 0.0
        %3890 = vmatpush1.msra.mxu0 0.0
        %3891 = vmatprep.subr.mxu0 0.0
        %3892 = vmatpush1.msra.mxu0 0.0
        %3893 = vmatprep.subr.mxu0 0.0
        %3894 = vmatpush1.msra.mxu0 0.0
        %3895 = vmatprep.subr.mxu0 0.0
        %3896 = vmatpush1.msra.mxu0 0.0
        %3897 = vmatprep.subr.mxu0 0.0
        %3898 = vmatpush1.msra.mxu0 0.0
        %3899 = vmatprep.subr.mxu0 0.0
        %3900 = vmatpush1.msra.mxu0 0.0
        %3901 = vmatprep.subr.mxu0 0.0
        %3902 = vmatpush1.msra.mxu0 0.0
        %3903 = vmatprep.subr.mxu0 0.0
        %3904 = vmatpush1.msra.mxu0 0.0
        %3905 = vmatprep.subr.mxu0 0.0
        %3906 = vmatpush1.msra.mxu0 %v3870
        %3907 = vmatprep.subr.mxu0 0.0
        %3908 = vmatpush1.msra.mxu0 %v3869
        %3909 = vmatprep.subr.mxu0 0.0
        %3910 = vmatpush1.msra.mxu0 %v3868
        %3911 = vmatprep.subr.mxu0 0.0
        %3912 = vmatpush1.msra.mxu0 %v3867
        %3913 = vmatprep.subr.mxu0 0.0
        %3914 = vmatpush1.msra.mxu0 %v3866
        %3915 = vmatprep.subr.mxu0 0.0
        %3916 = vmatpush1.msra.mxu0 %v3865
        %3917 = vmatprep.subr.mxu0 0.0
        %3918 = vmatpush1.msra.mxu0 %v3864
        %3919 = vmatprep.subr.mxu0 0.0
        %3920 = vmatpush1.msra.mxu0 %v3863
        %3921 = vmatprep.subr.mxu0 0.0
        %3922 = vmatpush2.msra.mxu0 0.0
        %3923 = vmatprep.subr.mxu0 0.0
        %3924 = vmatpush2.msra.mxu0 0.0
        %3925 = vmatprep.subr.mxu0 0.0
        %3926 = vmatpush2.msra.mxu0 0.0
        %3927 = vmatprep.subr.mxu0 0.0
        %3928 = vmatpush2.msra.mxu0 0.0
        %3929 = vmatprep.subr.mxu0 0.0
        %3930 = vmatpush2.msra.mxu0 0.0
        %3931 = vmatprep.subr.mxu0 0.0
        %3932 = vmatpush2.msra.mxu0 0.0
        %3933 = vmatprep.subr.mxu0 0.0
        %3934 = vmatpush2.msra.mxu0 0.0
        %3935 = vmatprep.subr.mxu0 0.0
        %3936 = vmatpush2.msra.mxu0 0.0
        %3937 = vmatprep.subr.mxu0 0.0
        %3938 = vmatpush2.msra.mxu0 0.0
        %3939 = vmatprep.subr.mxu0 0.0
        %3940 = vmatpush2.msra.mxu0 0.0
        %3941 = vmatprep.subr.mxu0 0.0
        %3942 = vmatpush2.msra.mxu0 0.0
        %3943 = vmatprep.subr.mxu0 0.0
        %3944 = vmatpush2.msra.mxu0 0.0
        %3945 = vmatprep.subr.mxu0 0.0
        %3946 = vmatpush2.msra.mxu0 0.0
        %3947 = vmatprep.subr.mxu0 0.0
        %3948 = vmatpush2.msra.mxu0 0.0
        %3949 = vmatprep.subr.mxu0 0.0
        %3950 = vmatpush2.msra.mxu0 0.0
        %3951 = vmatprep.subr.mxu0 0.0
        %3952 = vmatpush2.msra.mxu0 0.0
        %3953 = vmatprep.mubr.f32.mxu0 0.0
        %3954 = vmatmul.mubr.f32.gmra.mxu0 %v3872
        %v3955 = vpop.f32.mrf.mxu0
        %v3956 = vadd.f32 0.0, %v3955
        %v3957 = vpop.f32.mrf.mxu0
        %3958 = vmatprep.mubr.f32.mxu0 0.0
        %3959 = vmatmul.mubr.f32.gmra.mxu0 %v3875
        %v3960 = vpop.f32.mrf.mxu0
        %v3961 = vadd.f32 0.0, %v3960
        %v3962 = vpop.f32.mrf.mxu0
        %3963 = vmatprep.mubr.f32.mxu0 0.0
        %3964 = vmatmul.mubr.f32.gmra.mxu0 %v3878
        %v3965 = vpop.f32.mrf.mxu0
        %v3966 = vadd.f32 0.0, %v3965
        %v3967 = vpop.f32.mrf.mxu0
        %3968 = vmatprep.mubr.f32.mxu0 0.0
        %3969 = vmatmul.mubr.f32.gmra.mxu0 %v3881
        %v3970 = vpop.f32.mrf.mxu0
        %v3971 = vadd.f32 0.0, %v3970
        %v3972 = vpop.f32.mrf.mxu0
        %3973 = vmatprep.mubr.f32.mxu0 0.0
        %3974 = vmatmul.mubr.f32.gmra.mxu0 %v3884
        %v3975 = vpop.f32.mrf.mxu0
        %v3976 = vadd.f32 0.0, %v3975
        %v3977 = vpop.f32.mrf.mxu0
        %3978 = vmatprep.mubr.f32.mxu0 0.0
        %3979 = vmatmul.mubr.f32.gmra.mxu0 %v3887
        %v3980 = vpop.f32.mrf.mxu0
        %v3981 = vadd.f32 0.0, %v3980
        %v3982 = vpop.f32.mrf.mxu0
        %3983 = vdwg.mxu0
        %v3984 = vadd.f32 %v1593, %v3956
        %v3985 = vadd.f32 %v1594, %v3961
        %v3986 = vadd.f32 %v1595, %v3966
        %v3987 = vadd.f32 %v1596, %v3971
        %v3988 = vadd.f32 %v1597, %v3976
        %v3989 = vadd.f32 %v1598, %v3981
        %v3990 = vld [vmem:[%s1253] sm:$0x1]
        %v3992 = vlaneseq
        %v3993 = vshrl.u32 %v3992, 7
        %v3994 = vsub.s32 0, %v3993
        %v3995 = vrot.slane %v3990, %v3994
        %v3997 = vadd.f32 %v3984, %v3995
        %v3998 = vadd.f32 %v3985, %v3995
        %v3999 = vadd.f32 %v3986, %v3995
        %v4000 = vadd.f32 %v3987, %v3995
        %v4001 = vadd.f32 %v3988, %v3995
        %v4002 = vadd.f32 %v3989, %v3995
        %v4003 = vld [vmem:[%s1256] sm:$0x1]
        %v4004 = vld [vmem:[%s1259] sm:$0x1]
        %v4005 = vsel %vm1601, %v3997, 0.0
        %4006 = vadd.xlane.f32.xlu0 %v4005
        %v4007 = vpop.xlane.xlu0 %4006
        %v4008 = vsel %vm1601, %v3998, 0.0
        %4009 = vadd.xlane.f32.xlu0 %v4008
        %v4010 = vpop.xlane.xlu0 %4009
        %v4011 = vsel %vm1601, %v3999, 0.0
        %4012 = vadd.xlane.f32.xlu0 %v4011
        %v4013 = vpop.xlane.xlu0 %4012
        %v4014 = vsel %vm1601, %v4000, 0.0
        %4015 = vadd.xlane.f32.xlu0 %v4014
        %v4016 = vpop.xlane.xlu0 %4015
        %v4017 = vsel %vm1601, %v4001, 0.0
        %4018 = vadd.xlane.f32.xlu0 %v4017
        %v4019 = vpop.xlane.xlu0 %4018
        %v4020 = vsel %vm1601, %v4002, 0.0
        %4021 = vadd.xlane.f32.xlu0 %v4020
        %v4022 = vpop.xlane.xlu0 %4021
        %v4023 = vmul.f32 %v4007, %v1620
        %v4024 = vmul.f32 %v4010, %v1620
        %v4025 = vmul.f32 %v4013, %v1620
        %v4026 = vmul.f32 %v4016, %v1620
        %v4027 = vmul.f32 %v4019, %v1620
        %v4028 = vmul.f32 %v4022, %v1620
        %v4029 = vsub.f32 %v3997, %v4023
        %v4030 = vsub.f32 %v3998, %v4024
        %v4031 = vsub.f32 %v3999, %v4025
        %v4032 = vsub.f32 %v4000, %v4026
        %v4033 = vsub.f32 %v4001, %v4027
        %v4034 = vsub.f32 %v4002, %v4028
        %v4035 = vmul.f32 %v4029, %v4029
        %v4036 = vmul.f32 %v4030, %v4030
        %v4037 = vmul.f32 %v4031, %v4031
        %v4038 = vmul.f32 %v4032, %v4032
        %v4039 = vmul.f32 %v4033, %v4033
        %v4040 = vmul.f32 %v4034, %v4034
        %v4041 = vsel %vm1601, %v4035, 0.0
        %4042 = vadd.xlane.f32.xlu0 %v4041
        %v4043 = vpop.xlane.xlu0 %4042
        %v4044 = vsel %vm1601, %v4036, 0.0
        %4045 = vadd.xlane.f32.xlu0 %v4044
        %v4046 = vpop.xlane.xlu0 %4045
        %v4047 = vsel %vm1601, %v4037, 0.0
        %4048 = vadd.xlane.f32.xlu0 %v4047
        %v4049 = vpop.xlane.xlu0 %4048
        %v4050 = vsel %vm1601, %v4038, 0.0
        %4051 = vadd.xlane.f32.xlu0 %v4050
        %v4052 = vpop.xlane.xlu0 %4051
        %v4053 = vsel %vm1601, %v4039, 0.0
        %4054 = vadd.xlane.f32.xlu0 %v4053
        %v4055 = vpop.xlane.xlu0 %4054
        %v4056 = vsel %vm1601, %v4040, 0.0
        %4057 = vadd.xlane.f32.xlu0 %v4056
        %v4058 = vpop.xlane.xlu0 %4057
        %v4059 = vmul.f32 %v4043, %v1620
        %v4060 = vmul.f32 %v4046, %v1620
        %v4061 = vmul.f32 %v4049, %v1620
        %v4062 = vmul.f32 %v4052, %v1620
        %v4063 = vmul.f32 %v4055, %v1620
        %v4064 = vmul.f32 %v4058, %v1620
        %v4065 = vadd.f32 %v4059, 1e-05
        %v4066 = vadd.f32 %v4060, 1e-05
        %v4067 = vadd.f32 %v4061, 1e-05
        %v4068 = vadd.f32 %v4062, 1e-05
        %v4069 = vadd.f32 %v4063, 1e-05
        %v4070 = vadd.f32 %v4064, 1e-05
        %v4071 = vrsqrt.pop %v4065
        %v4072 = vrsqrt.pop %v4066
        %v4073 = vrsqrt.pop %v4067
        %v4074 = vrsqrt.pop %v4068
        %v4075 = vrsqrt.pop %v4069
        %v4076 = vrsqrt.pop %v4070
        %v4077 = vmul.f32 %v4029, %v4071
        %v4078 = vmul.f32 %v4030, %v4072
        %v4079 = vmul.f32 %v4031, %v4073
        %v4080 = vmul.f32 %v4032, %v4074
        %v4081 = vmul.f32 %v4033, %v4075
        %v4082 = vmul.f32 %v4034, %v4076
        %v4084 = vlaneseq
        %v4085 = vshrl.u32 %v4084, 7
        %v4086 = vsub.s32 0, %v4085
        %v4087 = vrot.slane %v4003, %v4086
        %v4089 = vmul.f32 %v4077, %v4087
        %v4090 = vmul.f32 %v4078, %v4087
        %v4091 = vmul.f32 %v4079, %v4087
        %v4092 = vmul.f32 %v4080, %v4087
        %v4093 = vmul.f32 %v4081, %v4087
        %v4094 = vmul.f32 %v4082, %v4087
        %v4096 = vlaneseq
        %v4097 = vshrl.u32 %v4096, 7
        %v4098 = vsub.s32 0, %v4097
        %v4099 = vrot.slane %v4004, %v4098
        %v4101 = vadd.f32 %v4089, %v4099
        %v4102 = vadd.f32 %v4090, %v4099
        %v4103 = vadd.f32 %v4091, %v4099
        %v4104 = vadd.f32 %v4092, %v4099
        %v4105 = vadd.f32 %v4093, %v4099
        %v4106 = vadd.f32 %v4094, %v4099
        %v4107 = vld [vmem:[%s1264] sm:$0xff]
        %v4108 = vld [vmem:[%s1264 + $0x8] sm:$0xff]
        %v4109 = vld [vmem:[%s1264 + $0x10] sm:$0xff]
        %v4110 = vld [vmem:[%s1264 + $0x18] sm:$0xff]
        %v4111 = vld [vmem:[%s1264 + $0x20] sm:$0xff]
        %v4112 = vld [vmem:[%s1264 + $0x28] sm:$0xff]
        %v4113 = vld [vmem:[%s1264 + $0x30] sm:$0xff]
        %v4114 = vld [vmem:[%s1264 + $0x38] sm:$0xff]
        %v4115 = vld [vmem:[%s1267] sm:$0x1]
        %v4117 = vlaneseq
        %v4118 = vshrl.u32 %v4117, 7
        %v4119 = vsub.s32 0, %v4118
        %v4120 = vrot.slane %v4115, %v4119
        %v4123 = vsel %vm1601, %v4101, 0
        %v4126 = vsel %vm1601, %v4102, 0
        %v4129 = vsel %vm1601, %v4103, 0
        %v4132 = vsel %vm1601, %v4104, 0
        %v4135 = vsel %vm1601, %v4105, 0
        %v4138 = vsel %vm1601, %v4106, 0
        %4140 = vmatprep.subr.mxu0 0.0
        %4141 = vmatpush1.msra.mxu0 0.0
        %4142 = vmatprep.subr.mxu0 0.0
        %4143 = vmatpush1.msra.mxu0 0.0
        %4144 = vmatprep.subr.mxu0 0.0
        %4145 = vmatpush1.msra.mxu0 0.0
        %4146 = vmatprep.subr.mxu0 0.0
        %4147 = vmatpush1.msra.mxu0 0.0
        %4148 = vmatprep.subr.mxu0 0.0
        %4149 = vmatpush1.msra.mxu0 0.0
        %4150 = vmatprep.subr.mxu0 0.0
        %4151 = vmatpush1.msra.mxu0 0.0
        %4152 = vmatprep.subr.mxu0 0.0
        %4153 = vmatpush1.msra.mxu0 0.0
        %4154 = vmatprep.subr.mxu0 0.0
        %4155 = vmatpush1.msra.mxu0 0.0
        %4156 = vmatprep.subr.mxu0 0.0
        %4157 = vmatpush1.msra.mxu0 %v4114
        %4158 = vmatprep.subr.mxu0 0.0
        %4159 = vmatpush1.msra.mxu0 %v4113
        %4160 = vmatprep.subr.mxu0 0.0
        %4161 = vmatpush1.msra.mxu0 %v4112
        %4162 = vmatprep.subr.mxu0 0.0
        %4163 = vmatpush1.msra.mxu0 %v4111
        %4164 = vmatprep.subr.mxu0 0.0
        %4165 = vmatpush1.msra.mxu0 %v4110
        %4166 = vmatprep.subr.mxu0 0.0
        %4167 = vmatpush1.msra.mxu0 %v4109
        %4168 = vmatprep.subr.mxu0 0.0
        %4169 = vmatpush1.msra.mxu0 %v4108
        %4170 = vmatprep.subr.mxu0 0.0
        %4171 = vmatpush1.msra.mxu0 %v4107
        %4172 = vmatprep.subr.mxu0 0.0
        %4173 = vmatpush2.msra.mxu0 0.0
        %4174 = vmatprep.subr.mxu0 0.0
        %4175 = vmatpush2.msra.mxu0 0.0
        %4176 = vmatprep.subr.mxu0 0.0
        %4177 = vmatpush2.msra.mxu0 0.0
        %4178 = vmatprep.subr.mxu0 0.0
        %4179 = vmatpush2.msra.mxu0 0.0
        %4180 = vmatprep.subr.mxu0 0.0
        %4181 = vmatpush2.msra.mxu0 0.0
        %4182 = vmatprep.subr.mxu0 0.0
        %4183 = vmatpush2.msra.mxu0 0.0
        %4184 = vmatprep.subr.mxu0 0.0
        %4185 = vmatpush2.msra.mxu0 0.0
        %4186 = vmatprep.subr.mxu0 0.0
        %4187 = vmatpush2.msra.mxu0 0.0
        %4188 = vmatprep.subr.mxu0 0.0
        %4189 = vmatpush2.msra.mxu0 0.0
        %4190 = vmatprep.subr.mxu0 0.0
        %4191 = vmatpush2.msra.mxu0 0.0
        %4192 = vmatprep.subr.mxu0 0.0
        %4193 = vmatpush2.msra.mxu0 0.0
        %4194 = vmatprep.subr.mxu0 0.0
        %4195 = vmatpush2.msra.mxu0 0.0
        %4196 = vmatprep.subr.mxu0 0.0
        %4197 = vmatpush2.msra.mxu0 0.0
        %4198 = vmatprep.subr.mxu0 0.0
        %4199 = vmatpush2.msra.mxu0 0.0
        %4200 = vmatprep.subr.mxu0 0.0
        %4201 = vmatpush2.msra.mxu0 0.0
        %4202 = vmatprep.subr.mxu0 0.0
        %4203 = vmatpush2.msra.mxu0 0.0
        %4204 = vmatprep.mubr.f32.mxu0 0.0
        %4205 = vmatmul.mubr.f32.gmra.mxu0 %v4123
        %v4206 = vpop.f32.mrf.mxu0
        %v4207 = vadd.f32 %v4120, %v4206
        %v4208 = vpop.f32.mrf.mxu0
        %4209 = vmatprep.mubr.f32.mxu0 0.0
        %4210 = vmatmul.mubr.f32.gmra.mxu0 %v4126
        %v4211 = vpop.f32.mrf.mxu0
        %v4212 = vadd.f32 %v4120, %v4211
        %v4213 = vpop.f32.mrf.mxu0
        %4214 = vmatprep.mubr.f32.mxu0 0.0
        %4215 = vmatmul.mubr.f32.gmra.mxu0 %v4129
        %v4216 = vpop.f32.mrf.mxu0
        %v4217 = vadd.f32 %v4120, %v4216
        %v4218 = vpop.f32.mrf.mxu0
        %4219 = vmatprep.mubr.f32.mxu0 0.0
        %4220 = vmatmul.mubr.f32.gmra.mxu0 %v4132
        %v4221 = vpop.f32.mrf.mxu0
        %v4222 = vadd.f32 %v4120, %v4221
        %v4223 = vpop.f32.mrf.mxu0
        %4224 = vmatprep.mubr.f32.mxu0 0.0
        %4225 = vmatmul.mubr.f32.gmra.mxu0 %v4135
        %v4226 = vpop.f32.mrf.mxu0
        %v4227 = vadd.f32 %v4120, %v4226
        %v4228 = vpop.f32.mrf.mxu0
        %4229 = vmatprep.mubr.f32.mxu0 0.0
        %4230 = vmatmul.mubr.f32.gmra.mxu0 %v4138
        %v4231 = vpop.f32.mrf.mxu0
        %v4232 = vadd.f32 %v4120, %v4231
        %v4233 = vpop.f32.mrf.mxu0
        %4234 = vdwg.mxu0
        %v4235 = vmax.f32 %v4207, 0.0
        %v4236 = vmax.f32 %v4212, 0.0
        %v4237 = vmax.f32 %v4217, 0.0
        %v4238 = vmax.f32 %v4222, 0.0
        %v4239 = vmax.f32 %v4227, 0.0
        %v4240 = vmax.f32 %v4232, 0.0
        %v4241 = vld [vmem:[%s1272] sm:$0xff]
        %v4242 = vld [vmem:[%s1272 + $0x8] sm:$0xff]
        %v4243 = vld [vmem:[%s1275] sm:$0x1]
        %v4245 = vlaneseq
        %v4246 = vshrl.u32 %v4245, 7
        %v4247 = vsub.s32 0, %v4246
        %v4248 = vrot.slane %v4243, %v4247
        %v4251 = vsel %vm1862, %v4235, 0
        %v4254 = vsel %vm1862, %v4236, 0
        %v4257 = vsel %vm1862, %v4237, 0
        %v4260 = vsel %vm1862, %v4238, 0
        %v4263 = vsel %vm1862, %v4239, 0
        %v4266 = vsel %vm1862, %v4240, 0
        %4268 = vmatprep.subr.mxu0 0.0
        %4269 = vmatpush1.msra.mxu0 0.0
        %4270 = vmatprep.subr.mxu0 0.0
        %4271 = vmatpush1.msra.mxu0 0.0
        %4272 = vmatprep.subr.mxu0 0.0
        %4273 = vmatpush1.msra.mxu0 0.0
        %4274 = vmatprep.subr.mxu0 0.0
        %4275 = vmatpush1.msra.mxu0 0.0
        %4276 = vmatprep.subr.mxu0 0.0
        %4277 = vmatpush1.msra.mxu0 0.0
        %4278 = vmatprep.subr.mxu0 0.0
        %4279 = vmatpush1.msra.mxu0 0.0
        %4280 = vmatprep.subr.mxu0 0.0
        %4281 = vmatpush1.msra.mxu0 0.0
        %4282 = vmatprep.subr.mxu0 0.0
        %4283 = vmatpush1.msra.mxu0 0.0
        %4284 = vmatprep.subr.mxu0 0.0
        %4285 = vmatpush1.msra.mxu0 0.0
        %4286 = vmatprep.subr.mxu0 0.0
        %4287 = vmatpush1.msra.mxu0 0.0
        %4288 = vmatprep.subr.mxu0 0.0
        %4289 = vmatpush1.msra.mxu0 0.0
        %4290 = vmatprep.subr.mxu0 0.0
        %4291 = vmatpush1.msra.mxu0 0.0
        %4292 = vmatprep.subr.mxu0 0.0
        %4293 = vmatpush1.msra.mxu0 0.0
        %4294 = vmatprep.subr.mxu0 0.0
        %4295 = vmatpush1.msra.mxu0 0.0
        %4296 = vmatprep.subr.mxu0 0.0
        %4297 = vmatpush1.msra.mxu0 %v4242
        %4298 = vmatprep.subr.mxu0 0.0
        %4299 = vmatpush1.msra.mxu0 %v4241
        %4300 = vmatprep.subr.mxu0 0.0
        %4301 = vmatpush2.msra.mxu0 0.0
        %4302 = vmatprep.subr.mxu0 0.0
        %4303 = vmatpush2.msra.mxu0 0.0
        %4304 = vmatprep.subr.mxu0 0.0
        %4305 = vmatpush2.msra.mxu0 0.0
        %4306 = vmatprep.subr.mxu0 0.0
        %4307 = vmatpush2.msra.mxu0 0.0
        %4308 = vmatprep.subr.mxu0 0.0
        %4309 = vmatpush2.msra.mxu0 0.0
        %4310 = vmatprep.subr.mxu0 0.0
        %4311 = vmatpush2.msra.mxu0 0.0
        %4312 = vmatprep.subr.mxu0 0.0
        %4313 = vmatpush2.msra.mxu0 0.0
        %4314 = vmatprep.subr.mxu0 0.0
        %4315 = vmatpush2.msra.mxu0 0.0
        %4316 = vmatprep.subr.mxu0 0.0
        %4317 = vmatpush2.msra.mxu0 0.0
        %4318 = vmatprep.subr.mxu0 0.0
        %4319 = vmatpush2.msra.mxu0 0.0
        %4320 = vmatprep.subr.mxu0 0.0
        %4321 = vmatpush2.msra.mxu0 0.0
        %4322 = vmatprep.subr.mxu0 0.0
        %4323 = vmatpush2.msra.mxu0 0.0
        %4324 = vmatprep.subr.mxu0 0.0
        %4325 = vmatpush2.msra.mxu0 0.0
        %4326 = vmatprep.subr.mxu0 0.0
        %4327 = vmatpush2.msra.mxu0 0.0
        %4328 = vmatprep.subr.mxu0 0.0
        %4329 = vmatpush2.msra.mxu0 0.0
        %4330 = vmatprep.subr.mxu0 0.0
        %4331 = vmatpush2.msra.mxu0 0.0
        %4332 = vmatprep.mubr.f32.mxu0 0.0
        %4333 = vmatmul.mubr.f32.gmra.mxu0 %v4251
        %v4334 = vpop.f32.mrf.mxu0
        %v4335 = vadd.f32 %v4248, %v4334
        %v4336 = vpop.f32.mrf.mxu0
        %4337 = vmatprep.mubr.f32.mxu0 0.0
        %4338 = vmatmul.mubr.f32.gmra.mxu0 %v4254
        %v4339 = vpop.f32.mrf.mxu0
        %v4340 = vadd.f32 %v4248, %v4339
        %v4341 = vpop.f32.mrf.mxu0
        %4342 = vmatprep.mubr.f32.mxu0 0.0
        %4343 = vmatmul.mubr.f32.gmra.mxu0 %v4257
        %v4344 = vpop.f32.mrf.mxu0
        %v4345 = vadd.f32 %v4248, %v4344
        %v4346 = vpop.f32.mrf.mxu0
        %4347 = vmatprep.mubr.f32.mxu0 0.0
        %4348 = vmatmul.mubr.f32.gmra.mxu0 %v4260
        %v4349 = vpop.f32.mrf.mxu0
        %v4350 = vadd.f32 %v4248, %v4349
        %v4351 = vpop.f32.mrf.mxu0
        %4352 = vmatprep.mubr.f32.mxu0 0.0
        %4353 = vmatmul.mubr.f32.gmra.mxu0 %v4263
        %v4354 = vpop.f32.mrf.mxu0
        %v4355 = vadd.f32 %v4248, %v4354
        %v4356 = vpop.f32.mrf.mxu0
        %4357 = vmatprep.mubr.f32.mxu0 0.0
        %4358 = vmatmul.mubr.f32.gmra.mxu0 %v4266
        %v4359 = vpop.f32.mrf.mxu0
        %v4360 = vadd.f32 %v4248, %v4359
        %v4361 = vpop.f32.mrf.mxu0
        %4362 = vdwg.mxu0
        %v4363 = vmul.f32 %v4335, 0.1
        %v4364 = vmul.f32 %v4340, 0.1
        %v4365 = vmul.f32 %v4345, 0.1
        %v4366 = vmul.f32 %v4350, 0.1
        %v4367 = vmul.f32 %v4355, 0.1
        %v4368 = vmul.f32 %v4360, 0.1
        %v4369 = vld [vmem:[%s1278] sm:$0x1]
        %v4370 = vld [vmem:[%s1281] sm:$0x1]
        %v4372 = vlaneseq
        %v4373 = vshrl.u32 %v4372, 7
        %v4374 = vsub.s32 0, %v4373
        %v4375 = vrot.slane %v4369, %v4374
        %v4377 = vmul.f32 %v4077, %v4375
        %v4378 = vmul.f32 %v4078, %v4375
        %v4379 = vmul.f32 %v4079, %v4375
        %v4380 = vmul.f32 %v4080, %v4375
        %v4381 = vmul.f32 %v4081, %v4375
        %v4382 = vmul.f32 %v4082, %v4375
        %v4384 = vlaneseq
        %v4385 = vshrl.u32 %v4384, 7
        %v4386 = vsub.s32 0, %v4385
        %v4387 = vrot.slane %v4370, %v4386
        %v4389 = vadd.f32 %v4377, %v4387
        %v4390 = vadd.f32 %v4378, %v4387
        %v4391 = vadd.f32 %v4379, %v4387
        %v4392 = vadd.f32 %v4380, %v4387
        %v4393 = vadd.f32 %v4381, %v4387
        %v4394 = vadd.f32 %v4382, %v4387
        %v4395 = vld [vmem:[%s1286] sm:$0xff]
        %v4396 = vld [vmem:[%s1286 + $0x8] sm:$0xff]
        %v4397 = vld [vmem:[%s1286 + $0x10] sm:$0xff]
        %v4398 = vld [vmem:[%s1286 + $0x18] sm:$0xff]
        %v4399 = vld [vmem:[%s1286 + $0x20] sm:$0xff]
        %v4400 = vld [vmem:[%s1286 + $0x28] sm:$0xff]
        %v4401 = vld [vmem:[%s1286 + $0x30] sm:$0xff]
        %v4402 = vld [vmem:[%s1286 + $0x38] sm:$0xff]
        %v4403 = vld [vmem:[%s1286 + $0x40] sm:$0xff]
        %v4404 = vld [vmem:[%s1286 + $0x48] sm:$0xff]
        %v4405 = vld [vmem:[%s1286 + $0x50] sm:$0xff]
        %v4406 = vld [vmem:[%s1286 + $0x58] sm:$0xff]
        %v4407 = vld [vmem:[%s1286 + $0x60] sm:$0xff]
        %v4408 = vld [vmem:[%s1286 + $0x68] sm:$0xff]
        %v4409 = vld [vmem:[%s1286 + $0x70] sm:$0xff]
        %v4410 = vld [vmem:[%s1286 + $0x78] sm:$0xff]
        %v4411 = vld [vmem:[%s1290] sm:$0x3]
        %v4413 = vlaneseq
        %v4414 = vshrl.u32 %v4413, 7
        %v4415 = vsub.s32 0, %v4414
        %v4416 = vrot.slane %v4411, %v4415
        %v4417 = vlaneseq
        %v4418 = vshrl.u32 %v4417, 7
        %v4419 = vsub.s32 1, %v4418
        %v4420 = vrot.slane %v4411, %v4419
        %v4424 = vsel %vm1601, %v4389, 0
        %v4427 = vsel %vm1601, %v4390, 0
        %v4430 = vsel %vm1601, %v4391, 0
        %v4433 = vsel %vm1601, %v4392, 0
        %v4436 = vsel %vm1601, %v4393, 0
        %v4439 = vsel %vm1601, %v4394, 0
        %4441 = vmatprep.subr.mxu0 0.0
        %4442 = vmatpush1.msra.mxu0 0.0
        %4443 = vmatprep.subr.mxu0 0.0
        %4444 = vmatpush1.msra.mxu0 0.0
        %4445 = vmatprep.subr.mxu0 0.0
        %4446 = vmatpush1.msra.mxu0 0.0
        %4447 = vmatprep.subr.mxu0 0.0
        %4448 = vmatpush1.msra.mxu0 0.0
        %4449 = vmatprep.subr.mxu0 0.0
        %4450 = vmatpush1.msra.mxu0 0.0
        %4451 = vmatprep.subr.mxu0 0.0
        %4452 = vmatpush1.msra.mxu0 0.0
        %4453 = vmatprep.subr.mxu0 0.0
        %4454 = vmatpush1.msra.mxu0 0.0
        %4455 = vmatprep.subr.mxu0 0.0
        %4456 = vmatpush1.msra.mxu0 0.0
        %4457 = vmatprep.subr.mxu0 %v4410
        %4458 = vmatpush1.msra.mxu0 %v4409
        %4459 = vmatprep.subr.mxu0 %v4408
        %4460 = vmatpush1.msra.mxu0 %v4407
        %4461 = vmatprep.subr.mxu0 %v4406
        %4462 = vmatpush1.msra.mxu0 %v4405
        %4463 = vmatprep.subr.mxu0 %v4404
        %4464 = vmatpush1.msra.mxu0 %v4403
        %4465 = vmatprep.subr.mxu0 %v4402
        %4466 = vmatpush1.msra.mxu0 %v4401
        %4467 = vmatprep.subr.mxu0 %v4400
        %4468 = vmatpush1.msra.mxu0 %v4399
        %4469 = vmatprep.subr.mxu0 %v4398
        %4470 = vmatpush1.msra.mxu0 %v4397
        %4471 = vmatprep.subr.mxu0 %v4396
        %4472 = vmatpush1.msra.mxu0 %v4395
        %4473 = vmatprep.subr.mxu0 0.0
        %4474 = vmatpush2.msra.mxu0 0.0
        %4475 = vmatprep.subr.mxu0 0.0
        %4476 = vmatpush2.msra.mxu0 0.0
        %4477 = vmatprep.subr.mxu0 0.0
        %4478 = vmatpush2.msra.mxu0 0.0
        %4479 = vmatprep.subr.mxu0 0.0
        %4480 = vmatpush2.msra.mxu0 0.0
        %4481 = vmatprep.subr.mxu0 0.0
        %4482 = vmatpush2.msra.mxu0 0.0
        %4483 = vmatprep.subr.mxu0 0.0
        %4484 = vmatpush2.msra.mxu0 0.0
        %4485 = vmatprep.subr.mxu0 0.0
        %4486 = vmatpush2.msra.mxu0 0.0
        %4487 = vmatprep.subr.mxu0 0.0
        %4488 = vmatpush2.msra.mxu0 0.0
        %4489 = vmatprep.subr.mxu0 0.0
        %4490 = vmatpush2.msra.mxu0 0.0
        %4491 = vmatprep.subr.mxu0 0.0
        %4492 = vmatpush2.msra.mxu0 0.0
        %4493 = vmatprep.subr.mxu0 0.0
        %4494 = vmatpush2.msra.mxu0 0.0
        %4495 = vmatprep.subr.mxu0 0.0
        %4496 = vmatpush2.msra.mxu0 0.0
        %4497 = vmatprep.subr.mxu0 0.0
        %4498 = vmatpush2.msra.mxu0 0.0
        %4499 = vmatprep.subr.mxu0 0.0
        %4500 = vmatpush2.msra.mxu0 0.0
        %4501 = vmatprep.subr.mxu0 0.0
        %4502 = vmatpush2.msra.mxu0 0.0
        %4503 = vmatprep.subr.mxu0 0.0
        %4504 = vmatpush2.msra.mxu0 0.0
        %4505 = vmatprep.mubr.f32.mxu0 0.0
        %4506 = vmatmul.mubr.f32.gmra.mxu0 %v4424
        %v4507 = vpop.f32.mrf.mxu0
        %v4508 = vadd.f32 %v4416, %v4507
        %v4509 = vpop.f32.mrf.mxu0
        %v4510 = vadd.f32 %v4420, %v4509
        %4511 = vmatprep.mubr.f32.mxu0 0.0
        %4512 = vmatmul.mubr.f32.gmra.mxu0 %v4427
        %v4513 = vpop.f32.mrf.mxu0
        %v4514 = vadd.f32 %v4416, %v4513
        %v4515 = vpop.f32.mrf.mxu0
        %v4516 = vadd.f32 %v4420, %v4515
        %4517 = vmatprep.mubr.f32.mxu0 0.0
        %4518 = vmatmul.mubr.f32.gmra.mxu0 %v4430
        %v4519 = vpop.f32.mrf.mxu0
        %v4520 = vadd.f32 %v4416, %v4519
        %v4521 = vpop.f32.mrf.mxu0
        %v4522 = vadd.f32 %v4420, %v4521
        %4523 = vmatprep.mubr.f32.mxu0 0.0
        %4524 = vmatmul.mubr.f32.gmra.mxu0 %v4433
        %v4525 = vpop.f32.mrf.mxu0
        %v4526 = vadd.f32 %v4416, %v4525
        %v4527 = vpop.f32.mrf.mxu0
        %v4528 = vadd.f32 %v4420, %v4527
        %4529 = vmatprep.mubr.f32.mxu0 0.0
        %4530 = vmatmul.mubr.f32.gmra.mxu0 %v4436
        %v4531 = vpop.f32.mrf.mxu0
        %v4532 = vadd.f32 %v4416, %v4531
        %v4533 = vpop.f32.mrf.mxu0
        %v4534 = vadd.f32 %v4420, %v4533
        %4535 = vmatprep.mubr.f32.mxu0 0.0
        %4536 = vmatmul.mubr.f32.gmra.mxu0 %v4439
        %v4537 = vpop.f32.mrf.mxu0
        %v4538 = vadd.f32 %v4416, %v4537
        %v4539 = vpop.f32.mrf.mxu0
        %v4540 = vadd.f32 %v4420, %v4539
        %4541 = vdwg.mxu0
        %v4542 = vmul.f32 %v4508, -1.702
        %v4543 = vmul.f32 %v4510, -1.702
        %v4544 = vmul.f32 %v4514, -1.702
        %v4545 = vmul.f32 %v4516, -1.702
        %v4546 = vmul.f32 %v4520, -1.702
        %v4547 = vmul.f32 %v4522, -1.702
        %v4548 = vmul.f32 %v4526, -1.702
        %v4549 = vmul.f32 %v4528, -1.702
        %v4550 = vmul.f32 %v4532, -1.702
        %v4551 = vmul.f32 %v4534, -1.702
        %v4552 = vmul.f32 %v4538, -1.702
        %v4553 = vmul.f32 %v4540, -1.702
        %v4554 = vmul.f32 %v4542, 1.442695
        %v4555 = vpow.pop %v4554
        %v4556 = vmul.f32 %v4543, 1.442695
        %v4557 = vpow.pop %v4556
        %v4558 = vmul.f32 %v4544, 1.442695
        %v4559 = vpow.pop %v4558
        %v4560 = vmul.f32 %v4545, 1.442695
        %v4561 = vpow.pop %v4560
        %v4562 = vmul.f32 %v4546, 1.442695
        %v4563 = vpow.pop %v4562
        %v4564 = vmul.f32 %v4547, 1.442695
        %v4565 = vpow.pop %v4564
        %v4566 = vmul.f32 %v4548, 1.442695
        %v4567 = vpow.pop %v4566
        %v4568 = vmul.f32 %v4549, 1.442695
        %v4569 = vpow.pop %v4568
        %v4570 = vmul.f32 %v4550, 1.442695
        %v4571 = vpow.pop %v4570
        %v4572 = vmul.f32 %v4551, 1.442695
        %v4573 = vpow.pop %v4572
        %v4574 = vmul.f32 %v4552, 1.442695
        %v4575 = vpow.pop %v4574
        %v4576 = vmul.f32 %v4553, 1.442695
        %v4577 = vpow.pop %v4576
        %v4578 = vadd.f32 %v4555, 1.0
        %v4579 = vadd.f32 %v4557, 1.0
        %v4580 = vadd.f32 %v4559, 1.0
        %v4581 = vadd.f32 %v4561, 1.0
        %v4582 = vadd.f32 %v4563, 1.0
        %v4583 = vadd.f32 %v4565, 1.0
        %v4584 = vadd.f32 %v4567, 1.0
        %v4585 = vadd.f32 %v4569, 1.0
        %v4586 = vadd.f32 %v4571, 1.0
        %v4587 = vadd.f32 %v4573, 1.0
        %v4588 = vadd.f32 %v4575, 1.0
        %v4589 = vadd.f32 %v4577, 1.0
        %v4590 = vrcp.pop %v4578
        %v4591 = vmul.f32 1.0, %v4590
        %v4592 = vrcp.pop %v4579
        %v4593 = vmul.f32 1.0, %v4592
        %v4594 = vrcp.pop %v4580
        %v4595 = vmul.f32 1.0, %v4594
        %v4596 = vrcp.pop %v4581
        %v4597 = vmul.f32 1.0, %v4596
        %v4598 = vrcp.pop %v4582
        %v4599 = vmul.f32 1.0, %v4598
        %v4600 = vrcp.pop %v4583
        %v4601 = vmul.f32 1.0, %v4600
        %v4602 = vrcp.pop %v4584
        %v4603 = vmul.f32 1.0, %v4602
        %v4604 = vrcp.pop %v4585
        %v4605 = vmul.f32 1.0, %v4604
        %v4606 = vrcp.pop %v4586
        %v4607 = vmul.f32 1.0, %v4606
        %v4608 = vrcp.pop %v4587
        %v4609 = vmul.f32 1.0, %v4608
        %v4610 = vrcp.pop %v4588
        %v4611 = vmul.f32 1.0, %v4610
        %v4612 = vrcp.pop %v4589
        %v4613 = vmul.f32 1.0, %v4612
        %v4614 = vmul.f32 %v4508, %v4591
        %v4615 = vmul.f32 %v4510, %v4593
        %v4616 = vmul.f32 %v4514, %v4595
        %v4617 = vmul.f32 %v4516, %v4597
        %v4618 = vmul.f32 %v4520, %v4599
        %v4619 = vmul.f32 %v4522, %v4601
        %v4620 = vmul.f32 %v4526, %v4603
        %v4621 = vmul.f32 %v4528, %v4605
        %v4622 = vmul.f32 %v4532, %v4607
        %v4623 = vmul.f32 %v4534, %v4609
        %v4624 = vmul.f32 %v4538, %v4611
        %v4625 = vmul.f32 %v4540, %v4613
        %v4626 = vld [vmem:[%s1295] sm:$0xff]
        %v4627 = vld [vmem:[%s1295 + $0x8] sm:$0xff]
        %v4628 = vld [vmem:[%s1295 + $0x10] sm:$0xff]
        %v4629 = vld [vmem:[%s1295 + $0x18] sm:$0xff]
        %v4630 = vld [vmem:[%s1295 + $0x20] sm:$0xff]
        %v4631 = vld [vmem:[%s1295 + $0x28] sm:$0xff]
        %v4632 = vld [vmem:[%s1295 + $0x30] sm:$0xff]
        %v4633 = vld [vmem:[%s1295 + $0x38] sm:$0xff]
        %v4634 = vld [vmem:[%s1295 + $0x40] sm:$0xff]
        %v4635 = vld [vmem:[%s1295 + $0x48] sm:$0xff]
        %v4636 = vld [vmem:[%s1295 + $0x50] sm:$0xff]
        %v4637 = vld [vmem:[%s1295 + $0x58] sm:$0xff]
        %v4638 = vld [vmem:[%s1295 + $0x60] sm:$0xff]
        %v4639 = vld [vmem:[%s1295 + $0x68] sm:$0xff]
        %v4640 = vld [vmem:[%s1295 + $0x70] sm:$0xff]
        %v4641 = vld [vmem:[%s1295 + $0x78] sm:$0xff]
        %v4642 = vld [vmem:[%s1295 + $0x80] sm:$0xff]
        %v4643 = vld [vmem:[%s1295 + $0x88] sm:$0xff]
        %v4644 = vld [vmem:[%s1295 + $0x90] sm:$0xff]
        %v4645 = vld [vmem:[%s1295 + $0x98] sm:$0xff]
        %v4646 = vld [vmem:[%s1295 + $0xa0] sm:$0xff]
        %v4647 = vld [vmem:[%s1295 + $0xa8] sm:$0xff]
        %v4648 = vld [vmem:[%s1295 + $0xb0] sm:$0xff]
        %v4649 = vld [vmem:[%s1295 + $0xb8] sm:$0xff]
        %v4650 = vld [vmem:[%s1295 + $0xc0] sm:$0xff]
        %v4651 = vld [vmem:[%s1295 + $0xc8] sm:$0xff]
        %v4652 = vld [vmem:[%s1295 + $0xd0] sm:$0xff]
        %v4653 = vld [vmem:[%s1295 + $0xd8] sm:$0xff]
        %v4654 = vld [vmem:[%s1295 + $0xe0] sm:$0xff]
        %v4655 = vld [vmem:[%s1295 + $0xe8] sm:$0xff]
        %v4656 = vld [vmem:[%s1295 + $0xf0] sm:$0xff]
        %v4657 = vld [vmem:[%s1295 + $0xf8] sm:$0xff]
        %v4658 = vld [vmem:[%s1298] sm:$0x1]
        %v4660 = vlaneseq
        %v4661 = vshrl.u32 %v4660, 7
        %v4662 = vsub.s32 0, %v4661
        %v4663 = vrot.slane %v4658, %v4662
        %4665 = vmatprep.subr.mxu0 0.0
        %4666 = vmatpush1.msra.mxu0 %v4641
        %4667 = vmatprep.subr.mxu0 0.0
        %4668 = vmatpush1.msra.mxu0 %v4640
        %4669 = vmatprep.subr.mxu0 0.0
        %4670 = vmatpush1.msra.mxu0 %v4639
        %4671 = vmatprep.subr.mxu0 0.0
        %4672 = vmatpush1.msra.mxu0 %v4638
        %4673 = vmatprep.subr.mxu0 0.0
        %4674 = vmatpush1.msra.mxu0 %v4637
        %4675 = vmatprep.subr.mxu0 0.0
        %4676 = vmatpush1.msra.mxu0 %v4636
        %4677 = vmatprep.subr.mxu0 0.0
        %4678 = vmatpush1.msra.mxu0 %v4635
        %4679 = vmatprep.subr.mxu0 0.0
        %4680 = vmatpush1.msra.mxu0 %v4634
        %4681 = vmatprep.subr.mxu0 0.0
        %4682 = vmatpush1.msra.mxu0 %v4633
        %4683 = vmatprep.subr.mxu0 0.0
        %4684 = vmatpush1.msra.mxu0 %v4632
        %4685 = vmatprep.subr.mxu0 0.0
        %4686 = vmatpush1.msra.mxu0 %v4631
        %4687 = vmatprep.subr.mxu0 0.0
        %4688 = vmatpush1.msra.mxu0 %v4630
        %4689 = vmatprep.subr.mxu0 0.0
        %4690 = vmatpush1.msra.mxu0 %v4629
        %4691 = vmatprep.subr.mxu0 0.0
        %4692 = vmatpush1.msra.mxu0 %v4628
        %4693 = vmatprep.subr.mxu0 0.0
        %4694 = vmatpush1.msra.mxu0 %v4627
        %4695 = vmatprep.subr.mxu0 0.0
        %4696 = vmatpush1.msra.mxu0 %v4626
        %4697 = vmatprep.subr.mxu0 0.0
        %4698 = vmatpush2.msra.mxu0 %v4657
        %4699 = vmatprep.subr.mxu0 0.0
        %4700 = vmatpush2.msra.mxu0 %v4656
        %4701 = vmatprep.subr.mxu0 0.0
        %4702 = vmatpush2.msra.mxu0 %v4655
        %4703 = vmatprep.subr.mxu0 0.0
        %4704 = vmatpush2.msra.mxu0 %v4654
        %4705 = vmatprep.subr.mxu0 0.0
        %4706 = vmatpush2.msra.mxu0 %v4653
        %4707 = vmatprep.subr.mxu0 0.0
        %4708 = vmatpush2.msra.mxu0 %v4652
        %4709 = vmatprep.subr.mxu0 0.0
        %4710 = vmatpush2.msra.mxu0 %v4651
        %4711 = vmatprep.subr.mxu0 0.0
        %4712 = vmatpush2.msra.mxu0 %v4650
        %4713 = vmatprep.subr.mxu0 0.0
        %4714 = vmatpush2.msra.mxu0 %v4649
        %4715 = vmatprep.subr.mxu0 0.0
        %4716 = vmatpush2.msra.mxu0 %v4648
        %4717 = vmatprep.subr.mxu0 0.0
        %4718 = vmatpush2.msra.mxu0 %v4647
        %4719 = vmatprep.subr.mxu0 0.0
        %4720 = vmatpush2.msra.mxu0 %v4646
        %4721 = vmatprep.subr.mxu0 0.0
        %4722 = vmatpush2.msra.mxu0 %v4645
        %4723 = vmatprep.subr.mxu0 0.0
        %4724 = vmatpush2.msra.mxu0 %v4644
        %4725 = vmatprep.subr.mxu0 0.0
        %4726 = vmatpush2.msra.mxu0 %v4643
        %4727 = vmatprep.subr.mxu0 0.0
        %4728 = vmatpush2.msra.mxu0 %v4642
        %4729 = vmatprep.mubr.f32.mxu0 %v4615
        %4730 = vmatmul.mubr.f32.gmra.mxu0 %v4614
        %v4731 = vpop.f32.mrf.mxu0
        %v4732 = vadd.f32 %v4663, %v4731
        %v4733 = vpop.f32.mrf.mxu0
        %4734 = vmatprep.mubr.f32.mxu0 %v4617
        %4735 = vmatmul.mubr.f32.gmra.mxu0 %v4616
        %v4736 = vpop.f32.mrf.mxu0
        %v4737 = vadd.f32 %v4663, %v4736
        %v4738 = vpop.f32.mrf.mxu0
        %4739 = vmatprep.mubr.f32.mxu0 %v4619
        %4740 = vmatmul.mubr.f32.gmra.mxu0 %v4618
        %v4741 = vpop.f32.mrf.mxu0
        %v4742 = vadd.f32 %v4663, %v4741
        %v4743 = vpop.f32.mrf.mxu0
        %4744 = vmatprep.mubr.f32.mxu0 %v4621
        %4745 = vmatmul.mubr.f32.gmra.mxu0 %v4620
        %v4746 = vpop.f32.mrf.mxu0
        %v4747 = vadd.f32 %v4663, %v4746
        %v4748 = vpop.f32.mrf.mxu0
        %4749 = vmatprep.mubr.f32.mxu0 %v4623
        %4750 = vmatmul.mubr.f32.gmra.mxu0 %v4622
        %v4751 = vpop.f32.mrf.mxu0
        %v4752 = vadd.f32 %v4663, %v4751
        %v4753 = vpop.f32.mrf.mxu0
        %4754 = vmatprep.mubr.f32.mxu0 %v4625
        %4755 = vmatmul.mubr.f32.gmra.mxu0 %v4624
        %v4756 = vpop.f32.mrf.mxu0
        %v4757 = vadd.f32 %v4663, %v4756
        %v4758 = vpop.f32.mrf.mxu0
        %4759 = vdwg.mxu0
        %v4760 = vadd.f32 %v3997, %v4732
        %v4761 = vadd.f32 %v3998, %v4737
        %v4762 = vadd.f32 %v3999, %v4742
        %v4763 = vadd.f32 %v4000, %v4747
        %v4764 = vadd.f32 %v4001, %v4752
        %v4765 = vadd.f32 %v4002, %v4757
        %v4766 = vadd.f32 %v4760, %v4363
        %v4767 = vadd.f32 %v4761, %v4364
        %v4768 = vadd.f32 %v4762, %v4365
        %v4769 = vadd.f32 %v4763, %v4366
        %v4770 = vadd.f32 %v4764, %v4367
        %v4771 = vadd.f32 %v4765, %v4368
        %4772 = vst.msk [vmem:[#allocation2] sm:$0xff] %vm1601, %v4766
        %4773 = vst.msk [vmem:[#allocation2 + $0x8] sm:$0xff] %vm1601, %v4767
        %4774 = vst.msk [vmem:[#allocation2 + $0x10] sm:$0xff] %vm1601, %v4768
        %4775 = vst.msk [vmem:[#allocation2 + $0x18] sm:$0xff] %vm1601, %v4769
        %4776 = vst.msk [vmem:[#allocation2 + $0x20] sm:$0xff] %vm1601, %v4770
        %4777 = vst.msk [vmem:[#allocation2 + $0x28] sm:$0xff] %vm1601, %v4771
        %p4778 = scmp.eq.s32.totalorder %s83, 1
        // Predicated region
        $region153: #{tpu_custom_call.1} parent=147 // pred_check
          %p4779 = pneg %p4778
        $region154: #{tpu_custom_call.1} parent=147 // pred_check_branch
          %4781 = sbr.rel (%p4779) target = $region156
        $region155: #{tpu_custom_call.1} parent=147 // pred_region
          %v4782 = vld [vmem:[%s51] sm:$0x1]
          %v4783 = vld [vmem:[%s53] sm:$0x1]
          %v4786 = vrot.slane %v4769, 7
          %vm4787 = vcmask 1041409
          %v4788 = vsel %vm4787, %v4786, %v4766
          %vm4790 = vcmask 517120
          %v4791 = vsel %vm4790, %v4788, 0.0
          %4792 = vadd.xlane.f32.xlu0 %v4791
          %v4793 = vpop.xlane.xlu0 %4792
          %v4794 = vmul.f32 %v4793, %v1620
          %v4796 = vrot.slane %v4794, 1
          %v4799 = vsub.f32 %v4766, %v4794
          %v4800 = vsub.f32 %v4769, %v4796
          %v4801 = vmul.f32 %v4799, %v4799
          %v4802 = vmul.f32 %v4800, %v4800
          %v4805 = vrot.slane %v4802, 7
          %v4806 = vsel %vm4787, %v4805, %v4801
          %v4808 = vsel %vm4790, %v4806, 0.0
          %4809 = vadd.xlane.f32.xlu0 %v4808
          %v4810 = vpop.xlane.xlu0 %4809
          %v4811 = vmul.f32 %v4810, %v1620
          %v4812 = vadd.f32 %v4811, 1e-05
          %v4813 = vrsqrt.pop %v4812
          %v4815 = vrot.slane %v4813, 1
          %v4818 = vmul.f32 %v4799, %v4813
          %v4819 = vmul.f32 %v4800, %v4815
          %v4821 = vlaneseq
          %v4822 = vshrl.u32 %v4821, 7
          %v4823 = vsub.s32 0, %v4822
          %v4824 = vrot.slane %v4782, %v4823
          %v4826 = vmul.f32 %v4818, %v4824
          %v4827 = vmul.f32 %v4819, %v4824
          %v4829 = vlaneseq
          %v4830 = vshrl.u32 %v4829, 7
          %v4831 = vsub.s32 0, %v4830
          %v4832 = vrot.slane %v4783, %v4831
          %v4834 = vadd.f32 %v4826, %v4832
          %v4835 = vadd.f32 %v4827, %v4832
          %v4836 = vld [vmem:[%s55] sm:$0xff]
          %v4837 = vld [vmem:[%s55 + $0x8] sm:$0xff]
          %v4838 = vld [vmem:[%s55 + $0x10] sm:$0xff]
          %v4839 = vld [vmem:[%s55 + $0x18] sm:$0xff]
          %v4840 = vld [vmem:[%s55 + $0x20] sm:$0xff]
          %v4841 = vld [vmem:[%s55 + $0x28] sm:$0xff]
          %v4842 = vld [vmem:[%s55 + $0x30] sm:$0xff]
          %v4843 = vld [vmem:[%s55 + $0x38] sm:$0xff]
          %v4846 = vrot.slane %v4835, 7
          %v4847 = vsel %vm4787, %v4846, %v4834
          %v4848 = vsel %vm1601, %v4847, 0
          %4850 = vmatprep.subr.mxu0 0.0
          %4851 = vmatpush1.msra.mxu0 0.0
          %4852 = vmatprep.subr.mxu0 0.0
          %4853 = vmatpush1.msra.mxu0 0.0
          %4854 = vmatprep.subr.mxu0 0.0
          %4855 = vmatpush1.msra.mxu0 0.0
          %4856 = vmatprep.subr.mxu0 0.0
          %4857 = vmatpush1.msra.mxu0 0.0
          %4858 = vmatprep.subr.mxu0 0.0
          %4859 = vmatpush1.msra.mxu0 0.0
          %4860 = vmatprep.subr.mxu0 0.0
          %4861 = vmatpush1.msra.mxu0 0.0
          %4862 = vmatprep.subr.mxu0 0.0
          %4863 = vmatpush1.msra.mxu0 0.0
          %4864 = vmatprep.subr.mxu0 0.0
          %4865 = vmatpush1.msra.mxu0 0.0
          %4866 = vmatprep.subr.mxu0 0.0
          %4867 = vmatpush1.msra.mxu0 %v4843
          %4868 = vmatprep.subr.mxu0 0.0
          %4869 = vmatpush1.msra.mxu0 %v4842
          %4870 = vmatprep.subr.mxu0 0.0
          %4871 = vmatpush1.msra.mxu0 %v4841
          %4872 = vmatprep.subr.mxu0 0.0
          %4873 = vmatpush1.msra.mxu0 %v4840
          %4874 = vmatprep.subr.mxu0 0.0
          %4875 = vmatpush1.msra.mxu0 %v4839
          %4876 = vmatprep.subr.mxu0 0.0
          %4877 = vmatpush1.msra.mxu0 %v4838
          %4878 = vmatprep.subr.mxu0 0.0
          %4879 = vmatpush1.msra.mxu0 %v4837
          %4880 = vmatprep.subr.mxu0 0.0
          %4881 = vmatpush1.msra.mxu0 %v4836
          %4882 = vmatprep.subr.mxu0 0.0
          %4883 = vmatpush2.msra.mxu0 0.0
          %4884 = vmatprep.subr.mxu0 0.0
          %4885 = vmatpush2.msra.mxu0 0.0
          %4886 = vmatprep.subr.mxu0 0.0
          %4887 = vmatpush2.msra.mxu0 0.0
          %4888 = vmatprep.subr.mxu0 0.0
          %4889 = vmatpush2.msra.mxu0 0.0
          %4890 = vmatprep.subr.mxu0 0.0
          %4891 = vmatpush2.msra.mxu0 0.0
          %4892 = vmatprep.subr.mxu0 0.0
          %4893 = vmatpush2.msra.mxu0 0.0
          %4894 = vmatprep.subr.mxu0 0.0
          %4895 = vmatpush2.msra.mxu0 0.0
          %4896 = vmatprep.subr.mxu0 0.0
          %4897 = vmatpush2.msra.mxu0 0.0
          %4898 = vmatprep.subr.mxu0 0.0
          %4899 = vmatpush2.msra.mxu0 0.0
          %4900 = vmatprep.subr.mxu0 0.0
          %4901 = vmatpush2.msra.mxu0 0.0
          %4902 = vmatprep.subr.mxu0 0.0
          %4903 = vmatpush2.msra.mxu0 0.0
          %4904 = vmatprep.subr.mxu0 0.0
          %4905 = vmatpush2.msra.mxu0 0.0
          %4906 = vmatprep.subr.mxu0 0.0
          %4907 = vmatpush2.msra.mxu0 0.0
          %4908 = vmatprep.subr.mxu0 0.0
          %4909 = vmatpush2.msra.mxu0 0.0
          %4910 = vmatprep.subr.mxu0 0.0
          %4911 = vmatpush2.msra.mxu0 0.0
          %4912 = vmatprep.subr.mxu0 0.0
          %4913 = vmatpush2.msra.mxu0 0.0
          %4914 = vmatprep.mubr.f32.mxu0 0.0
          %4915 = vmatmul.mubr.f32.gmra.mxu0 %v4848
          %v4916 = vpop.f32.mrf.mxu0
          %v4917 = vadd.f32 0.0, %v4916
          %v4918 = vpop.f32.mrf.mxu0
          %4919 = vdwg.mxu0
          %v4920 = vld [vmem:[%s57] sm:$0xff]
          %v4921 = vld [vmem:[%s57 + $0x8] sm:$0xff]
          %v4922 = vld [vmem:[%s57 + $0x10] sm:$0xff]
          %v4923 = vld [vmem:[%s57 + $0x18] sm:$0xff]
          %v4924 = vld [vmem:[%s59] sm:$0x1]
          %v4926 = vlaneseq
          %v4927 = vshrl.u32 %v4926, 7
          %v4928 = vsub.s32 0, %v4927
          %v4929 = vrot.slane %v4924, %v4928
          %v4932 = vsel %vm3849, %v4917, 0
          %4934 = vmatprep.subr.mxu0 0.0
          %4935 = vmatpush1.msra.mxu0 0.0
          %4936 = vmatprep.subr.mxu0 0.0
          %4937 = vmatpush1.msra.mxu0 0.0
          %4938 = vmatprep.subr.mxu0 0.0
          %4939 = vmatpush1.msra.mxu0 0.0
          %4940 = vmatprep.subr.mxu0 0.0
          %4941 = vmatpush1.msra.mxu0 0.0
          %4942 = vmatprep.subr.mxu0 0.0
          %4943 = vmatpush1.msra.mxu0 0.0
          %4944 = vmatprep.subr.mxu0 0.0
          %4945 = vmatpush1.msra.mxu0 0.0
          %4946 = vmatprep.subr.mxu0 0.0
          %4947 = vmatpush1.msra.mxu0 0.0
          %4948 = vmatprep.subr.mxu0 0.0
          %4949 = vmatpush1.msra.mxu0 0.0
          %4950 = vmatprep.subr.mxu0 0.0
          %4951 = vmatpush1.msra.mxu0 0.0
          %4952 = vmatprep.subr.mxu0 0.0
          %4953 = vmatpush1.msra.mxu0 0.0
          %4954 = vmatprep.subr.mxu0 0.0
          %4955 = vmatpush1.msra.mxu0 0.0
          %4956 = vmatprep.subr.mxu0 0.0
          %4957 = vmatpush1.msra.mxu0 0.0
          %4958 = vmatprep.subr.mxu0 0.0
          %4959 = vmatpush1.msra.mxu0 %v4923
          %4960 = vmatprep.subr.mxu0 0.0
          %4961 = vmatpush1.msra.mxu0 %v4922
          %4962 = vmatprep.subr.mxu0 0.0
          %4963 = vmatpush1.msra.mxu0 %v4921
          %4964 = vmatprep.subr.mxu0 0.0
          %4965 = vmatpush1.msra.mxu0 %v4920
          %4966 = vmatprep.subr.mxu0 0.0
          %4967 = vmatpush2.msra.mxu0 0.0
          %4968 = vmatprep.subr.mxu0 0.0
          %4969 = vmatpush2.msra.mxu0 0.0
          %4970 = vmatprep.subr.mxu0 0.0
          %4971 = vmatpush2.msra.mxu0 0.0
          %4972 = vmatprep.subr.mxu0 0.0
          %4973 = vmatpush2.msra.mxu0 0.0
          %4974 = vmatprep.subr.mxu0 0.0
          %4975 = vmatpush2.msra.mxu0 0.0
          %4976 = vmatprep.subr.mxu0 0.0
          %4977 = vmatpush2.msra.mxu0 0.0
          %4978 = vmatprep.subr.mxu0 0.0
          %4979 = vmatpush2.msra.mxu0 0.0
          %4980 = vmatprep.subr.mxu0 0.0
          %4981 = vmatpush2.msra.mxu0 0.0
          %4982 = vmatprep.subr.mxu0 0.0
          %4983 = vmatpush2.msra.mxu0 0.0
          %4984 = vmatprep.subr.mxu0 0.0
          %4985 = vmatpush2.msra.mxu0 0.0
          %4986 = vmatprep.subr.mxu0 0.0
          %4987 = vmatpush2.msra.mxu0 0.0
          %4988 = vmatprep.subr.mxu0 0.0
          %4989 = vmatpush2.msra.mxu0 0.0
          %4990 = vmatprep.subr.mxu0 0.0
          %4991 = vmatpush2.msra.mxu0 0.0
          %4992 = vmatprep.subr.mxu0 0.0
          %4993 = vmatpush2.msra.mxu0 0.0
          %4994 = vmatprep.subr.mxu0 0.0
          %4995 = vmatpush2.msra.mxu0 0.0
          %4996 = vmatprep.subr.mxu0 0.0
          %4997 = vmatpush2.msra.mxu0 0.0
          %4998 = vmatprep.mubr.f32.mxu0 0.0
          %4999 = vmatmul.mubr.f32.gmra.mxu0 %v4932
          %v5000 = vpop.f32.mrf.mxu0
          %v5001 = vadd.f32 %v4929, %v5000
          %v5002 = vpop.f32.mrf.mxu0
          %5003 = vdwg.mxu0
          %v5004 = vmax.f32 %v5001, 0.0
          %v5005 = vld [vmem:[%s61] sm:$0xff]
          %v5006 = vld [vmem:[%s61 + $0x8] sm:$0xff]
          %v5008 = vsel %vm1862, %v5004, 0
          %5010 = vmatprep.subr.mxu0 0.0
          %5011 = vmatpush1.msra.mxu0 0.0
          %5012 = vmatprep.subr.mxu0 0.0
          %5013 = vmatpush1.msra.mxu0 0.0
          %5014 = vmatprep.subr.mxu0 0.0
          %5015 = vmatpush1.msra.mxu0 0.0
          %5016 = vmatprep.subr.mxu0 0.0
          %5017 = vmatpush1.msra.mxu0 0.0
          %5018 = vmatprep.subr.mxu0 0.0
          %5019 = vmatpush1.msra.mxu0 0.0
          %5020 = vmatprep.subr.mxu0 0.0
          %5021 = vmatpush1.msra.mxu0 0.0
          %5022 = vmatprep.subr.mxu0 0.0
          %5023 = vmatpush1.msra.mxu0 0.0
          %5024 = vmatprep.subr.mxu0 0.0
          %5025 = vmatpush1.msra.mxu0 0.0
          %5026 = vmatprep.subr.mxu0 0.0
          %5027 = vmatpush1.msra.mxu0 0.0
          %5028 = vmatprep.subr.mxu0 0.0
          %5029 = vmatpush1.msra.mxu0 0.0
          %5030 = vmatprep.subr.mxu0 0.0
          %5031 = vmatpush1.msra.mxu0 0.0
          %5032 = vmatprep.subr.mxu0 0.0
          %5033 = vmatpush1.msra.mxu0 0.0
          %5034 = vmatprep.subr.mxu0 0.0
          %5035 = vmatpush1.msra.mxu0 0.0
          %5036 = vmatprep.subr.mxu0 0.0
          %5037 = vmatpush1.msra.mxu0 0.0
          %5038 = vmatprep.subr.mxu0 0.0
          %5039 = vmatpush1.msra.mxu0 %v5006
          %5040 = vmatprep.subr.mxu0 0.0
          %5041 = vmatpush1.msra.mxu0 %v5005
          %5042 = vmatprep.subr.mxu0 0.0
          %5043 = vmatpush2.msra.mxu0 0.0
          %5044 = vmatprep.subr.mxu0 0.0
          %5045 = vmatpush2.msra.mxu0 0.0
          %5046 = vmatprep.subr.mxu0 0.0
          %5047 = vmatpush2.msra.mxu0 0.0
          %5048 = vmatprep.subr.mxu0 0.0
          %5049 = vmatpush2.msra.mxu0 0.0
          %5050 = vmatprep.subr.mxu0 0.0
          %5051 = vmatpush2.msra.mxu0 0.0
          %5052 = vmatprep.subr.mxu0 0.0
          %5053 = vmatpush2.msra.mxu0 0.0
          %5054 = vmatprep.subr.mxu0 0.0
          %5055 = vmatpush2.msra.mxu0 0.0
          %5056 = vmatprep.subr.mxu0 0.0
          %5057 = vmatpush2.msra.mxu0 0.0
          %5058 = vmatprep.subr.mxu0 0.0
          %5059 = vmatpush2.msra.mxu0 0.0
          %5060 = vmatprep.subr.mxu0 0.0
          %5061 = vmatpush2.msra.mxu0 0.0
          %5062 = vmatprep.subr.mxu0 0.0
          %5063 = vmatpush2.msra.mxu0 0.0
          %5064 = vmatprep.subr.mxu0 0.0
          %5065 = vmatpush2.msra.mxu0 0.0
          %5066 = vmatprep.subr.mxu0 0.0
          %5067 = vmatpush2.msra.mxu0 0.0
          %5068 = vmatprep.subr.mxu0 0.0
          %5069 = vmatpush2.msra.mxu0 0.0
          %5070 = vmatprep.subr.mxu0 0.0
          %5071 = vmatpush2.msra.mxu0 0.0
          %5072 = vmatprep.subr.mxu0 0.0
          %5073 = vmatpush2.msra.mxu0 0.0
          %5074 = vmatprep.mubr.f32.mxu0 0.0
          %5075 = vmatmul.mubr.f32.gmra.mxu0 %v5008
          %v5076 = vpop.f32.mrf.mxu0
          %v5077 = vadd.f32 0.0, %v5076
          %v5078 = vpop.f32.mrf.mxu0
          %5079 = vdwg.mxu0
          %v5080 = vmul.f32 %v5077, 0.25
          %vm5081 = vcmask 33792
          %5082 = vst.msk [vmem:[#allocation5] sm:$0x3] %vm5081, %v5080
          %v5083 = vld [vmem:[%s63] sm:$0xff]
          %v5084 = vld [vmem:[%s63 + $0x8] sm:$0xff]
          %5085 = vmatprep.subr.mxu0 0.0
          %5086 = vmatpush1.msra.mxu0 0.0
          %5087 = vmatprep.subr.mxu0 0.0
          %5088 = vmatpush1.msra.mxu0 0.0
          %5089 = vmatprep.subr.mxu0 0.0
          %5090 = vmatpush1.msra.mxu0 0.0
          %5091 = vmatprep.subr.mxu0 0.0
          %5092 = vmatpush1.msra.mxu0 0.0
          %5093 = vmatprep.subr.mxu0 0.0
          %5094 = vmatpush1.msra.mxu0 0.0
          %5095 = vmatprep.subr.mxu0 0.0
          %5096 = vmatpush1.msra.mxu0 0.0
          %5097 = vmatprep.subr.mxu0 0.0
          %5098 = vmatpush1.msra.mxu0 0.0
          %5099 = vmatprep.subr.mxu0 0.0
          %5100 = vmatpush1.msra.mxu0 0.0
          %5101 = vmatprep.subr.mxu0 0.0
          %5102 = vmatpush1.msra.mxu0 0.0
          %5103 = vmatprep.subr.mxu0 0.0
          %5104 = vmatpush1.msra.mxu0 0.0
          %5105 = vmatprep.subr.mxu0 0.0
          %5106 = vmatpush1.msra.mxu0 0.0
          %5107 = vmatprep.subr.mxu0 0.0
          %5108 = vmatpush1.msra.mxu0 0.0
          %5109 = vmatprep.subr.mxu0 0.0
          %5110 = vmatpush1.msra.mxu0 0.0
          %5111 = vmatprep.subr.mxu0 0.0
          %5112 = vmatpush1.msra.mxu0 0.0
          %5113 = vmatprep.subr.mxu0 0.0
          %5114 = vmatpush1.msra.mxu0 %v5084
          %5115 = vmatprep.subr.mxu0 0.0
          %5116 = vmatpush1.msra.mxu0 %v5083
          %5117 = vmatprep.subr.mxu0 0.0
          %5118 = vmatpush2.msra.mxu0 0.0
          %5119 = vmatprep.subr.mxu0 0.0
          %5120 = vmatpush2.msra.mxu0 0.0
          %5121 = vmatprep.subr.mxu0 0.0
          %5122 = vmatpush2.msra.mxu0 0.0
          %5123 = vmatprep.subr.mxu0 0.0
          %5124 = vmatpush2.msra.mxu0 0.0
          %5125 = vmatprep.subr.mxu0 0.0
          %5126 = vmatpush2.msra.mxu0 0.0
          %5127 = vmatprep.subr.mxu0 0.0
          %5128 = vmatpush2.msra.mxu0 0.0
          %5129 = vmatprep.subr.mxu0 0.0
          %5130 = vmatpush2.msra.mxu0 0.0
          %5131 = vmatprep.subr.mxu0 0.0
          %5132 = vmatpush2.msra.mxu0 0.0
          %5133 = vmatprep.subr.mxu0 0.0
          %5134 = vmatpush2.msra.mxu0 0.0
          %5135 = vmatprep.subr.mxu0 0.0
          %5136 = vmatpush2.msra.mxu0 0.0
          %5137 = vmatprep.subr.mxu0 0.0
          %5138 = vmatpush2.msra.mxu0 0.0
          %5139 = vmatprep.subr.mxu0 0.0
          %5140 = vmatpush2.msra.mxu0 0.0
          %5141 = vmatprep.subr.mxu0 0.0
          %5142 = vmatpush2.msra.mxu0 0.0
          %5143 = vmatprep.subr.mxu0 0.0
          %5144 = vmatpush2.msra.mxu0 0.0
          %5145 = vmatprep.subr.mxu0 0.0
          %5146 = vmatpush2.msra.mxu0 0.0
          %5147 = vmatprep.subr.mxu0 0.0
          %5148 = vmatpush2.msra.mxu0 0.0
          %5149 = vmatprep.mubr.f32.mxu0 0.0
          %5150 = vmatmul.mubr.f32.gmra.mxu0 %v5008
          %v5151 = vpop.f32.mrf.mxu0
          %v5152 = vadd.f32 0.0, %v5151
          %v5153 = vpop.f32.mrf.mxu0
          %5154 = vdwg.mxu0
          %5155 = vst.msk [vmem:[#allocation3] sm:$0x3] %vm5081, %v5152
          %vm5156 = vcmask 123904
          %5157 = vst.msk [vmem:[#allocation7] sm:$0x3] %vm5156, %v5004
        $region156: #{tpu_custom_call.1} parent=147 // pred_fallthru
          _
        // Predicated region
        $region157: #{tpu_custom_call.1} parent=147 // pred_check
          %p5158 = pneg %p858
        $region158: #{tpu_custom_call.1} parent=147 // pred_check_branch
          %5160 = sbr.rel (%p5158) target = $region160
        $region159: #{tpu_custom_call.1} parent=147 // pred_region
          %s5162 = ssub.s32 32, 32
          %5163 = vsyncadd [#allocation4], %s5162
          %s5165 = sshll.u32 [#allocation3], 4
          %s5166 = int_to_ptr.vmem [resolvable:$true] %s5165
          %5168 = dma.vmem_to_hbm [thread:$0]  %s5166, 32, %s65, [#allocation4]
        $region160: #{tpu_custom_call.1} parent=147 // pred_fallthru
          _
        // Predicated region
        $region161: #{tpu_custom_call.1} parent=147 // pred_check
          %p5169 = pneg %p879
        $region162: #{tpu_custom_call.1} parent=147 // pred_check_branch
          %5171 = sbr.rel (%p5169) target = $region164
        $region163: #{tpu_custom_call.1} parent=147 // pred_region
          %s5173 = ssub.s32 32, 32
          %5174 = vsyncadd [#allocation6], %s5173
          %s5176 = sshll.u32 [#allocation5], 4
          %s5177 = int_to_ptr.vmem [resolvable:$true] %s5176
          %5179 = dma.vmem_to_hbm [thread:$0]  %s5177, 32, %s67, [#allocation6]
        $region164: #{tpu_custom_call.1} parent=147 // pred_fallthru
          _
        // Predicated region
        $region165: #{tpu_custom_call.1} parent=147 // pred_check
          %p5180 = pneg %p900
        $region166: #{tpu_custom_call.1} parent=147 // pred_check_branch
          %5182 = sbr.rel (%p5180) target = $region168
        $region167: #{tpu_custom_call.1} parent=147 // pred_region
          %s5184 = ssub.s32 32, 32
          %5185 = vsyncadd [#allocation6], %s5184
          %s5187 = sshll.u32 [#allocation7], 4
          %s5188 = int_to_ptr.vmem [resolvable:$true] %s5187
          %5190 = dma.vmem_to_hbm [thread:$0]  %s5188, 32, %s69, [#allocation6]
        $region168: #{tpu_custom_call.1} parent=147 // pred_fallthru
          _
        // Predicated region
        $region169: #{tpu_custom_call.1} parent=147 // pred_check
          %p5191 = pneg %p858
        $region170: #{tpu_custom_call.1} parent=147 // pred_check_branch
          %5193 = sbr.rel (%p5191) target = $region172
        $region171: #{tpu_custom_call.1} parent=147 // pred_region
          %5194 = dma.done [#allocation4], 32
        $region172: #{tpu_custom_call.1} parent=147 // pred_fallthru
          _
        // Predicated region
        $region173: #{tpu_custom_call.1} parent=147 // pred_check
          %p5195 = pneg %p879
        $region174: #{tpu_custom_call.1} parent=147 // pred_check_branch
          %5197 = sbr.rel (%p5195) target = $region176
        $region175: #{tpu_custom_call.1} parent=147 // pred_region
          %5198 = dma.done [#allocation6], 32
        $region176: #{tpu_custom_call.1} parent=147 // pred_fallthru
          _
        // Predicated region
        $region177: #{tpu_custom_call.1} parent=147 // pred_check
          %p5199 = pneg %p900
        $region178: #{tpu_custom_call.1} parent=147 // pred_check_branch
          %5201 = sbr.rel (%p5199) target = $region180
        $region179: #{tpu_custom_call.1} parent=147 // pred_region
          %5202 = dma.done [#allocation6], 32
        $region180: #{tpu_custom_call.1} parent=147 // pred_fallthru
          _
      $region148: #{tpu_custom_call.1} parent=5 // pred_fallthru
        _
      %p5203 = scmp.le.s32.totalorder 2, %s78
      // Predicated region
      $region181: #{tpu_custom_call.1} parent=5 // pred_check
        %p5204 = pneg %p5203
      $region182: #{tpu_custom_call.1} parent=5 // pred_check_branch
        %5206 = sbr.rel (%p5204) target = $region184
      $region183: #{tpu_custom_call.1} parent=5 // pred_region
        %s5207 = ssub.s32 %s78, 2
      $region184: #{tpu_custom_call.1} parent=5 // pred_fallthru
        _
    $region6: #{tpu_custom_call.1} parent=1 // loop_footer
      %s82 = sadd.s32 1, %s78
    $region7: #{tpu_custom_call.1} parent=1 // loop_footer_branch
      %77 = sbr.rel target = $region3
    $region8: #{tpu_custom_call.1} parent=1 // loop_exit
      _
    %5208 = vsyncpa [#allocation4], 1
    %s5209 = scalar_lea.sflag [#allocation4], 1
    %5210 = vsyncpa %s5209, 1
    %5211 = vsyncpa [#allocation6], 1

</llo_original>
